<compile_context>
chip_gen: v7x
topology: tpu7x:2x2x1
jax: 0.10.0
libtpu: 0.0.40
codegen_flags: <defaults>
</compile_context>

<pallas_src>
import functools

import jax
import jax.numpy as jnp
from jax import lax
from jax.experimental import pallas as pl
from jax.experimental.pallas import tpu as pltpu

MODALITIES = ("visual", "audio")
LN_EPS = 1e-5          # PyTorch nn.LayerNorm default
NEG_INF = -1e30        # additive mask for padded key positions


def _round_up(x, m):
    return (x + m - 1) // m * m


@functools.lru_cache(maxsize=None)
def _vmem_limit_bytes():
    # Generation-aware VMEM budget: ~75% of physical VMEM (96 MiB on 128-MiB
    # v5e/v6e, 48 MiB on 64-MiB v7x), capped at 100 MiB.
    cap = 128 * 1024 * 1024
    try:
        cap = int(pltpu.get_tpu_info().vmem_capacity_bytes)
    except Exception:
        pass
    return int(min(100 * 1024 * 1024, cap * 3 // 4))


def _const_spec(arr):
    """Spec for grid-invariant operands (weights / biases / key mask).

    Their index_map is constant across the grid, so double-buffering buys
    nothing; single-buffer them to halve resident weight VMEM (the difference
    between fitting and not fitting on v7x's 64 MiB VMEM).
    """
    nd = arr.ndim
    idx = lambda i, _nd=nd: (0,) * _nd
    if hasattr(pl, "Buffered"):
        return pl.BlockSpec(arr.shape, idx, pipeline_mode=pl.Buffered(1))
    return pl.BlockSpec(arr.shape, idx)


# ---------------------------------------------------------------------------
# In-kernel helpers
# ---------------------------------------------------------------------------
def _layernorm(x, w, b):
    mu = jnp.mean(x, axis=-1, keepdims=True)
    var = jnp.mean((x - mu) ** 2, axis=-1, keepdims=True)
    return (x - mu) * lax.rsqrt(var + LN_EPS) * w + b


def _gelu(x):
    # tanh-approximate GELU: the tanh rides the EUP slot.
    # TODO(synk): PyTorch nn.GELU() default is the exact erf form; the tanh
    # approximation differs by up to ~1e-3 per element.
    c = 0.7978845608028654  # sqrt(2/pi)
    return 0.5 * x * (1.0 + jnp.tanh(c * (x + 0.044715 * x * x * x)))


# ---------------------------------------------------------------------------
# Transformer Block kernel (one Block for `bb` batch elements per grid step)
# ---------------------------------------------------------------------------
def block_kernel(x_ref, b_ref, kbias_ref,
                 ln1_w, ln1_b, wqkv, wproj, bproj,
                 ln2_w, ln2_b, wfc1, bfc1, wfc2, bfc2,
                 ox_ref, ob_ref, xbuf, attn_buf, *, num_heads, masked):
    bb, t_pad, D = x_ref.shape
    nb_pad = b_ref.shape[1]
    n_tok = t_pad + nb_pad
    head_dim = D // num_heads

    # ---- sublane-aligned join [x_mod ; bottleneck] per sample, flattened to
    # (bb * n_tok, D) so the row-wise matmuls see one tall M dimension ----
    for s in range(bb):
        r0 = s * n_tok
        xbuf[r0:r0 + t_pad, :] = x_ref[s]
        xbuf[r0 + t_pad:r0 + n_tok, :] = b_ref[s]
    x = xbuf[...]                                          # (R, D) f32

    # ---- attention branch: x = x + Proj(MHSA(LN1(x))) ----
    xn = _layernorm(x, ln1_w[...], ln1_b[...]).astype(jnp.bfloat16)
    # fused QKV projection: one full-K MXU matmul (R, 3D)
    qkv = jnp.dot(xn, wqkv[...], preferred_element_type=jnp.float32)
    kbias = kbias_ref[...]                                 # (1, n_tok)

    for s in range(bb):                                    # attention per-sample
        r0 = s * n_tok
        acc = jnp.zeros((n_tok, D), jnp.float32)
        for h in range(num_heads):                         # static unrolled
            lo = h * head_dim
            hi = lo + head_dim
            q = qkv[r0:r0 + n_tok, lo:hi].astype(jnp.bfloat16)
            k = qkv[r0:r0 + n_tok, D + lo:D + hi].astype(jnp.bfloat16)
            v = qkv[r0:r0 + n_tok, 2 * D + lo:2 * D + hi].astype(jnp.bfloat16)
            # attention scale already folded into the Q columns of wqkv
            sc = lax.dot_general(q, k, (((1,), (1,)), ((), ())),
                                 preferred_element_type=jnp.float32)
            if masked:
                sc = sc + kbias                            # mask padded keys
            sc = sc - jnp.max(sc, axis=-1, keepdims=True)
            p = jnp.exp(sc)
            p = p * pl.reciprocal(jnp.sum(p, axis=-1, keepdims=True),
                                  approx=True)
            o_h = jnp.dot(p.astype(jnp.bfloat16), v,
                          preferred_element_type=jnp.float32)  # (n_tok, hd)
            # Accumulate the output projection per head instead of doing
            # lane-misaligned (hd < 128) masked stores into a head buffer.
            acc = acc + jnp.dot(o_h.astype(jnp.bfloat16), wproj[lo:hi, :],
                                preferred_element_type=jnp.float32)
        attn_buf[r0:r0 + n_tok, :] = acc                   # aligned, lane-dense
    x = x + attn_buf[...] + bproj[...]

    # ---- MLP branch: x = x + FC2(GELU(FC1(LN2(x)))) ----
    xn2 = _layernorm(x, ln2_w[...], ln2_b[...]).astype(jnp.bfloat16)
    h1 = jnp.dot(xn2, wfc1[...], preferred_element_type=jnp.float32) + bfc1[...]
    h1 = _gelu(h1).astype(jnp.bfloat16)
    h2 = jnp.dot(h1, wfc2[...], preferred_element_type=jnp.float32) + bfc2[...]
    y = x + h2

    # ---- sublane-aligned split back into x_mod / bottleneck outputs ----
    for s in range(bb):
        r0 = s * n_tok
        ox_ref[s] = y[r0:r0 + t_pad, :]
        ob_ref[s] = y[r0 + t_pad:r0 + n_tok, :]


_BLOCK_PARAM_ORDER = ("ln1_w", "ln1_b", "wqkv", "wproj", "bproj",
                      "ln2_w", "ln2_b", "wfc1", "bfc1", "wfc2", "bfc2")


def run_block(x_mod, bottleneck, key_bias, p, num_heads, *, bb, masked):
    """One transformer Block on concat([x_mod, bottleneck], axis=1).

    Returns (x_mod_out, bottleneck_out); the concat/split never touch HBM.
    `bb` batch elements are processed per grid step.
    """
    B, t_pad, D = x_mod.shape
    nb_pad = bottleneck.shape[1]
    n_tok = t_pad + nb_pad
    operands = [p[name] for name in _BLOCK_PARAM_ORDER]
    kernel = functools.partial(block_kernel, num_heads=num_heads, masked=masked)
    return pl.pallas_call(
        kernel,
        out_shape=(jax.ShapeDtypeStruct((B, t_pad, D), jnp.float32),
                   jax.ShapeDtypeStruct((B, nb_pad, D), jnp.float32)),
        grid=(B // bb,),
        in_specs=[pl.BlockSpec((bb, t_pad, D), lambda i: (i, 0, 0)),
                  pl.BlockSpec((bb, nb_pad, D), lambda i: (i, 0, 0)),
                  _const_spec(key_bias)]
                 + [_const_spec(o) for o in operands],
        out_specs=(pl.BlockSpec((bb, t_pad, D), lambda i: (i, 0, 0)),
                   pl.BlockSpec((bb, nb_pad, D), lambda i: (i, 0, 0))),
        scratch_shapes=[pltpu.VMEM((bb * n_tok, D), jnp.float32),   # joined seq
                        pltpu.VMEM((bb * n_tok, D), jnp.float32)],  # attn out
        compiler_params=pltpu.CompilerParams(
            dimension_semantics=("parallel",),
            vmem_limit_bytes=_vmem_limit_bytes()),
    )(x_mod, bottleneck, key_bias, *operands)


# ---------------------------------------------------------------------------
# Classifier head: LayerNorm of the cls rows + output projection
# ---------------------------------------------------------------------------
def cls_head_kernel(cls_ref, ln_w, ln_b, w_ref, b_ref, o_ref):
    xn = _layernorm(cls_ref[...], ln_w[...], ln_b[...]).astype(jnp.bfloat16)
    o_ref[...] = (jnp.dot(xn, w_ref[...].astype(jnp.bfloat16),
                          preferred_element_type=jnp.float32) + b_ref[...])


def run_cls_head(cls_rows, ln_w, ln_b, out_w, out_b):
    R, D = cls_rows.shape
    C = out_w.shape[1]
    return pl.pallas_call(
        cls_head_kernel,
        out_shape=jax.ShapeDtypeStruct((R, C), jnp.float32),
        grid=(1,),
        in_specs=[pl.BlockSpec((R, D), lambda i: (0, 0)),
                  pl.BlockSpec((1, D), lambda i: (0, 0)),
                  pl.BlockSpec((1, D), lambda i: (0, 0)),
                  pl.BlockSpec((D, C), lambda i: (0, 0)),
                  pl.BlockSpec((1, C), lambda i: (0, 0))],
        out_specs=pl.BlockSpec((R, C), lambda i: (0, 0)),
    )(cls_rows, ln_w, ln_b, out_w, out_b)


# ---------------------------------------------------------------------------
# Parameter initialization (deterministic, synthetic)
# ---------------------------------------------------------------------------
def init_block_params(key, D, mlp_hidden, num_heads):
    head_dim = D // num_heads
    scale = head_dim ** (-0.5)
    ks = jax.random.split(key, 6)
    nrm = lambda k, shape, s=0.02: jax.random.normal(k, shape, jnp.float32) * s
    # qkv Linear(dim, 3*dim, bias=False), stored (in, out); fold the attention
    # scale into the Q columns so the kernel never scales the score matrix.
    wqkv = nrm(ks[0], (D, 3 * D))
    wqkv = wqkv.at[:, :D].multiply(scale)
    return dict(
        ln1_w=jnp.ones((1, D), jnp.float32),
        ln1_b=jnp.zeros((1, D), jnp.float32),
        wqkv=wqkv.astype(jnp.bfloat16),
        wproj=nrm(ks[1], (D, D)).astype(jnp.bfloat16),     # proj (in, out)
        bproj=jnp.zeros((1, D), jnp.float32),
        ln2_w=jnp.ones((1, D), jnp.float32),
        ln2_b=jnp.zeros((1, D), jnp.float32),
        wfc1=nrm(ks[2], (D, mlp_hidden)).astype(jnp.bfloat16),
        bfc1=nrm(ks[3], (1, mlp_hidden), 1e-6),
        wfc2=nrm(ks[4], (mlp_hidden, D)).astype(jnp.bfloat16),
        bfc2=nrm(ks[5], (1, D), 1e-6),
    )


def init_mbt_params(key, num_layers, num_heads, num_classes, hidden_size,
                    n_bottlenecks):
    D = hidden_size
    n_blocks = num_layers * len(MODALITIES)
    keys = jax.random.split(key, n_blocks + 1)
    params = {"encoder": {}}
    i = 0
    for mod in MODALITIES:
        params["encoder"][mod] = []
        for _ in range(num_layers):
            params["encoder"][mod].append(
                init_block_params(keys[i], D, int(D * 4.0), num_heads))
            i += 1
    # bottleneck ~ N(0, 0.02); cls tokens are zeros (matching the PyTorch init)
    params["bottleneck"] = jax.random.normal(
        keys[i], (1, n_bottlenecks, D), jnp.float32) * 0.02
    params["cls_token"] = {m: jnp.zeros((1, 1, D), jnp.float32)
                           for m in MODALITIES}
    params["ln_w"] = jnp.ones((1, D), jnp.float32)
    params["ln_b"] = jnp.zeros((1, D), jnp.float32)
    # output_projection_fc is zero-initialized in the PyTorch module
    params["out_w"] = jnp.zeros((D, num_classes), jnp.float32)
    params["out_b"] = jnp.zeros((1, num_classes), jnp.float32)
    return params


# ---------------------------------------------------------------------------
# Full MBT forward
# ---------------------------------------------------------------------------
def mbt_forward(v, a, params, *, num_heads, num_layers, batch_block=4):
    n, v_t, D = v.shape
    x = {"visual": v.astype(jnp.float32), "audio": a.astype(jnp.float32)}

    # --- bottleneck, zero-padded to a multiple of 8 tokens ---
    nb = params["bottleneck"].shape[1]
    nb_pad = _round_up(nb, 8)
    bottleneck = jnp.broadcast_to(params["bottleneck"], (n, nb, D))
    if nb_pad > nb:
        bottleneck = jnp.concatenate(
            [bottleneck, jnp.zeros((n, nb_pad - nb, D), jnp.float32)], axis=1)

    # --- prepend cls token, zero-pad each modality to a multiple of 8 ---
    t_valid, key_bias = {}, {}
    for mod in MODALITIES:
        cls = jnp.broadcast_to(params["cls_token"][mod], (n, 1, D))
        seq = jnp.concatenate([cls, x[mod]], axis=1)
        t = seq.shape[1]
        t_pad = _round_up(t, 8)
        if t_pad > t:
            seq = jnp.concatenate(
                [seq, jnp.zeros((n, t_pad - t, D), jnp.float32)], axis=1)
        x[mod] = seq
        t_valid[mod] = t
        # additive key mask: 0 for real tokens, -1e30 for padded positions
        n_pad = t_pad + nb_pad
        pos = jnp.arange(n_pad)
        valid = (pos < t) | ((pos >= t_pad) & (pos < t_pad + nb))
        key_bias[mod] = jnp.where(valid, 0.0, NEG_INF).astype(
            jnp.float32)[None, :]

    # per-grid-step batch tile (largest divisor of n that is <= batch_block);
    # pick batch_block <= n//2 on v7x so both TensorCores get grid steps.
    bb = max(d for d in range(1, min(batch_block, n) + 1) if n % d == 0)

    # TODO(synk): nn.Dropout / DropPath are stochastic in train mode (DropPath
    # is not defined in the source); implemented as identity (eval-mode).
    for lyr in range(num_layers):
        bottle = []
        for mod in MODALITIES:
            masked = (x[mod].shape[1] != t_valid[mod]) or (nb_pad != nb)
            x[mod], b_out = run_block(
                x[mod], bottleneck, key_bias[mod],
                params["encoder"][mod][lyr], num_heads, bb=bb, masked=masked)
            bottle.append(b_out)
        bottleneck = jnp.mean(jnp.stack(bottle, axis=-1), axis=-1)

    # classifier == 'token': only row 0 (cls) of each modality feeds the head.
    # LayerNorm is row-wise, so normalizing just those rows is identical to
    # normalizing the full concatenated sequence (and skips the HBM concat).
    cls_rows = jnp.concatenate([x[mod][:, 0, :] for mod in MODALITIES], axis=0)
    logits = run_cls_head(cls_rows, params["ln_w"], params["ln_b"],
                          params["out_w"], params["out_b"])
    # PyTorch projects both modalities but returns the 'visual' one.
    return logits[:n]


# ---------------------------------------------------------------------------
if __name__ == "__main__":
    # Small, MBT-consistent shapes
    B, v_t, a_t = 4, 8, 8
    hidden_size = 32          # stands in for 768
    num_layers = 2
    num_heads = 4
    num_classes = 10
    n_bottlenecks = 4

    root = jax.random.PRNGKey(0)
    kv, ka, kp = jax.random.split(root, 3)
    v = jax.random.normal(kv, (B, v_t, hidden_size), jnp.float32)
    a = jax.random.normal(ka, (B, a_t, hidden_size), jnp.float32)

    params = init_mbt_params(kp, num_layers, num_heads, num_classes,
                             hidden_size, n_bottlenecks)

    fwd = jax.jit(functools.partial(mbt_forward, num_heads=num_heads,
                                    num_layers=num_layers, batch_block=2))
    out = jax.block_until_ready(fwd(v, a, params))

    assert out.shape == (B, num_classes), out.shape
    assert bool(jnp.all(jnp.isfinite(out)))
    print("KERNEL_OK")
</pallas_src>

<mosaic_0001>
module attributes {stable_mosaic.version = 11 : i64} {
  func.func @block_kernel(%arg0: i32, %arg1: memref<2x16x32xf32, #tpu.memory_space<vmem>>, %arg2: memref<2x8x32xf32, #tpu.memory_space<vmem>>, %arg3: memref<1x24xf32, #tpu.memory_space<vmem>>, %arg4: memref<1x32xf32, #tpu.memory_space<vmem>>, %arg5: memref<1x32xf32, #tpu.memory_space<vmem>>, %arg6: memref<32x96xbf16, #tpu.memory_space<vmem>>, %arg7: memref<32x32xbf16, #tpu.memory_space<vmem>>, %arg8: memref<1x32xf32, #tpu.memory_space<vmem>>, %arg9: memref<1x32xf32, #tpu.memory_space<vmem>>, %arg10: memref<1x32xf32, #tpu.memory_space<vmem>>, %arg11: memref<32x128xbf16, #tpu.memory_space<vmem>>, %arg12: memref<1x128xf32, #tpu.memory_space<vmem>>, %arg13: memref<128x32xbf16, #tpu.memory_space<vmem>>, %arg14: memref<1x32xf32, #tpu.memory_space<vmem>>, %arg15: memref<2x16x32xf32, #tpu.memory_space<vmem>>, %arg16: memref<2x8x32xf32, #tpu.memory_space<vmem>>, %arg17: memref<48x32xf32, #tpu.memory_space<vmem>>, %arg18: memref<48x32xf32, #tpu.memory_space<vmem>>) attributes {dimension_semantics = [#tpu.dimension_semantics<parallel>], iteration_bounds = array<i64: 2>, scalar_prefetch = 0 : i64, scratch_operands = 2 : i64, tpu.core_type = #tpu.core_type<tc>, window_params = [{transform_indices = @transform_0, window_bounds = array<i64: 2, 16, 32>}, {transform_indices = @transform_1, window_bounds = array<i64: 2, 8, 32>}, {pipeline_mode = #tpu.pipeline_mode<synchronous>, transform_indices = @transform_2, window_bounds = array<i64: 1, 24>}, {pipeline_mode = #tpu.pipeline_mode<synchronous>, transform_indices = @transform_3, window_bounds = array<i64: 1, 32>}, {pipeline_mode = #tpu.pipeline_mode<synchronous>, transform_indices = @transform_4, window_bounds = array<i64: 1, 32>}, {pipeline_mode = #tpu.pipeline_mode<synchronous>, transform_indices = @transform_5, window_bounds = array<i64: 32, 96>}, {pipeline_mode = #tpu.pipeline_mode<synchronous>, transform_indices = @transform_6, window_bounds = array<i64: 32, 32>}, {pipeline_mode = #tpu.pipeline_mode<synchronous>, transform_indices = @transform_7, window_bounds = array<i64: 1, 32>}, {pipeline_mode = #tpu.pipeline_mode<synchronous>, transform_indices = @transform_8, window_bounds = array<i64: 1, 32>}, {pipeline_mode = #tpu.pipeline_mode<synchronous>, transform_indices = @transform_9, window_bounds = array<i64: 1, 32>}, {pipeline_mode = #tpu.pipeline_mode<synchronous>, transform_indices = @transform_10, window_bounds = array<i64: 32, 128>}, {pipeline_mode = #tpu.pipeline_mode<synchronous>, transform_indices = @transform_11, window_bounds = array<i64: 1, 128>}, {pipeline_mode = #tpu.pipeline_mode<synchronous>, transform_indices = @transform_12, window_bounds = array<i64: 128, 32>}, {pipeline_mode = #tpu.pipeline_mode<synchronous>, transform_indices = @transform_13, window_bounds = array<i64: 1, 32>}, {transform_indices = @transform_14, window_bounds = array<i64: 2, 16, 32>}, {transform_indices = @transform_15, window_bounds = array<i64: 2, 8, 32>}]} {
    %c0 = arith.constant 0 : index
    %c0_0 = arith.constant 0 : index
    %c0_1 = arith.constant 0 : index
    %0 = vector.load %arg1[%c0, %c0_0, %c0_1] : memref<2x16x32xf32, #tpu.memory_space<vmem>>, vector<1x16x32xf32>
    %1 = vector.shape_cast %0 : vector<1x16x32xf32> to vector<16x32xf32>
    %c0_2 = arith.constant 0 : index
    %c0_3 = arith.constant 0 : index
    %2 = vector.load %arg17[%c0_2, %c0_3] : memref<48x32xf32, #tpu.memory_space<vmem>>, vector<16x32xf32>
    tpu.vector_store %arg17[%c0_2, %c0_3], %1 {strides = array<i32>} : memref<48x32xf32, #tpu.memory_space<vmem>>, vector<16x32xf32>,
    %c0_4 = arith.constant 0 : index
    %c0_5 = arith.constant 0 : index
    %c0_6 = arith.constant 0 : index
    %3 = vector.load %arg2[%c0_4, %c0_5, %c0_6] : memref<2x8x32xf32, #tpu.memory_space<vmem>>, vector<1x8x32xf32>
    %4 = vector.shape_cast %3 : vector<1x8x32xf32> to vector<8x32xf32>
    %c16 = arith.constant 16 : index
    %c0_7 = arith.constant 0 : index
    %5 = vector.load %arg17[%c16, %c0_7] : memref<48x32xf32, #tpu.memory_space<vmem>>, vector<8x32xf32>
    tpu.vector_store %arg17[%c16, %c0_7], %4 {strides = array<i32>} : memref<48x32xf32, #tpu.memory_space<vmem>>, vector<8x32xf32>,
    %c1 = arith.constant 1 : index
    %c0_8 = arith.constant 0 : index
    %c0_9 = arith.constant 0 : index
    %6 = vector.load %arg1[%c1, %c0_8, %c0_9] : memref<2x16x32xf32, #tpu.memory_space<vmem>>, vector<1x16x32xf32>
    %7 = vector.shape_cast %6 : vector<1x16x32xf32> to vector<16x32xf32>
    %c24 = arith.constant 24 : index
    %c0_10 = arith.constant 0 : index
    %8 = vector.load %arg17[%c24, %c0_10] : memref<48x32xf32, #tpu.memory_space<vmem>>, vector<16x32xf32>
    tpu.vector_store %arg17[%c24, %c0_10], %7 {strides = array<i32>} : memref<48x32xf32, #tpu.memory_space<vmem>>, vector<16x32xf32>,
    %c1_11 = arith.constant 1 : index
    %c0_12 = arith.constant 0 : index
    %c0_13 = arith.constant 0 : index
    %9 = vector.load %arg2[%c1_11, %c0_12, %c0_13] : memref<2x8x32xf32, #tpu.memory_space<vmem>>, vector<1x8x32xf32>
    %10 = vector.shape_cast %9 : vector<1x8x32xf32> to vector<8x32xf32>
    %c40 = arith.constant 40 : index
    %c0_14 = arith.constant 0 : index
    %11 = vector.load %arg17[%c40, %c0_14] : memref<48x32xf32, #tpu.memory_space<vmem>>, vector<8x32xf32>
    tpu.vector_store %arg17[%c40, %c0_14], %10 {strides = array<i32>} : memref<48x32xf32, #tpu.memory_space<vmem>>, vector<8x32xf32>,
    %c0_15 = arith.constant 0 : index
    %c0_16 = arith.constant 0 : index
    %12 = vector.load %arg17[%c0_15, %c0_16] : memref<48x32xf32, #tpu.memory_space<vmem>>, vector<48x32xf32>
    %c0_17 = arith.constant 0 : index
    %c0_18 = arith.constant 0 : index
    %13 = vector.load %arg4[%c0_17, %c0_18] : memref<1x32xf32, #tpu.memory_space<vmem>>, vector<1x32xf32>
    %c0_19 = arith.constant 0 : index
    %c0_20 = arith.constant 0 : index
    %14 = vector.load %arg5[%c0_19, %c0_20] : memref<1x32xf32, #tpu.memory_space<vmem>>, vector<1x32xf32>
    %cst = arith.constant dense<0.000000e+00> : vector<48xf32>
    %15 = vector.multi_reduction <add>, %12, %cst [1] : vector<48x32xf32> to vector<48xf32>
    %16 = vector.shape_cast %15 : vector<48xf32> to vector<48x1xf32>
    %cst_21 = arith.constant 3.200000e+01 : f32
    %17 = vector.broadcast %cst_21 : f32 to vector<48x1xf32>
    %18 = arith.divf %16, %17 : vector<48x1xf32>
    %19 = vector.broadcast %18 : vector<48x1xf32> to vector<48x32xf32>
    %20 = arith.subf %12, %19 : vector<48x32xf32>
    %21 = arith.mulf %20, %20 : vector<48x32xf32>
    %cst_22 = arith.constant dense<0.000000e+00> : vector<48xf32>
    %22 = vector.multi_reduction <add>, %21, %cst_22 [1] : vector<48x32xf32> to vector<48xf32>
    %23 = vector.shape_cast %22 : vector<48xf32> to vector<48x1xf32>
    %cst_23 = arith.constant 3.200000e+01 : f32
    %24 = vector.broadcast %cst_23 : f32 to vector<48x1xf32>
    %25 = arith.divf %23, %24 : vector<48x1xf32>
    %26 = vector.broadcast %18 : vector<48x1xf32> to vector<48x32xf32>
    %27 = arith.subf %12, %26 : vector<48x32xf32>
    %cst_24 = arith.constant 9.99999974E-6 : f32
    %28 = vector.broadcast %cst_24 : f32 to vector<48x1xf32>
    %29 = arith.addf %25, %28 : vector<48x1xf32>
    %30 = math.rsqrt %29 : vector<48x1xf32>
    %31 = vector.broadcast %30 : vector<48x1xf32> to vector<48x32xf32>
    %32 = arith.mulf %27, %31 : vector<48x32xf32>
    %33 = vector.broadcast %13 : vector<1x32xf32> to vector<48x32xf32>
    %34 = arith.mulf %32, %33 : vector<48x32xf32>
    %35 = vector.broadcast %14 : vector<1x32xf32> to vector<48x32xf32>
    %36 = arith.addf %34, %35 : vector<48x32xf32>
    %37 = arith.truncf %36 : vector<48x32xf32> to vector<48x32xbf16>
    %c0_25 = arith.constant 0 : index
    %c0_26 = arith.constant 0 : index
    %38 = vector.load %arg6[%c0_25, %c0_26] : memref<32x96xbf16, #tpu.memory_space<vmem>>, vector<32x96xbf16>
    %cst_27 = arith.constant dense<0.000000e+00> : vector<48x96xf32>
    %39 = tpu.matmul %37, %38, %cst_27 {dimension_numbers = #tpu.dot_dimension_numbers<[1], [0], [0], [1], [0, 0, 1, 1], [], []>} : vector<48x32xbf16>, vector<32x96xbf16>, vector<48x96xf32> -> vector<48x96xf32>
    %c0_28 = arith.constant 0 : index
    %c0_29 = arith.constant 0 : index
    %40 = vector.load %arg3[%c0_28, %c0_29] : memref<1x24xf32, #tpu.memory_space<vmem>>, vector<1x24xf32>
    %cst_30 = arith.constant 0.000000e+00 : f32
    %41 = vector.broadcast %cst_30 : f32 to vector<24x32xf32>
    %42 = vector.extract_strided_slice %39 {offsets = [0, 0], sizes = [24, 8], strides = [1, 1]} : vector<48x96xf32> to vector<24x8xf32>
    %43 = arith.truncf %42 : vector<24x8xf32> to vector<24x8xbf16>
    %44 = vector.extract_strided_slice %39 {offsets = [0, 32], sizes = [24, 8], strides = [1, 1]} : vector<48x96xf32> to vector<24x8xf32>
    %45 = arith.truncf %44 : vector<24x8xf32> to vector<24x8xbf16>
    %46 = vector.extract_strided_slice %39 {offsets = [0, 64], sizes = [24, 8], strides = [1, 1]} : vector<48x96xf32> to vector<24x8xf32>
    %47 = arith.truncf %46 : vector<24x8xf32> to vector<24x8xbf16>
    %cst_31 = arith.constant dense<0.000000e+00> : vector<24x24xf32>
    %48 = tpu.matmul %43, %45, %cst_31 {dimension_numbers = #tpu.dot_dimension_numbers<[1], [1], [0], [0], [0, 0, 1, 0], [], []>} : vector<24x8xbf16>, vector<24x8xbf16>, vector<24x24xf32> -> vector<24x24xf32>
    %49 = vector.broadcast %40 : vector<1x24xf32> to vector<24x24xf32>
    %50 = arith.addf %48, %49 : vector<24x24xf32>
    %cst_32 = arith.constant dense<0xFF800000> : vector<24xf32>
    %51 = vector.multi_reduction <maximumf>, %50, %cst_32 [1] : vector<24x24xf32> to vector<24xf32>
    %52 = vector.shape_cast %51 : vector<24xf32> to vector<24x1xf32>
    %53 = vector.broadcast %52 : vector<24x1xf32> to vector<24x24xf32>
    %54 = arith.subf %50, %53 : vector<24x24xf32>
    %55 = math.exp %54 : vector<24x24xf32>
    %cst_33 = arith.constant dense<0.000000e+00> : vector<24xf32>
    %56 = vector.multi_reduction <add>, %55, %cst_33 [1] : vector<24x24xf32> to vector<24xf32>
    %57 = vector.shape_cast %56 : vector<24xf32> to vector<24x1xf32>
    %58 = tpu.reciprocal %57 {approx = true} : vector<24x1xf32> -> vector<24x1xf32>
    %59 = vector.broadcast %58 : vector<24x1xf32> to vector<24x24xf32>
    %60 = arith.mulf %55, %59 : vector<24x24xf32>
    %61 = arith.truncf %60 : vector<24x24xf32> to vector<24x24xbf16>
    %cst_34 = arith.constant dense<0.000000e+00> : vector<24x8xf32>
    %62 = tpu.matmul %61, %47, %cst_34 {dimension_numbers = #tpu.dot_dimension_numbers<[1], [0], [0], [1], [0, 0, 1, 1], [], []>} : vector<24x24xbf16>, vector<24x8xbf16>, vector<24x8xf32> -> vector<24x8xf32>
    %63 = arith.truncf %62 : vector<24x8xf32> to vector<24x8xbf16>
    %c0_35 = arith.constant 0 : index
    %c0_36 = arith.constant 0 : index
    %64 = vector.load %arg7[%c0_35, %c0_36] : memref<32x32xbf16, #tpu.memory_space<vmem>>, vector<8x32xbf16>
    %cst_37 = arith.constant dense<0.000000e+00> : vector<24x32xf32>
    %65 = tpu.matmul %63, %64, %cst_37 {dimension_numbers = #tpu.dot_dimension_numbers<[1], [0], [0], [1], [0, 0, 1, 1], [], []>} : vector<24x8xbf16>, vector<8x32xbf16>, vector<24x32xf32> -> vector<24x32xf32>
    %66 = arith.addf %41, %65 : vector<24x32xf32>
    %67 = vector.extract_strided_slice %39 {offsets = [0, 8], sizes = [24, 8], strides = [1, 1]} : vector<48x96xf32> to vector<24x8xf32>
    %68 = arith.truncf %67 : vector<24x8xf32> to vector<24x8xbf16>
    %69 = vector.extract_strided_slice %39 {offsets = [0, 40], sizes = [24, 8], strides = [1, 1]} : vector<48x96xf32> to vector<24x8xf32>
    %70 = arith.truncf %69 : vector<24x8xf32> to vector<24x8xbf16>
    %71 = vector.extract_strided_slice %39 {offsets = [0, 72], sizes = [24, 8], strides = [1, 1]} : vector<48x96xf32> to vector<24x8xf32>
    %72 = arith.truncf %71 : vector<24x8xf32> to vector<24x8xbf16>
    %cst_38 = arith.constant dense<0.000000e+00> : vector<24x24xf32>
    %73 = tpu.matmul %68, %70, %cst_38 {dimension_numbers = #tpu.dot_dimension_numbers<[1], [1], [0], [0], [0, 0, 1, 0], [], []>} : vector<24x8xbf16>, vector<24x8xbf16>, vector<24x24xf32> -> vector<24x24xf32>
    %74 = vector.broadcast %40 : vector<1x24xf32> to vector<24x24xf32>
    %75 = arith.addf %73, %74 : vector<24x24xf32>
    %cst_39 = arith.constant dense<0xFF800000> : vector<24xf32>
    %76 = vector.multi_reduction <maximumf>, %75, %cst_39 [1] : vector<24x24xf32> to vector<24xf32>
    %77 = vector.shape_cast %76 : vector<24xf32> to vector<24x1xf32>
    %78 = vector.broadcast %77 : vector<24x1xf32> to vector<24x24xf32>
    %79 = arith.subf %75, %78 : vector<24x24xf32>
    %80 = math.exp %79 : vector<24x24xf32>
    %cst_40 = arith.constant dense<0.000000e+00> : vector<24xf32>
    %81 = vector.multi_reduction <add>, %80, %cst_40 [1] : vector<24x24xf32> to vector<24xf32>
    %82 = vector.shape_cast %81 : vector<24xf32> to vector<24x1xf32>
    %83 = tpu.reciprocal %82 {approx = true} : vector<24x1xf32> -> vector<24x1xf32>
    %84 = vector.broadcast %83 : vector<24x1xf32> to vector<24x24xf32>
    %85 = arith.mulf %80, %84 : vector<24x24xf32>
    %86 = arith.truncf %85 : vector<24x24xf32> to vector<24x24xbf16>
    %cst_41 = arith.constant dense<0.000000e+00> : vector<24x8xf32>
    %87 = tpu.matmul %86, %72, %cst_41 {dimension_numbers = #tpu.dot_dimension_numbers<[1], [0], [0], [1], [0, 0, 1, 1], [], []>} : vector<24x24xbf16>, vector<24x8xbf16>, vector<24x8xf32> -> vector<24x8xf32>
    %88 = arith.truncf %87 : vector<24x8xf32> to vector<24x8xbf16>
    %c8 = arith.constant 8 : index
    %c0_42 = arith.constant 0 : index
    %89 = vector.load %arg7[%c8, %c0_42] : memref<32x32xbf16, #tpu.memory_space<vmem>>, vector<8x32xbf16>
    %cst_43 = arith.constant dense<0.000000e+00> : vector<24x32xf32>
    %90 = tpu.matmul %88, %89, %cst_43 {dimension_numbers = #tpu.dot_dimension_numbers<[1], [0], [0], [1], [0, 0, 1, 1], [], []>} : vector<24x8xbf16>, vector<8x32xbf16>, vector<24x32xf32> -> vector<24x32xf32>
    %91 = arith.addf %66, %90 : vector<24x32xf32>
    %92 = vector.extract_strided_slice %39 {offsets = [0, 16], sizes = [24, 8], strides = [1, 1]} : vector<48x96xf32> to vector<24x8xf32>
    %93 = arith.truncf %92 : vector<24x8xf32> to vector<24x8xbf16>
    %94 = vector.extract_strided_slice %39 {offsets = [0, 48], sizes = [24, 8], strides = [1, 1]} : vector<48x96xf32> to vector<24x8xf32>
    %95 = arith.truncf %94 : vector<24x8xf32> to vector<24x8xbf16>
    %96 = vector.extract_strided_slice %39 {offsets = [0, 80], sizes = [24, 8], strides = [1, 1]} : vector<48x96xf32> to vector<24x8xf32>
    %97 = arith.truncf %96 : vector<24x8xf32> to vector<24x8xbf16>
    %cst_44 = arith.constant dense<0.000000e+00> : vector<24x24xf32>
    %98 = tpu.matmul %93, %95, %cst_44 {dimension_numbers = #tpu.dot_dimension_numbers<[1], [1], [0], [0], [0, 0, 1, 0], [], []>} : vector<24x8xbf16>, vector<24x8xbf16>, vector<24x24xf32> -> vector<24x24xf32>
    %99 = vector.broadcast %40 : vector<1x24xf32> to vector<24x24xf32>
    %100 = arith.addf %98, %99 : vector<24x24xf32>
    %cst_45 = arith.constant dense<0xFF800000> : vector<24xf32>
    %101 = vector.multi_reduction <maximumf>, %100, %cst_45 [1] : vector<24x24xf32> to vector<24xf32>
    %102 = vector.shape_cast %101 : vector<24xf32> to vector<24x1xf32>
    %103 = vector.broadcast %102 : vector<24x1xf32> to vector<24x24xf32>
    %104 = arith.subf %100, %103 : vector<24x24xf32>
    %105 = math.exp %104 : vector<24x24xf32>
    %cst_46 = arith.constant dense<0.000000e+00> : vector<24xf32>
    %106 = vector.multi_reduction <add>, %105, %cst_46 [1] : vector<24x24xf32> to vector<24xf32>
    %107 = vector.shape_cast %106 : vector<24xf32> to vector<24x1xf32>
    %108 = tpu.reciprocal %107 {approx = true} : vector<24x1xf32> -> vector<24x1xf32>
    %109 = vector.broadcast %108 : vector<24x1xf32> to vector<24x24xf32>
    %110 = arith.mulf %105, %109 : vector<24x24xf32>
    %111 = arith.truncf %110 : vector<24x24xf32> to vector<24x24xbf16>
    %cst_47 = arith.constant dense<0.000000e+00> : vector<24x8xf32>
    %112 = tpu.matmul %111, %97, %cst_47 {dimension_numbers = #tpu.dot_dimension_numbers<[1], [0], [0], [1], [0, 0, 1, 1], [], []>} : vector<24x24xbf16>, vector<24x8xbf16>, vector<24x8xf32> -> vector<24x8xf32>
    %113 = arith.truncf %112 : vector<24x8xf32> to vector<24x8xbf16>
    %c16_48 = arith.constant 16 : index
    %c0_49 = arith.constant 0 : index
    %114 = vector.load %arg7[%c16_48, %c0_49] : memref<32x32xbf16, #tpu.memory_space<vmem>>, vector<8x32xbf16>
    %cst_50 = arith.constant dense<0.000000e+00> : vector<24x32xf32>
    %115 = tpu.matmul %113, %114, %cst_50 {dimension_numbers = #tpu.dot_dimension_numbers<[1], [0], [0], [1], [0, 0, 1, 1], [], []>} : vector<24x8xbf16>, vector<8x32xbf16>, vector<24x32xf32> -> vector<24x32xf32>
    %116 = arith.addf %91, %115 : vector<24x32xf32>
    %117 = vector.extract_strided_slice %39 {offsets = [0, 24], sizes = [24, 8], strides = [1, 1]} : vector<48x96xf32> to vector<24x8xf32>
    %118 = arith.truncf %117 : vector<24x8xf32> to vector<24x8xbf16>
    %119 = vector.extract_strided_slice %39 {offsets = [0, 56], sizes = [24, 8], strides = [1, 1]} : vector<48x96xf32> to vector<24x8xf32>
    %120 = arith.truncf %119 : vector<24x8xf32> to vector<24x8xbf16>
    %121 = vector.extract_strided_slice %39 {offsets = [0, 88], sizes = [24, 8], strides = [1, 1]} : vector<48x96xf32> to vector<24x8xf32>
    %122 = arith.truncf %121 : vector<24x8xf32> to vector<24x8xbf16>
    %cst_51 = arith.constant dense<0.000000e+00> : vector<24x24xf32>
    %123 = tpu.matmul %118, %120, %cst_51 {dimension_numbers = #tpu.dot_dimension_numbers<[1], [1], [0], [0], [0, 0, 1, 0], [], []>} : vector<24x8xbf16>, vector<24x8xbf16>, vector<24x24xf32> -> vector<24x24xf32>
    %124 = vector.broadcast %40 : vector<1x24xf32> to vector<24x24xf32>
    %125 = arith.addf %123, %124 : vector<24x24xf32>
    %cst_52 = arith.constant dense<0xFF800000> : vector<24xf32>
    %126 = vector.multi_reduction <maximumf>, %125, %cst_52 [1] : vector<24x24xf32> to vector<24xf32>
    %127 = vector.shape_cast %126 : vector<24xf32> to vector<24x1xf32>
    %128 = vector.broadcast %127 : vector<24x1xf32> to vector<24x24xf32>
    %129 = arith.subf %125, %128 : vector<24x24xf32>
    %130 = math.exp %129 : vector<24x24xf32>
    %cst_53 = arith.constant dense<0.000000e+00> : vector<24xf32>
    %131 = vector.multi_reduction <add>, %130, %cst_53 [1] : vector<24x24xf32> to vector<24xf32>
    %132 = vector.shape_cast %131 : vector<24xf32> to vector<24x1xf32>
    %133 = tpu.reciprocal %132 {approx = true} : vector<24x1xf32> -> vector<24x1xf32>
    %134 = vector.broadcast %133 : vector<24x1xf32> to vector<24x24xf32>
    %135 = arith.mulf %130, %134 : vector<24x24xf32>
    %136 = arith.truncf %135 : vector<24x24xf32> to vector<24x24xbf16>
    %cst_54 = arith.constant dense<0.000000e+00> : vector<24x8xf32>
    %137 = tpu.matmul %136, %122, %cst_54 {dimension_numbers = #tpu.dot_dimension_numbers<[1], [0], [0], [1], [0, 0, 1, 1], [], []>} : vector<24x24xbf16>, vector<24x8xbf16>, vector<24x8xf32> -> vector<24x8xf32>
    %138 = arith.truncf %137 : vector<24x8xf32> to vector<24x8xbf16>
    %c24_55 = arith.constant 24 : index
    %c0_56 = arith.constant 0 : index
    %139 = vector.load %arg7[%c24_55, %c0_56] : memref<32x32xbf16, #tpu.memory_space<vmem>>, vector<8x32xbf16>
    %cst_57 = arith.constant dense<0.000000e+00> : vector<24x32xf32>
    %140 = tpu.matmul %138, %139, %cst_57 {dimension_numbers = #tpu.dot_dimension_numbers<[1], [0], [0], [1], [0, 0, 1, 1], [], []>} : vector<24x8xbf16>, vector<8x32xbf16>, vector<24x32xf32> -> vector<24x32xf32>
    %141 = arith.addf %116, %140 : vector<24x32xf32>
    %c0_58 = arith.constant 0 : index
    %c0_59 = arith.constant 0 : index
    %142 = vector.load %arg18[%c0_58, %c0_59] : memref<48x32xf32, #tpu.memory_space<vmem>>, vector<24x32xf32>
    tpu.vector_store %arg18[%c0_58, %c0_59], %141 {strides = array<i32>} : memref<48x32xf32, #tpu.memory_space<vmem>>, vector<24x32xf32>,
    %cst_60 = arith.constant 0.000000e+00 : f32
    %143 = vector.broadcast %cst_60 : f32 to vector<24x32xf32>
    %144 = vector.extract_strided_slice %39 {offsets = [24, 0], sizes = [24, 8], strides = [1, 1]} : vector<48x96xf32> to vector<24x8xf32>
    %145 = arith.truncf %144 : vector<24x8xf32> to vector<24x8xbf16>
    %146 = vector.extract_strided_slice %39 {offsets = [24, 32], sizes = [24, 8], strides = [1, 1]} : vector<48x96xf32> to vector<24x8xf32>
    %147 = arith.truncf %146 : vector<24x8xf32> to vector<24x8xbf16>
    %148 = vector.extract_strided_slice %39 {offsets = [24, 64], sizes = [24, 8], strides = [1, 1]} : vector<48x96xf32> to vector<24x8xf32>
    %149 = arith.truncf %148 : vector<24x8xf32> to vector<24x8xbf16>
    %cst_61 = arith.constant dense<0.000000e+00> : vector<24x24xf32>
    %150 = tpu.matmul %145, %147, %cst_61 {dimension_numbers = #tpu.dot_dimension_numbers<[1], [1], [0], [0], [0, 0, 1, 0], [], []>} : vector<24x8xbf16>, vector<24x8xbf16>, vector<24x24xf32> -> vector<24x24xf32>
    %151 = vector.broadcast %40 : vector<1x24xf32> to vector<24x24xf32>
    %152 = arith.addf %150, %151 : vector<24x24xf32>
    %cst_62 = arith.constant dense<0xFF800000> : vector<24xf32>
    %153 = vector.multi_reduction <maximumf>, %152, %cst_62 [1] : vector<24x24xf32> to vector<24xf32>
    %154 = vector.shape_cast %153 : vector<24xf32> to vector<24x1xf32>
    %155 = vector.broadcast %154 : vector<24x1xf32> to vector<24x24xf32>
    %156 = arith.subf %152, %155 : vector<24x24xf32>
    %157 = math.exp %156 : vector<24x24xf32>
    %cst_63 = arith.constant dense<0.000000e+00> : vector<24xf32>
    %158 = vector.multi_reduction <add>, %157, %cst_63 [1] : vector<24x24xf32> to vector<24xf32>
    %159 = vector.shape_cast %158 : vector<24xf32> to vector<24x1xf32>
    %160 = tpu.reciprocal %159 {approx = true} : vector<24x1xf32> -> vector<24x1xf32>
    %161 = vector.broadcast %160 : vector<24x1xf32> to vector<24x24xf32>
    %162 = arith.mulf %157, %161 : vector<24x24xf32>
    %163 = arith.truncf %162 : vector<24x24xf32> to vector<24x24xbf16>
    %cst_64 = arith.constant dense<0.000000e+00> : vector<24x8xf32>
    %164 = tpu.matmul %163, %149, %cst_64 {dimension_numbers = #tpu.dot_dimension_numbers<[1], [0], [0], [1], [0, 0, 1, 1], [], []>} : vector<24x24xbf16>, vector<24x8xbf16>, vector<24x8xf32> -> vector<24x8xf32>
    %165 = arith.truncf %164 : vector<24x8xf32> to vector<24x8xbf16>
    %c0_65 = arith.constant 0 : index
    %c0_66 = arith.constant 0 : index
    %166 = vector.load %arg7[%c0_65, %c0_66] : memref<32x32xbf16, #tpu.memory_space<vmem>>, vector<8x32xbf16>
    %cst_67 = arith.constant dense<0.000000e+00> : vector<24x32xf32>
    %167 = tpu.matmul %165, %166, %cst_67 {dimension_numbers = #tpu.dot_dimension_numbers<[1], [0], [0], [1], [0, 0, 1, 1], [], []>} : vector<24x8xbf16>, vector<8x32xbf16>, vector<24x32xf32> -> vector<24x32xf32>
    %168 = arith.addf %143, %167 : vector<24x32xf32>
    %169 = vector.extract_strided_slice %39 {offsets = [24, 8], sizes = [24, 8], strides = [1, 1]} : vector<48x96xf32> to vector<24x8xf32>
    %170 = arith.truncf %169 : vector<24x8xf32> to vector<24x8xbf16>
    %171 = vector.extract_strided_slice %39 {offsets = [24, 40], sizes = [24, 8], strides = [1, 1]} : vector<48x96xf32> to vector<24x8xf32>
    %172 = arith.truncf %171 : vector<24x8xf32> to vector<24x8xbf16>
    %173 = vector.extract_strided_slice %39 {offsets = [24, 72], sizes = [24, 8], strides = [1, 1]} : vector<48x96xf32> to vector<24x8xf32>
    %174 = arith.truncf %173 : vector<24x8xf32> to vector<24x8xbf16>
    %cst_68 = arith.constant dense<0.000000e+00> : vector<24x24xf32>
    %175 = tpu.matmul %170, %172, %cst_68 {dimension_numbers = #tpu.dot_dimension_numbers<[1], [1], [0], [0], [0, 0, 1, 0], [], []>} : vector<24x8xbf16>, vector<24x8xbf16>, vector<24x24xf32> -> vector<24x24xf32>
    %176 = vector.broadcast %40 : vector<1x24xf32> to vector<24x24xf32>
    %177 = arith.addf %175, %176 : vector<24x24xf32>
    %cst_69 = arith.constant dense<0xFF800000> : vector<24xf32>
    %178 = vector.multi_reduction <maximumf>, %177, %cst_69 [1] : vector<24x24xf32> to vector<24xf32>
    %179 = vector.shape_cast %178 : vector<24xf32> to vector<24x1xf32>
    %180 = vector.broadcast %179 : vector<24x1xf32> to vector<24x24xf32>
    %181 = arith.subf %177, %180 : vector<24x24xf32>
    %182 = math.exp %181 : vector<24x24xf32>
    %cst_70 = arith.constant dense<0.000000e+00> : vector<24xf32>
    %183 = vector.multi_reduction <add>, %182, %cst_70 [1] : vector<24x24xf32> to vector<24xf32>
    %184 = vector.shape_cast %183 : vector<24xf32> to vector<24x1xf32>
    %185 = tpu.reciprocal %184 {approx = true} : vector<24x1xf32> -> vector<24x1xf32>
    %186 = vector.broadcast %185 : vector<24x1xf32> to vector<24x24xf32>
    %187 = arith.mulf %182, %186 : vector<24x24xf32>
    %188 = arith.truncf %187 : vector<24x24xf32> to vector<24x24xbf16>
    %cst_71 = arith.constant dense<0.000000e+00> : vector<24x8xf32>
    %189 = tpu.matmul %188, %174, %cst_71 {dimension_numbers = #tpu.dot_dimension_numbers<[1], [0], [0], [1], [0, 0, 1, 1], [], []>} : vector<24x24xbf16>, vector<24x8xbf16>, vector<24x8xf32> -> vector<24x8xf32>
    %190 = arith.truncf %189 : vector<24x8xf32> to vector<24x8xbf16>
    %c8_72 = arith.constant 8 : index
    %c0_73 = arith.constant 0 : index
    %191 = vector.load %arg7[%c8_72, %c0_73] : memref<32x32xbf16, #tpu.memory_space<vmem>>, vector<8x32xbf16>
    %cst_74 = arith.constant dense<0.000000e+00> : vector<24x32xf32>
    %192 = tpu.matmul %190, %191, %cst_74 {dimension_numbers = #tpu.dot_dimension_numbers<[1], [0], [0], [1], [0, 0, 1, 1], [], []>} : vector<24x8xbf16>, vector<8x32xbf16>, vector<24x32xf32> -> vector<24x32xf32>
    %193 = arith.addf %168, %192 : vector<24x32xf32>
    %194 = vector.extract_strided_slice %39 {offsets = [24, 16], sizes = [24, 8], strides = [1, 1]} : vector<48x96xf32> to vector<24x8xf32>
    %195 = arith.truncf %194 : vector<24x8xf32> to vector<24x8xbf16>
    %196 = vector.extract_strided_slice %39 {offsets = [24, 48], sizes = [24, 8], strides = [1, 1]} : vector<48x96xf32> to vector<24x8xf32>
    %197 = arith.truncf %196 : vector<24x8xf32> to vector<24x8xbf16>
    %198 = vector.extract_strided_slice %39 {offsets = [24, 80], sizes = [24, 8], strides = [1, 1]} : vector<48x96xf32> to vector<24x8xf32>
    %199 = arith.truncf %198 : vector<24x8xf32> to vector<24x8xbf16>
    %cst_75 = arith.constant dense<0.000000e+00> : vector<24x24xf32>
    %200 = tpu.matmul %195, %197, %cst_75 {dimension_numbers = #tpu.dot_dimension_numbers<[1], [1], [0], [0], [0, 0, 1, 0], [], []>} : vector<24x8xbf16>, vector<24x8xbf16>, vector<24x24xf32> -> vector<24x24xf32>
    %201 = vector.broadcast %40 : vector<1x24xf32> to vector<24x24xf32>
    %202 = arith.addf %200, %201 : vector<24x24xf32>
    %cst_76 = arith.constant dense<0xFF800000> : vector<24xf32>
    %203 = vector.multi_reduction <maximumf>, %202, %cst_76 [1] : vector<24x24xf32> to vector<24xf32>
    %204 = vector.shape_cast %203 : vector<24xf32> to vector<24x1xf32>
    %205 = vector.broadcast %204 : vector<24x1xf32> to vector<24x24xf32>
    %206 = arith.subf %202, %205 : vector<24x24xf32>
    %207 = math.exp %206 : vector<24x24xf32>
    %cst_77 = arith.constant dense<0.000000e+00> : vector<24xf32>
    %208 = vector.multi_reduction <add>, %207, %cst_77 [1] : vector<24x24xf32> to vector<24xf32>
    %209 = vector.shape_cast %208 : vector<24xf32> to vector<24x1xf32>
    %210 = tpu.reciprocal %209 {approx = true} : vector<24x1xf32> -> vector<24x1xf32>
    %211 = vector.broadcast %210 : vector<24x1xf32> to vector<24x24xf32>
    %212 = arith.mulf %207, %211 : vector<24x24xf32>
    %213 = arith.truncf %212 : vector<24x24xf32> to vector<24x24xbf16>
    %cst_78 = arith.constant dense<0.000000e+00> : vector<24x8xf32>
    %214 = tpu.matmul %213, %199, %cst_78 {dimension_numbers = #tpu.dot_dimension_numbers<[1], [0], [0], [1], [0, 0, 1, 1], [], []>} : vector<24x24xbf16>, vector<24x8xbf16>, vector<24x8xf32> -> vector<24x8xf32>
    %215 = arith.truncf %214 : vector<24x8xf32> to vector<24x8xbf16>
    %c16_79 = arith.constant 16 : index
    %c0_80 = arith.constant 0 : index
    %216 = vector.load %arg7[%c16_79, %c0_80] : memref<32x32xbf16, #tpu.memory_space<vmem>>, vector<8x32xbf16>
    %cst_81 = arith.constant dense<0.000000e+00> : vector<24x32xf32>
    %217 = tpu.matmul %215, %216, %cst_81 {dimension_numbers = #tpu.dot_dimension_numbers<[1], [0], [0], [1], [0, 0, 1, 1], [], []>} : vector<24x8xbf16>, vector<8x32xbf16>, vector<24x32xf32> -> vector<24x32xf32>
    %218 = arith.addf %193, %217 : vector<24x32xf32>
    %219 = vector.extract_strided_slice %39 {offsets = [24, 24], sizes = [24, 8], strides = [1, 1]} : vector<48x96xf32> to vector<24x8xf32>
    %220 = arith.truncf %219 : vector<24x8xf32> to vector<24x8xbf16>
    %221 = vector.extract_strided_slice %39 {offsets = [24, 56], sizes = [24, 8], strides = [1, 1]} : vector<48x96xf32> to vector<24x8xf32>
    %222 = arith.truncf %221 : vector<24x8xf32> to vector<24x8xbf16>
    %223 = vector.extract_strided_slice %39 {offsets = [24, 88], sizes = [24, 8], strides = [1, 1]} : vector<48x96xf32> to vector<24x8xf32>
    %224 = arith.truncf %223 : vector<24x8xf32> to vector<24x8xbf16>
    %cst_82 = arith.constant dense<0.000000e+00> : vector<24x24xf32>
    %225 = tpu.matmul %220, %222, %cst_82 {dimension_numbers = #tpu.dot_dimension_numbers<[1], [1], [0], [0], [0, 0, 1, 0], [], []>} : vector<24x8xbf16>, vector<24x8xbf16>, vector<24x24xf32> -> vector<24x24xf32>
    %226 = vector.broadcast %40 : vector<1x24xf32> to vector<24x24xf32>
    %227 = arith.addf %225, %226 : vector<24x24xf32>
    %cst_83 = arith.constant dense<0xFF800000> : vector<24xf32>
    %228 = vector.multi_reduction <maximumf>, %227, %cst_83 [1] : vector<24x24xf32> to vector<24xf32>
    %229 = vector.shape_cast %228 : vector<24xf32> to vector<24x1xf32>
    %230 = vector.broadcast %229 : vector<24x1xf32> to vector<24x24xf32>
    %231 = arith.subf %227, %230 : vector<24x24xf32>
    %232 = math.exp %231 : vector<24x24xf32>
    %cst_84 = arith.constant dense<0.000000e+00> : vector<24xf32>
    %233 = vector.multi_reduction <add>, %232, %cst_84 [1] : vector<24x24xf32> to vector<24xf32>
    %234 = vector.shape_cast %233 : vector<24xf32> to vector<24x1xf32>
    %235 = tpu.reciprocal %234 {approx = true} : vector<24x1xf32> -> vector<24x1xf32>
    %236 = vector.broadcast %235 : vector<24x1xf32> to vector<24x24xf32>
    %237 = arith.mulf %232, %236 : vector<24x24xf32>
    %238 = arith.truncf %237 : vector<24x24xf32> to vector<24x24xbf16>
    %cst_85 = arith.constant dense<0.000000e+00> : vector<24x8xf32>
    %239 = tpu.matmul %238, %224, %cst_85 {dimension_numbers = #tpu.dot_dimension_numbers<[1], [0], [0], [1], [0, 0, 1, 1], [], []>} : vector<24x24xbf16>, vector<24x8xbf16>, vector<24x8xf32> -> vector<24x8xf32>
    %240 = arith.truncf %239 : vector<24x8xf32> to vector<24x8xbf16>
    %c24_86 = arith.constant 24 : index
    %c0_87 = arith.constant 0 : index
    %241 = vector.load %arg7[%c24_86, %c0_87] : memref<32x32xbf16, #tpu.memory_space<vmem>>, vector<8x32xbf16>
    %cst_88 = arith.constant dense<0.000000e+00> : vector<24x32xf32>
    %242 = tpu.matmul %240, %241, %cst_88 {dimension_numbers = #tpu.dot_dimension_numbers<[1], [0], [0], [1], [0, 0, 1, 1], [], []>} : vector<24x8xbf16>, vector<8x32xbf16>, vector<24x32xf32> -> vector<24x32xf32>
    %243 = arith.addf %218, %242 : vector<24x32xf32>
    %c24_89 = arith.constant 24 : index
    %c0_90 = arith.constant 0 : index
    %244 = vector.load %arg18[%c24_89, %c0_90] : memref<48x32xf32, #tpu.memory_space<vmem>>, vector<24x32xf32>
    tpu.vector_store %arg18[%c24_89, %c0_90], %243 {strides = array<i32>} : memref<48x32xf32, #tpu.memory_space<vmem>>, vector<24x32xf32>,
    %c0_91 = arith.constant 0 : index
    %c0_92 = arith.constant 0 : index
    %245 = vector.load %arg18[%c0_91, %c0_92] : memref<48x32xf32, #tpu.memory_space<vmem>>, vector<48x32xf32>
    %246 = arith.addf %12, %245 : vector<48x32xf32>
    %c0_93 = arith.constant 0 : index
    %c0_94 = arith.constant 0 : index
    %247 = vector.load %arg8[%c0_93, %c0_94] : memref<1x32xf32, #tpu.memory_space<vmem>>, vector<1x32xf32>
    %248 = vector.broadcast %247 : vector<1x32xf32> to vector<48x32xf32>
    %249 = arith.addf %246, %248 : vector<48x32xf32>
    %c0_95 = arith.constant 0 : index
    %c0_96 = arith.constant 0 : index
    %250 = vector.load %arg9[%c0_95, %c0_96] : memref<1x32xf32, #tpu.memory_space<vmem>>, vector<1x32xf32>
    %c0_97 = arith.constant 0 : index
    %c0_98 = arith.constant 0 : index
    %251 = vector.load %arg10[%c0_97, %c0_98] : memref<1x32xf32, #tpu.memory_space<vmem>>, vector<1x32xf32>
    %cst_99 = arith.constant dense<0.000000e+00> : vector<48xf32>
    %252 = vector.multi_reduction <add>, %249, %cst_99 [1] : vector<48x32xf32> to vector<48xf32>
    %253 = vector.shape_cast %252 : vector<48xf32> to vector<48x1xf32>
    %cst_100 = arith.constant 3.200000e+01 : f32
    %254 = vector.broadcast %cst_100 : f32 to vector<48x1xf32>
    %255 = arith.divf %253, %254 : vector<48x1xf32>
    %256 = vector.broadcast %255 : vector<48x1xf32> to vector<48x32xf32>
    %257 = arith.subf %249, %256 : vector<48x32xf32>
    %258 = arith.mulf %257, %257 : vector<48x32xf32>
    %cst_101 = arith.constant dense<0.000000e+00> : vector<48xf32>
    %259 = vector.multi_reduction <add>, %258, %cst_101 [1] : vector<48x32xf32> to vector<48xf32>
    %260 = vector.shape_cast %259 : vector<48xf32> to vector<48x1xf32>
    %cst_102 = arith.constant 3.200000e+01 : f32
    %261 = vector.broadcast %cst_102 : f32 to vector<48x1xf32>
    %262 = arith.divf %260, %261 : vector<48x1xf32>
    %263 = vector.broadcast %255 : vector<48x1xf32> to vector<48x32xf32>
    %264 = arith.subf %249, %263 : vector<48x32xf32>
    %cst_103 = arith.constant 9.99999974E-6 : f32
    %265 = vector.broadcast %cst_103 : f32 to vector<48x1xf32>
    %266 = arith.addf %262, %265 : vector<48x1xf32>
    %267 = math.rsqrt %266 : vector<48x1xf32>
    %268 = vector.broadcast %267 : vector<48x1xf32> to vector<48x32xf32>
    %269 = arith.mulf %264, %268 : vector<48x32xf32>
    %270 = vector.broadcast %250 : vector<1x32xf32> to vector<48x32xf32>
    %271 = arith.mulf %269, %270 : vector<48x32xf32>
    %272 = vector.broadcast %251 : vector<1x32xf32> to vector<48x32xf32>
    %273 = arith.addf %271, %272 : vector<48x32xf32>
    %274 = arith.truncf %273 : vector<48x32xf32> to vector<48x32xbf16>
    %c0_104 = arith.constant 0 : index
    %c0_105 = arith.constant 0 : index
    %275 = vector.load %arg11[%c0_104, %c0_105] : memref<32x128xbf16, #tpu.memory_space<vmem>>, vector<32x128xbf16>
    %cst_106 = arith.constant dense<0.000000e+00> : vector<48x128xf32>
    %276 = tpu.matmul %274, %275, %cst_106 {dimension_numbers = #tpu.dot_dimension_numbers<[1], [0], [0], [1], [0, 0, 1, 1], [], []>} : vector<48x32xbf16>, vector<32x128xbf16>, vector<48x128xf32> -> vector<48x128xf32>
    %c0_107 = arith.constant 0 : index
    %c0_108 = arith.constant 0 : index
    %277 = vector.load %arg12[%c0_107, %c0_108] : memref<1x128xf32, #tpu.memory_space<vmem>>, vector<1x128xf32>
    %278 = vector.broadcast %277 : vector<1x128xf32> to vector<48x128xf32>
    %279 = arith.addf %276, %278 : vector<48x128xf32>
    %cst_109 = arith.constant 5.000000e-01 : f32
    %280 = vector.broadcast %cst_109 : f32 to vector<48x128xf32>
    %281 = arith.mulf %280, %279 : vector<48x128xf32>
    %cst_110 = arith.constant 4.471500e-02 : f32
    %282 = vector.broadcast %cst_110 : f32 to vector<48x128xf32>
    %283 = arith.mulf %282, %279 : vector<48x128xf32>
    %284 = arith.mulf %283, %279 : vector<48x128xf32>
    %285 = arith.mulf %284, %279 : vector<48x128xf32>
    %286 = arith.addf %279, %285 : vector<48x128xf32>
    %cst_111 = arith.constant 0.797884583 : f32
    %287 = vector.broadcast %cst_111 : f32 to vector<48x128xf32>
    %288 = arith.mulf %287, %286 : vector<48x128xf32>
    %289 = math.tanh %288 : vector<48x128xf32>
    %cst_112 = arith.constant 1.000000e+00 : f32
    %290 = vector.broadcast %cst_112 : f32 to vector<48x128xf32>
    %291 = arith.addf %290, %289 : vector<48x128xf32>
    %292 = arith.mulf %281, %291 : vector<48x128xf32>
    %293 = arith.truncf %292 : vector<48x128xf32> to vector<48x128xbf16>
    %c0_113 = arith.constant 0 : index
    %c0_114 = arith.constant 0 : index
    %294 = vector.load %arg13[%c0_113, %c0_114] : memref<128x32xbf16, #tpu.memory_space<vmem>>, vector<128x32xbf16>
    %cst_115 = arith.constant dense<0.000000e+00> : vector<48x32xf32>
    %295 = tpu.matmul %293, %294, %cst_115 {dimension_numbers = #tpu.dot_dimension_numbers<[1], [0], [0], [1], [0, 0, 1, 1], [], []>} : vector<48x128xbf16>, vector<128x32xbf16>, vector<48x32xf32> -> vector<48x32xf32>
    %c0_116 = arith.constant 0 : index
    %c0_117 = arith.constant 0 : index
    %296 = vector.load %arg14[%c0_116, %c0_117] : memref<1x32xf32, #tpu.memory_space<vmem>>, vector<1x32xf32>
    %297 = vector.broadcast %296 : vector<1x32xf32> to vector<48x32xf32>
    %298 = arith.addf %295, %297 : vector<48x32xf32>
    %299 = arith.addf %249, %298 : vector<48x32xf32>
    %300 = vector.extract_strided_slice %299 {offsets = [0, 0], sizes = [16, 32], strides = [1, 1]} : vector<48x32xf32> to vector<16x32xf32>
    %c0_118 = arith.constant 0 : index
    %c0_119 = arith.constant 0 : index
    %c0_120 = arith.constant 0 : index
    %301 = vector.load %arg15[%c0_118, %c0_119, %c0_120] : memref<2x16x32xf32, #tpu.memory_space<vmem>>, vector<1x16x32xf32>
    %302 = vector.shape_cast %301 : vector<1x16x32xf32> to vector<16x32xf32>
    %303 = vector.shape_cast %300 : vector<16x32xf32> to vector<1x16x32xf32>
    tpu.vector_store %arg15[%c0_118, %c0_119, %c0_120], %303 {strides = array<i32>} : memref<2x16x32xf32, #tpu.memory_space<vmem>>, vector<1x16x32xf32>,
    %304 = vector.extract_strided_slice %299 {offsets = [16, 0], sizes = [8, 32], strides = [1, 1]} : vector<48x32xf32> to vector<8x32xf32>
    %c0_121 = arith.constant 0 : index
    %c0_122 = arith.constant 0 : index
    %c0_123 = arith.constant 0 : index
    %305 = vector.load %arg16[%c0_121, %c0_122, %c0_123] : memref<2x8x32xf32, #tpu.memory_space<vmem>>, vector<1x8x32xf32>
    %306 = vector.shape_cast %305 : vector<1x8x32xf32> to vector<8x32xf32>
    %307 = vector.shape_cast %304 : vector<8x32xf32> to vector<1x8x32xf32>
    tpu.vector_store %arg16[%c0_121, %c0_122, %c0_123], %307 {strides = array<i32>} : memref<2x8x32xf32, #tpu.memory_space<vmem>>, vector<1x8x32xf32>,
    %308 = vector.extract_strided_slice %299 {offsets = [24, 0], sizes = [16, 32], strides = [1, 1]} : vector<48x32xf32> to vector<16x32xf32>
    %c1_124 = arith.constant 1 : index
    %c0_125 = arith.constant 0 : index
    %c0_126 = arith.constant 0 : index
    %309 = vector.load %arg15[%c1_124, %c0_125, %c0_126] : memref<2x16x32xf32, #tpu.memory_space<vmem>>, vector<1x16x32xf32>
    %310 = vector.shape_cast %309 : vector<1x16x32xf32> to vector<16x32xf32>
    %311 = vector.shape_cast %308 : vector<16x32xf32> to vector<1x16x32xf32>
    tpu.vector_store %arg15[%c1_124, %c0_125, %c0_126], %311 {strides = array<i32>} : memref<2x16x32xf32, #tpu.memory_space<vmem>>, vector<1x16x32xf32>,
    %312 = vector.extract_strided_slice %299 {offsets = [40, 0], sizes = [8, 32], strides = [1, 1]} : vector<48x32xf32> to vector<8x32xf32>
    %c1_127 = arith.constant 1 : index
    %c0_128 = arith.constant 0 : index
    %c0_129 = arith.constant 0 : index
    %313 = vector.load %arg16[%c1_127, %c0_128, %c0_129] : memref<2x8x32xf32, #tpu.memory_space<vmem>>, vector<1x8x32xf32>
    %314 = vector.shape_cast %313 : vector<1x8x32xf32> to vector<8x32xf32>
    %315 = vector.shape_cast %312 : vector<8x32xf32> to vector<1x8x32xf32>
    tpu.vector_store %arg16[%c1_127, %c0_128, %c0_129], %315 {strides = array<i32>} : memref<2x8x32xf32, #tpu.memory_space<vmem>>, vector<1x8x32xf32>,
    return
  }
  func.func @transform_0(%arg0: i32) -> (i32, i32, i32) {
    %c0_i32 = arith.constant 0 : i32
    %c0_i32_0 = arith.constant 0 : i32
    %c0_i32_1 = arith.constant 0 : i32
    return %arg0, %c0_i32, %c0_i32_0 : i32, i32, i32
  }
  func.func @transform_1(%arg0: i32) -> (i32, i32, i32) {
    %c0_i32 = arith.constant 0 : i32
    %c0_i32_0 = arith.constant 0 : i32
    %c0_i32_1 = arith.constant 0 : i32
    return %arg0, %c0_i32, %c0_i32_0 : i32, i32, i32
  }
  func.func @transform_2(%arg0: i32) -> (i32, i32) {
    %c0_i32 = arith.constant 0 : i32
    %c0_i32_0 = arith.constant 0 : i32
    %c0_i32_1 = arith.constant 0 : i32
    return %c0_i32, %c0_i32_0 : i32, i32
  }
  func.func @transform_3(%arg0: i32) -> (i32, i32) {
    %c0_i32 = arith.constant 0 : i32
    %c0_i32_0 = arith.constant 0 : i32
    %c0_i32_1 = arith.constant 0 : i32
    return %c0_i32, %c0_i32_0 : i32, i32
  }
  func.func @transform_4(%arg0: i32) -> (i32, i32) {
    %c0_i32 = arith.constant 0 : i32
    %c0_i32_0 = arith.constant 0 : i32
    %c0_i32_1 = arith.constant 0 : i32
    return %c0_i32, %c0_i32_0 : i32, i32
  }
  func.func @transform_5(%arg0: i32) -> (i32, i32) {
    %c0_i32 = arith.constant 0 : i32
    %c0_i32_0 = arith.constant 0 : i32
    %c0_i32_1 = arith.constant 0 : i32
    return %c0_i32, %c0_i32_0 : i32, i32
  }
  func.func @transform_6(%arg0: i32) -> (i32, i32) {
    %c0_i32 = arith.constant 0 : i32
    %c0_i32_0 = arith.constant 0 : i32
    %c0_i32_1 = arith.constant 0 : i32
    return %c0_i32, %c0_i32_0 : i32, i32
  }
  func.func @transform_7(%arg0: i32) -> (i32, i32) {
    %c0_i32 = arith.constant 0 : i32
    %c0_i32_0 = arith.constant 0 : i32
    %c0_i32_1 = arith.constant 0 : i32
    return %c0_i32, %c0_i32_0 : i32, i32
  }
  func.func @transform_8(%arg0: i32) -> (i32, i32) {
    %c0_i32 = arith.constant 0 : i32
    %c0_i32_0 = arith.constant 0 : i32
    %c0_i32_1 = arith.constant 0 : i32
    return %c0_i32, %c0_i32_0 : i32, i32
  }
  func.func @transform_9(%arg0: i32) -> (i32, i32) {
    %c0_i32 = arith.constant 0 : i32
    %c0_i32_0 = arith.constant 0 : i32
    %c0_i32_1 = arith.constant 0 : i32
    return %c0_i32, %c0_i32_0 : i32, i32
  }
  func.func @transform_10(%arg0: i32) -> (i32, i32) {
    %c0_i32 = arith.constant 0 : i32
    %c0_i32_0 = arith.constant 0 : i32
    %c0_i32_1 = arith.constant 0 : i32
    return %c0_i32, %c0_i32_0 : i32, i32
  }
  func.func @transform_11(%arg0: i32) -> (i32, i32) {
    %c0_i32 = arith.constant 0 : i32
    %c0_i32_0 = arith.constant 0 : i32
    %c0_i32_1 = arith.constant 0 : i32
    return %c0_i32, %c0_i32_0 : i32, i32
  }
  func.func @transform_12(%arg0: i32) -> (i32, i32) {
    %c0_i32 = arith.constant 0 : i32
    %c0_i32_0 = arith.constant 0 : i32
    %c0_i32_1 = arith.constant 0 : i32
    return %c0_i32, %c0_i32_0 : i32, i32
  }
  func.func @transform_13(%arg0: i32) -> (i32, i32) {
    %c0_i32 = arith.constant 0 : i32
    %c0_i32_0 = arith.constant 0 : i32
    %c0_i32_1 = arith.constant 0 : i32
    return %c0_i32, %c0_i32_0 : i32, i32
  }
  func.func @transform_14(%arg0: i32) -> (i32, i32, i32) {
    %c0_i32 = arith.constant 0 : i32
    %c0_i32_0 = arith.constant 0 : i32
    %c0_i32_1 = arith.constant 0 : i32
    return %arg0, %c0_i32, %c0_i32_0 : i32, i32, i32
  }
  func.func @transform_15(%arg0: i32) -> (i32, i32, i32) {
    %c0_i32 = arith.constant 0 : i32
    %c0_i32_0 = arith.constant 0 : i32
    %c0_i32_1 = arith.constant 0 : i32
    return %arg0, %c0_i32, %c0_i32_0 : i32, i32, i32
  }
}

module attributes {stable_mosaic.version = 11 : i64} {
  func.func @cls_head_kernel(%arg0: i32, %arg1: memref<8x32xf32, #tpu.memory_space<vmem>>, %arg2: memref<1x32xf32, #tpu.memory_space<vmem>>, %arg3: memref<1x32xf32, #tpu.memory_space<vmem>>, %arg4: memref<32x10xf32, #tpu.memory_space<vmem>>, %arg5: memref<1x10xf32, #tpu.memory_space<vmem>>, %arg6: memref<8x10xf32, #tpu.memory_space<vmem>>) attributes {dimension_semantics = [#tpu.dimension_semantics<arbitrary>], iteration_bounds = array<i64: 1>, scalar_prefetch = 0 : i64, scratch_operands = 0 : i64, tpu.core_type = #tpu.core_type<tc>, window_params = [{pipeline_mode = #tpu.pipeline_mode<synchronous>, transform_indices = @transform_0, window_bounds = array<i64: 8, 32>}, {pipeline_mode = #tpu.pipeline_mode<synchronous>, transform_indices = @transform_1, window_bounds = array<i64: 1, 32>}, {pipeline_mode = #tpu.pipeline_mode<synchronous>, transform_indices = @transform_2, window_bounds = array<i64: 1, 32>}, {pipeline_mode = #tpu.pipeline_mode<synchronous>, transform_indices = @transform_3, window_bounds = array<i64: 32, 10>}, {pipeline_mode = #tpu.pipeline_mode<synchronous>, transform_indices = @transform_4, window_bounds = array<i64: 1, 10>}, {pipeline_mode = #tpu.pipeline_mode<synchronous>, transform_indices = @transform_5, window_bounds = array<i64: 8, 10>}]} {
    %c0 = arith.constant 0 : index
    %c0_0 = arith.constant 0 : index
    %0 = vector.load %arg1[%c0, %c0_0] : memref<8x32xf32, #tpu.memory_space<vmem>>, vector<8x32xf32>
    %c0_1 = arith.constant 0 : index
    %c0_2 = arith.constant 0 : index
    %1 = vector.load %arg2[%c0_1, %c0_2] : memref<1x32xf32, #tpu.memory_space<vmem>>, vector<1x32xf32>
    %c0_3 = arith.constant 0 : index
    %c0_4 = arith.constant 0 : index
    %2 = vector.load %arg3[%c0_3, %c0_4] : memref<1x32xf32, #tpu.memory_space<vmem>>, vector<1x32xf32>
    %cst = arith.constant dense<0.000000e+00> : vector<8xf32>
    %3 = vector.multi_reduction <add>, %0, %cst [1] : vector<8x32xf32> to vector<8xf32>
    %4 = vector.shape_cast %3 : vector<8xf32> to vector<8x1xf32>
    %cst_5 = arith.constant 3.200000e+01 : f32
    %5 = vector.broadcast %cst_5 : f32 to vector<8x1xf32>
    %6 = arith.divf %4, %5 : vector<8x1xf32>
    %7 = vector.broadcast %6 : vector<8x1xf32> to vector<8x32xf32>
    %8 = arith.subf %0, %7 : vector<8x32xf32>
    %9 = arith.mulf %8, %8 : vector<8x32xf32>
    %cst_6 = arith.constant dense<0.000000e+00> : vector<8xf32>
    %10 = vector.multi_reduction <add>, %9, %cst_6 [1] : vector<8x32xf32> to vector<8xf32>
    %11 = vector.shape_cast %10 : vector<8xf32> to vector<8x1xf32>
    %cst_7 = arith.constant 3.200000e+01 : f32
    %12 = vector.broadcast %cst_7 : f32 to vector<8x1xf32>
    %13 = arith.divf %11, %12 : vector<8x1xf32>
    %14 = vector.broadcast %6 : vector<8x1xf32> to vector<8x32xf32>
    %15 = arith.subf %0, %14 : vector<8x32xf32>
    %cst_8 = arith.constant 9.99999974E-6 : f32
    %16 = vector.broadcast %cst_8 : f32 to vector<8x1xf32>
    %17 = arith.addf %13, %16 : vector<8x1xf32>
    %18 = math.rsqrt %17 : vector<8x1xf32>
    %19 = vector.broadcast %18 : vector<8x1xf32> to vector<8x32xf32>
    %20 = arith.mulf %15, %19 : vector<8x32xf32>
    %21 = vector.broadcast %1 : vector<1x32xf32> to vector<8x32xf32>
    %22 = arith.mulf %20, %21 : vector<8x32xf32>
    %23 = vector.broadcast %2 : vector<1x32xf32> to vector<8x32xf32>
    %24 = arith.addf %22, %23 : vector<8x32xf32>
    %25 = arith.truncf %24 : vector<8x32xf32> to vector<8x32xbf16>
    %c0_9 = arith.constant 0 : index
    %c0_10 = arith.constant 0 : index
    %26 = vector.load %arg4[%c0_9, %c0_10] : memref<32x10xf32, #tpu.memory_space<vmem>>, vector<32x10xf32>
    %27 = arith.truncf %26 : vector<32x10xf32> to vector<32x10xbf16>
    %cst_11 = arith.constant dense<0.000000e+00> : vector<8x10xf32>
    %28 = tpu.matmul %25, %27, %cst_11 {dimension_numbers = #tpu.dot_dimension_numbers<[1], [0], [0], [1], [0, 0, 1, 1], [], []>} : vector<8x32xbf16>, vector<32x10xbf16>, vector<8x10xf32> -> vector<8x10xf32>
    %c0_12 = arith.constant 0 : index
    %c0_13 = arith.constant 0 : index
    %29 = vector.load %arg5[%c0_12, %c0_13] : memref<1x10xf32, #tpu.memory_space<vmem>>, vector<1x10xf32>
    %30 = vector.broadcast %29 : vector<1x10xf32> to vector<8x10xf32>
    %31 = arith.addf %28, %30 : vector<8x10xf32>
    %c0_14 = arith.constant 0 : index
    %c0_15 = arith.constant 0 : index
    %32 = vector.load %arg6[%c0_14, %c0_15] : memref<8x10xf32, #tpu.memory_space<vmem>>, vector<8x10xf32>
    tpu.vector_store %arg6[%c0_14, %c0_15], %31 {strides = array<i32>} : memref<8x10xf32, #tpu.memory_space<vmem>>, vector<8x10xf32>,
    return
  }
  func.func @transform_0(%arg0: i32) -> (i32, i32) {
    %c0_i32 = arith.constant 0 : i32
    %c0_i32_0 = arith.constant 0 : i32
    %c0_i32_1 = arith.constant 0 : i32
    return %c0_i32, %c0_i32_0 : i32, i32
  }
  func.func @transform_1(%arg0: i32) -> (i32, i32) {
    %c0_i32 = arith.constant 0 : i32
    %c0_i32_0 = arith.constant 0 : i32
    %c0_i32_1 = arith.constant 0 : i32
    return %c0_i32, %c0_i32_0 : i32, i32
  }
  func.func @transform_2(%arg0: i32) -> (i32, i32) {
    %c0_i32 = arith.constant 0 : i32
    %c0_i32_0 = arith.constant 0 : i32
    %c0_i32_1 = arith.constant 0 : i32
    return %c0_i32, %c0_i32_0 : i32, i32
  }
  func.func @transform_3(%arg0: i32) -> (i32, i32) {
    %c0_i32 = arith.constant 0 : i32
    %c0_i32_0 = arith.constant 0 : i32
    %c0_i32_1 = arith.constant 0 : i32
    return %c0_i32, %c0_i32_0 : i32, i32
  }
  func.func @transform_4(%arg0: i32) -> (i32, i32) {
    %c0_i32 = arith.constant 0 : i32
    %c0_i32_0 = arith.constant 0 : i32
    %c0_i32_1 = arith.constant 0 : i32
    return %c0_i32, %c0_i32_0 : i32, i32
  }
  func.func @transform_5(%arg0: i32) -> (i32, i32) {
    %c0_i32 = arith.constant 0 : i32
    %c0_i32_0 = arith.constant 0 : i32
    %c0_i32_1 = arith.constant 0 : i32
    return %c0_i32, %c0_i32_0 : i32, i32
  }
}

</mosaic_0001>

<llo_original>
// kernel: mbt_forward.9
$region0: #{mbt_forward.9}
  #allocation0 [shape = 'u32[]', space=smem, size = 0x4, offset = 0x4, fixed_abs, tag = 'smem constant byte address 0x4 - core index']
  #allocation1 [shape = 'u32[144,128]{1,0:T(1,128)}', space=vmem, size = 0x12000, scoped, tag = 'internal scratch']
  %s0 = inlined_call_operand.vmem [shape: f32[8,32], index: 0, kind: input, shape index: {}]
  %s1 = inlined_call_operand.vmem [shape: f32[1,32], index: 1, kind: input, shape index: {}]
  %s2 = inlined_call_operand.vmem [shape: f32[1,32], index: 2, kind: input, shape index: {}]
  %s3 = inlined_call_operand.vmem [shape: f32[32,10], index: 3, kind: input, shape index: {}]
  %s4 = inlined_call_operand.vmem [shape: f32[1,10], index: 4, kind: input, shape index: {}]
  %s5 = inlined_call_operand.vmem [shape: f32[8,10], index: 5, kind: output, shape index: {}]
  %s6 = sld [smem:[#allocation0]]
  $region30: #{mbt_forward.9} parent=0
    _
  %s8 = ssub.s32 1, %s6
  %s9 = scalar_select 0, %s8, %s6
  // Predicated region
  $region2: #{mbt_forward.9} parent=0 // pred_check
    _
  $region3: #{mbt_forward.9} parent=0 // pred_check_branch
    %11 = sbr.rel (0) target = $region5
  $region4: #{mbt_forward.9} parent=0 // pred_region
    _
  $region5: #{mbt_forward.9} parent=0 // pred_fallthru
    _
  // Predicated region
  $region6: #{mbt_forward.9} parent=0 // pred_check
    _
  $region7: #{mbt_forward.9} parent=0 // pred_check_branch
    %13 = sbr.rel (0) target = $region9
  $region8: #{mbt_forward.9} parent=0 // pred_region
    _
  $region9: #{mbt_forward.9} parent=0 // pred_fallthru
    _
  // Predicated region
  $region10: #{mbt_forward.9} parent=0 // pred_check
    _
  $region11: #{mbt_forward.9} parent=0 // pred_check_branch
    %15 = sbr.rel (0) target = $region13
  $region12: #{mbt_forward.9} parent=0 // pred_region
    _
  $region13: #{mbt_forward.9} parent=0 // pred_fallthru
    _
  // Predicated region
  $region14: #{mbt_forward.9} parent=0 // pred_check
    _
  $region15: #{mbt_forward.9} parent=0 // pred_check_branch
    %17 = sbr.rel (0) target = $region17
  $region16: #{mbt_forward.9} parent=0 // pred_region
    _
  $region17: #{mbt_forward.9} parent=0 // pred_fallthru
    _
  // Predicated region
  $region18: #{mbt_forward.9} parent=0 // pred_check
    _
  $region19: #{mbt_forward.9} parent=0 // pred_check_branch
    %19 = sbr.rel (0) target = $region21
  $region20: #{mbt_forward.9} parent=0 // pred_region
    _
  $region21: #{mbt_forward.9} parent=0 // pred_fallthru
    _
  %v21 = vld [vmem:[%s0] sm:$0xff]
  %v22 = vld [vmem:[%s1] sm:$0x1]
  %v23 = vld [vmem:[%s2] sm:$0x1]
  %vm24 = vcmask 261120
  %v25 = vsel %vm24, %v21, 0.0
  %26 = vadd.xlane.f32.xlu0 %v25
  %v27 = vpop.xlane.xlu0 %26
  %v28 = vrcp.pop 32.0
  %v29 = vmul.f32 %v27, %v28
  %v30 = vsub.f32 %v21, %v29
  %v31 = vmul.f32 %v30, %v30
  %v32 = vsel %vm24, %v31, 0.0
  %33 = vadd.xlane.f32.xlu0 %v32
  %v34 = vpop.xlane.xlu0 %33
  %v35 = vmul.f32 %v34, %v28
  %v36 = vadd.f32 %v35, 1e-05
  %v37 = vrsqrt.pop %v36
  %v38 = vmul.f32 %v30, %v37
  %v40 = vlaneseq
  %v41 = vshrl.u32 %v40, 7
  %v42 = vsub.s32 0, %v41
  %v43 = vrot.slane %v22, %v42
  %v45 = vmul.f32 %v38, %v43
  %v47 = vlaneseq
  %v48 = vshrl.u32 %v47, 7
  %v49 = vsub.s32 0, %v48
  %v50 = vrot.slane %v23, %v49
  %v52 = vadd.f32 %v45, %v50
  %v53 = vpack.c.bf16 %v52, %v52
  %v54 = vld [vmem:[%s3] sm:$0xff]
  %v55 = vld [vmem:[%s3 + $0x8] sm:$0xff]
  %v56 = vld [vmem:[%s3 + $0x10] sm:$0xff]
  %v57 = vld [vmem:[%s3 + $0x18] sm:$0xff]
  %v58 = vpack.c.bf16 %v55, %v54
  %v59 = vpack.c.bf16 %v57, %v56
  %v60 = vld [vmem:[%s4] sm:$0x1]
  %v62 = vlaneseq
  %v63 = vshrl.u32 %v62, 7
  %v64 = vsub.s32 0, %v63
  %v65 = vrot.slane %v60, %v64
  %v68 = vsel %vm24, %v53, 0
  %70 = vmatprep.subr.bf16.mxu0 0
  %71 = vmatpush1.bf16.msra.mxu0 %v58
  %72 = vmatprep.subr.bf16.mxu0 0
  %73 = vmatpush1.bf16.msra.mxu0 %v59
  %74 = vmatprep.subr.bf16.mxu0 0
  %75 = vmatpush1.bf16.msra.mxu0 0
  %76 = vmatprep.subr.bf16.mxu0 0
  %77 = vmatpush1.bf16.msra.mxu0 0
  %78 = vmatprep.subr.bf16.mxu0 0
  %79 = vmatpush1.bf16.msra.mxu0 0
  %80 = vmatprep.subr.bf16.mxu0 0
  %81 = vmatpush1.bf16.msra.mxu0 0
  %82 = vmatprep.subr.bf16.mxu0 0
  %83 = vmatpush1.bf16.msra.mxu0 0
  %84 = vmatprep.subr.bf16.mxu0 0
  %85 = vmatpush1.bf16.msra.mxu0 0
  %86 = vmatprep.subr.bf16.mxu0 0
  %87 = vmatpush1.bf16.msra.mxu0 0
  %88 = vmatprep.subr.bf16.mxu0 0
  %89 = vmatpush1.bf16.msra.mxu0 0
  %90 = vmatprep.subr.bf16.mxu0 0
  %91 = vmatpush1.bf16.msra.mxu0 0
  %92 = vmatprep.subr.bf16.mxu0 0
  %93 = vmatpush1.bf16.msra.mxu0 0
  %94 = vmatprep.subr.bf16.mxu0 0
  %95 = vmatpush1.bf16.msra.mxu0 0
  %96 = vmatprep.subr.bf16.mxu0 0
  %97 = vmatpush1.bf16.msra.mxu0 0
  %98 = vmatprep.subr.bf16.mxu0 0
  %99 = vmatpush1.bf16.msra.mxu0 0
  %100 = vmatprep.subr.bf16.mxu0 0
  %101 = vmatpush1.bf16.msra.mxu0 0
  %102 = vmatprep.mubr.bf16.mxu0 0
  %103 = vmatmul.mubr.bf16.gmra.mrb[0].mxu0 %v68
  %v104 = vpop.f32.mrb[0].mxu0
  %v105 = vadd.f32 %v65, %v104
  %v106 = vpop.f32.mrb[0].mxu0
  %v107 = vpop.f32.mrb[0].mxu0
  %v108 = vpop.f32.mrb[0].mxu0
  %109 = vdwg.mxu0
  %vm110 = vcmask 80896
  %111 = vst.msk [vmem:[%s5] sm:$0xff] %vm110, %v105
  // Predicated region
  $region22: #{mbt_forward.9} parent=0 // pred_check
    _
  $region23: #{mbt_forward.9} parent=0 // pred_check_branch
    %113 = sbr.rel (0) target = $region25
  $region24: #{mbt_forward.9} parent=0 // pred_region
    _
  $region25: #{mbt_forward.9} parent=0 // pred_fallthru
    _
  // Predicated region
  $region26: #{mbt_forward.9} parent=0 // pred_check
    _
  $region27: #{mbt_forward.9} parent=0 // pred_check_branch
    %115 = sbr.rel (0) target = $region29
  $region28: #{mbt_forward.9} parent=0 // pred_region
    _
  $region29: #{mbt_forward.9} parent=0 // pred_fallthru
    _

// kernel: mbt_forward.5
$region0: #{mbt_forward.5}
  #allocation0 [shape = 'u32[]', space=smem, size = 0x4, offset = 0x4, fixed_abs, tag = 'smem constant byte address 0x4 - core index']
  #allocation1 [shape = 'u32[144,128]{1,0:T(1,128)}', space=vmem, size = 0x12000, scoped, tag = 'internal scratch']
  #allocation2 [shape = 'f32[48,32]{1,0:T(8,128)}', space=vmem, size = 0x6000, scoped, tag = 'scratch operand']
  #allocation3 [shape = 'f32[48,32]{1,0:T(8,128)}', space=vmem, size = 0x6000, scoped, tag = 'scratch operand']
  %s0 = inlined_call_operand.hbm [shape: f32[4,16,32], index: 0, kind: input, shape index: {}]
  %s1 = inlined_call_operand.hbm [shape: f32[4,8,32], index: 1, kind: input, shape index: {}]
  %s2 = inlined_call_operand.hbm [shape: f32[1,24], index: 2, kind: input, shape index: {}]
  %s3 = inlined_call_operand.hbm [shape: f32[1,32], index: 3, kind: input, shape index: {}]
  %s4 = inlined_call_operand.hbm [shape: f32[1,32], index: 4, kind: input, shape index: {}]
  %s5 = inlined_call_operand.hbm [shape: bf16[32,96], index: 5, kind: input, shape index: {}]
  %s6 = inlined_call_operand.hbm [shape: bf16[32,32], index: 6, kind: input, shape index: {}]
  %s7 = inlined_call_operand.hbm [shape: f32[1,32], index: 7, kind: input, shape index: {}]
  %s8 = inlined_call_operand.hbm [shape: f32[1,32], index: 8, kind: input, shape index: {}]
  %s9 = inlined_call_operand.hbm [shape: f32[1,32], index: 9, kind: input, shape index: {}]
  %s10 = inlined_call_operand.hbm [shape: bf16[32,128], index: 10, kind: input, shape index: {}]
  %s11 = inlined_call_operand.hbm [shape: f32[1,128], index: 11, kind: input, shape index: {}]
  %s12 = inlined_call_operand.hbm [shape: bf16[128,32], index: 12, kind: input, shape index: {}]
  %s13 = inlined_call_operand.hbm [shape: f32[1,32], index: 13, kind: input, shape index: {}]
  %s14 = inlined_call_operand.hbm [shape: f32[4,16,32], index: 14, kind: output, shape index: {0}]
  %s15 = inlined_call_operand.hbm [shape: f32[4,8,32], index: 15, kind: output, shape index: {1}]
  %16 = xla_tuple %s14, %s15
  %s17 = sld [smem:[#allocation0]]
  $region153: #{mbt_forward.5} parent=0
    _
  %s19 = ssub.s32 1, %s17
  %s20 = scalar_select 0, %s19, %s17
  $region1: #{mbt_forward.5} parent=0
    #allocation4 [shape = 'u8[32768]{0}', space=vmem, size = 0x8000, scoped, tag = 'input window, operand 0']
    #allocation5 [shape = 's32[2]{0}', space=sflag, size = 0x8, scoped, tag = 'scoped memory for mbt_forward.5']
    #allocation6 [shape = 's32[2]{0}', space=sflag, size = 0x8, scoped, tag = 'scoped memory for mbt_forward.5']
    #allocation7 [shape = 'u8[16384]{0}', space=vmem, size = 0x4000, scoped, tag = 'input window, operand 1']
    #allocation8 [shape = 's32[2]{0}', space=sflag, size = 0x8, scoped, tag = 'scoped memory for mbt_forward.5']
    #allocation9 [shape = 'u8[512]{0}', space=vmem, size = 0x400, scoped, tag = 'input window, operand 2, single buffered']
    #allocation10 [shape = 'u8[512]{0}', space=vmem, size = 0x400, scoped, tag = 'input window, operand 3, single buffered']
    #allocation11 [shape = 's32[1]{0}', space=sflag, size = 0x4, scoped, tag = 'scoped memory for mbt_forward.5']
    #allocation12 [shape = 'u8[512]{0}', space=vmem, size = 0x400, scoped, tag = 'input window, operand 4, single buffered']
    #allocation13 [shape = 'u8[8192]{0}', space=vmem, size = 0x2000, scoped, tag = 'input window, operand 5, single buffered']
    #allocation14 [shape = 's32[1]{0}', space=sflag, size = 0x4, scoped, tag = 'scoped memory for mbt_forward.5']
    #allocation15 [shape = 'u8[8192]{0}', space=vmem, size = 0x2000, scoped, tag = 'input window, operand 6, single buffered']
    #allocation16 [shape = 'u8[512]{0}', space=vmem, size = 0x400, scoped, tag = 'input window, operand 7, single buffered']
    #allocation17 [shape = 's32[1]{0}', space=sflag, size = 0x4, scoped, tag = 'scoped memory for mbt_forward.5']
    #allocation18 [shape = 'u8[512]{0}', space=vmem, size = 0x400, scoped, tag = 'input window, operand 8, single buffered']
    #allocation19 [shape = 'u8[512]{0}', space=vmem, size = 0x400, scoped, tag = 'input window, operand 9, single buffered']
    #allocation20 [shape = 's32[1]{0}', space=sflag, size = 0x4, scoped, tag = 'scoped memory for mbt_forward.5']
    #allocation21 [shape = 'u8[8192]{0}', space=vmem, size = 0x2000, scoped, tag = 'input window, operand 10, single buffered']
    #allocation22 [shape = 'u8[512]{0}', space=vmem, size = 0x400, scoped, tag = 'input window, operand 11, single buffered']
    #allocation23 [shape = 's32[1]{0}', space=sflag, size = 0x4, scoped, tag = 'scoped memory for mbt_forward.5']
    #allocation24 [shape = 'u8[32768]{0}', space=vmem, size = 0x8000, scoped, tag = 'input window, operand 12, single buffered']
    #allocation25 [shape = 'u8[512]{0}', space=vmem, size = 0x400, scoped, tag = 'input window, operand 13, single buffered']
    #allocation26 [shape = 's32[1]{0}', space=sflag, size = 0x4, scoped, tag = 'scoped memory for mbt_forward.5']
    #allocation27 [shape = 'u8[32768]{0}', space=vmem, size = 0x8000, scoped, tag = 'output window, operand 0']
    #allocation28 [shape = 'u8[16384]{0}', space=vmem, size = 0x4000, scoped, tag = 'output window, operand 1']
    #allocation29 [shape = 's32[2]{0}', space=sflag, size = 0x8, scoped, tag = 'scoped memory for mbt_forward.5']
    %21 = vsyncpa [#allocation5], 0
    %s22 = scalar_lea.sflag [#allocation5], 1
    %23 = vsyncpa %s22, 0
    %24 = vsyncpa [#allocation8], 0
    %s25 = scalar_lea.sflag [#allocation8], 1
    %26 = vsyncpa %s25, 0
    %27 = vsyncpa [#allocation11], 0
    %28 = vsyncpa [#allocation14], 0
    %29 = vsyncpa [#allocation17], 0
    %30 = vsyncpa [#allocation20], 0
    %31 = vsyncpa [#allocation23], 0
    %32 = vsyncpa [#allocation26], 0
    %33 = vsyncpa [#allocation6], 0
    %s34 = scalar_lea.sflag [#allocation6], 1
    %35 = vsyncpa %s34, 0
    %36 = vsyncpa [#allocation29], 0
    %s37 = scalar_lea.sflag [#allocation29], 1
    %38 = vsyncpa %s37, 0
    loop: start=0, step=1, limit=4
    $region2: #{mbt_forward.5} parent=1 // loop_pre_header
      _
    $region3: #{mbt_forward.5} parent=1 // loop_header
      %s40 = sphi 0, %s44
      %p41 = scmp.ge.s32.totalorder %s40, 4
      %s50 = sphi 0, %s52
      %s53 = sphi 0, %s50
      %s54 = sphi 0, %s53
      %s70 = sphi 0, %s54
      %s76 = sphi 0, %s78
      %s79 = sphi 0, %s76
      %s80 = sphi 0, %s79
      %s96 = sphi 0, %s80
      %s100 = sphi 0, %s100
      %s102 = sphi 0, %s100
      %s103 = sphi 0, %s102
      %s117 = sphi 0, %s103
      %s121 = sphi 0, %s121
      %s123 = sphi 0, %s121
      %s124 = sphi 0, %s123
      %s138 = sphi 0, %s124
      %s142 = sphi 0, %s142
      %s144 = sphi 0, %s142
      %s145 = sphi 0, %s144
      %s159 = sphi 0, %s145
      %s163 = sphi 0, %s163
      %s165 = sphi 0, %s163
      %s166 = sphi 0, %s165
      %s180 = sphi 0, %s166
      %s184 = sphi 0, %s184
      %s186 = sphi 0, %s184
      %s187 = sphi 0, %s186
      %s201 = sphi 0, %s187
      %s205 = sphi 0, %s205
      %s207 = sphi 0, %s205
      %s208 = sphi 0, %s207
      %s222 = sphi 0, %s208
      %s226 = sphi 0, %s226
      %s228 = sphi 0, %s226
      %s229 = sphi 0, %s228
      %s243 = sphi 0, %s229
      %s247 = sphi 0, %s247
      %s249 = sphi 0, %s247
      %s250 = sphi 0, %s249
      %s264 = sphi 0, %s250
      %s268 = sphi 0, %s268
      %s270 = sphi 0, %s268
      %s271 = sphi 0, %s270
      %s285 = sphi 0, %s271
      %s289 = sphi 0, %s289
      %s291 = sphi 0, %s289
      %s292 = sphi 0, %s291
      %s306 = sphi 0, %s292
      %s310 = sphi 0, %s310
      %s312 = sphi 0, %s310
      %s313 = sphi 0, %s312
      %s327 = sphi 0, %s313
      %s331 = sphi 0, %s331
      %s333 = sphi 0, %s331
      %s334 = sphi 0, %s333
      %s348 = sphi 0, %s334
      %s354 = sphi 0, %s356
      %s357 = sphi 0, %s354
      %s358 = sphi 0, %s357
      %s374 = sphi 0, %s358
      %s380 = sphi 0, %s382
      %s383 = sphi 0, %s380
      %s384 = sphi 0, %s383
      %s400 = sphi 0, %s384
    $region4: #{mbt_forward.5} parent=1 // loop_header_branch
      %43 = sbr.rel (%p41) target = $region8
    $region5: #{mbt_forward.5} parent=1 // loop_body
      %s45 = ssub.s32 %s40, 1
      %s46 = ssub.s32 %s40, 2
      %s47 = sadd.s32 %s40, 1
      %s48 = ssub.s32 %s40, %s47
      %p49 = scmp.eq.s32.totalorder %s48, 0
      %s51 = sadd.s32 %s50, 1
      %s52 = scalar_select %p49, %s50, %s51
      %p55 = pneg %p49
      %p56 = scmp.eq.s32.totalorder %s40, 1
      %p57 = por %p55, %p56
      %p58 = scmp.ne.s32.totalorder %s50, %s53
      %p59 = scmp.eq.s32.totalorder %s40, 0
      %p60 = por %p58, %p59
      %p61 = scmp.ne.s32.totalorder %s50, %s53
      %p62 = scmp.eq.s32.totalorder %s45, 1
      %p63 = por %p61, %p62
      %p64 = scmp.ne.s32.totalorder %s53, %s54
      %p65 = scmp.eq.s32.totalorder %s45, 0
      %p66 = por %p64, %p65
      %p67 = scmp.ne.s32.totalorder %s53, %s54
      %p68 = scmp.eq.s32.totalorder %s46, 1
      %p69 = por %p67, %p68
      %p71 = scmp.ne.s32.totalorder %s54, %s70
      %p72 = scmp.eq.s32.totalorder %s46, 0
      %p73 = por %p71, %p72
      %s74 = ssub.s32 %s40, %s47
      %p75 = scmp.eq.s32.totalorder %s74, 0
      %s77 = sadd.s32 %s76, 1
      %s78 = scalar_select %p75, %s76, %s77
      %p81 = pneg %p75
      %p82 = scmp.eq.s32.totalorder %s40, 1
      %p83 = por %p81, %p82
      %p84 = scmp.ne.s32.totalorder %s76, %s79
      %p85 = scmp.eq.s32.totalorder %s40, 0
      %p86 = por %p84, %p85
      %p87 = scmp.ne.s32.totalorder %s76, %s79
      %p88 = scmp.eq.s32.totalorder %s45, 1
      %p89 = por %p87, %p88
      %p90 = scmp.ne.s32.totalorder %s79, %s80
      %p91 = scmp.eq.s32.totalorder %s45, 0
      %p92 = por %p90, %p91
      %p93 = scmp.ne.s32.totalorder %s79, %s80
      %p94 = scmp.eq.s32.totalorder %s46, 1
      %p95 = por %p93, %p94
      %p97 = scmp.ne.s32.totalorder %s80, %s96
      %p98 = scmp.eq.s32.totalorder %s46, 0
      %p99 = por %p97, %p98
      %s101 = sadd.s32 %s100, 1
      %p104 = scmp.eq.s32.totalorder %s40, 1
      %p105 = scmp.ne.s32.totalorder %s100, %s102
      %p106 = scmp.eq.s32.totalorder %s40, 0
      %p107 = por %p105, %p106
      %p108 = scmp.ne.s32.totalorder %s100, %s102
      %p109 = scmp.eq.s32.totalorder %s45, 1
      %p110 = por %p108, %p109
      %p111 = scmp.ne.s32.totalorder %s102, %s103
      %p112 = scmp.eq.s32.totalorder %s45, 0
      %p113 = por %p111, %p112
      %p114 = scmp.ne.s32.totalorder %s102, %s103
      %p115 = scmp.eq.s32.totalorder %s46, 1
      %p116 = por %p114, %p115
      %p118 = scmp.ne.s32.totalorder %s103, %s117
      %p119 = scmp.eq.s32.totalorder %s46, 0
      %p120 = por %p118, %p119
      %s122 = sadd.s32 %s121, 1
      %p125 = scmp.eq.s32.totalorder %s40, 1
      %p126 = scmp.ne.s32.totalorder %s121, %s123
      %p127 = scmp.eq.s32.totalorder %s40, 0
      %p128 = por %p126, %p127
      %p129 = scmp.ne.s32.totalorder %s121, %s123
      %p130 = scmp.eq.s32.totalorder %s45, 1
      %p131 = por %p129, %p130
      %p132 = scmp.ne.s32.totalorder %s123, %s124
      %p133 = scmp.eq.s32.totalorder %s45, 0
      %p134 = por %p132, %p133
      %p135 = scmp.ne.s32.totalorder %s123, %s124
      %p136 = scmp.eq.s32.totalorder %s46, 1
      %p137 = por %p135, %p136
      %p139 = scmp.ne.s32.totalorder %s124, %s138
      %p140 = scmp.eq.s32.totalorder %s46, 0
      %p141 = por %p139, %p140
      %s143 = sadd.s32 %s142, 1
      %p146 = scmp.eq.s32.totalorder %s40, 1
      %p147 = scmp.ne.s32.totalorder %s142, %s144
      %p148 = scmp.eq.s32.totalorder %s40, 0
      %p149 = por %p147, %p148
      %p150 = scmp.ne.s32.totalorder %s142, %s144
      %p151 = scmp.eq.s32.totalorder %s45, 1
      %p152 = por %p150, %p151
      %p153 = scmp.ne.s32.totalorder %s144, %s145
      %p154 = scmp.eq.s32.totalorder %s45, 0
      %p155 = por %p153, %p154
      %p156 = scmp.ne.s32.totalorder %s144, %s145
      %p157 = scmp.eq.s32.totalorder %s46, 1
      %p158 = por %p156, %p157
      %p160 = scmp.ne.s32.totalorder %s145, %s159
      %p161 = scmp.eq.s32.totalorder %s46, 0
      %p162 = por %p160, %p161
      %s164 = sadd.s32 %s163, 1
      %p167 = scmp.eq.s32.totalorder %s40, 1
      %p168 = scmp.ne.s32.totalorder %s163, %s165
      %p169 = scmp.eq.s32.totalorder %s40, 0
      %p170 = por %p168, %p169
      %p171 = scmp.ne.s32.totalorder %s163, %s165
      %p172 = scmp.eq.s32.totalorder %s45, 1
      %p173 = por %p171, %p172
      %p174 = scmp.ne.s32.totalorder %s165, %s166
      %p175 = scmp.eq.s32.totalorder %s45, 0
      %p176 = por %p174, %p175
      %p177 = scmp.ne.s32.totalorder %s165, %s166
      %p178 = scmp.eq.s32.totalorder %s46, 1
      %p179 = por %p177, %p178
      %p181 = scmp.ne.s32.totalorder %s166, %s180
      %p182 = scmp.eq.s32.totalorder %s46, 0
      %p183 = por %p181, %p182
      %s185 = sadd.s32 %s184, 1
      %p188 = scmp.eq.s32.totalorder %s40, 1
      %p189 = scmp.ne.s32.totalorder %s184, %s186
      %p190 = scmp.eq.s32.totalorder %s40, 0
      %p191 = por %p189, %p190
      %p192 = scmp.ne.s32.totalorder %s184, %s186
      %p193 = scmp.eq.s32.totalorder %s45, 1
      %p194 = por %p192, %p193
      %p195 = scmp.ne.s32.totalorder %s186, %s187
      %p196 = scmp.eq.s32.totalorder %s45, 0
      %p197 = por %p195, %p196
      %p198 = scmp.ne.s32.totalorder %s186, %s187
      %p199 = scmp.eq.s32.totalorder %s46, 1
      %p200 = por %p198, %p199
      %p202 = scmp.ne.s32.totalorder %s187, %s201
      %p203 = scmp.eq.s32.totalorder %s46, 0
      %p204 = por %p202, %p203
      %s206 = sadd.s32 %s205, 1
      %p209 = scmp.eq.s32.totalorder %s40, 1
      %p210 = scmp.ne.s32.totalorder %s205, %s207
      %p211 = scmp.eq.s32.totalorder %s40, 0
      %p212 = por %p210, %p211
      %p213 = scmp.ne.s32.totalorder %s205, %s207
      %p214 = scmp.eq.s32.totalorder %s45, 1
      %p215 = por %p213, %p214
      %p216 = scmp.ne.s32.totalorder %s207, %s208
      %p217 = scmp.eq.s32.totalorder %s45, 0
      %p218 = por %p216, %p217
      %p219 = scmp.ne.s32.totalorder %s207, %s208
      %p220 = scmp.eq.s32.totalorder %s46, 1
      %p221 = por %p219, %p220
      %p223 = scmp.ne.s32.totalorder %s208, %s222
      %p224 = scmp.eq.s32.totalorder %s46, 0
      %p225 = por %p223, %p224
      %s227 = sadd.s32 %s226, 1
      %p230 = scmp.eq.s32.totalorder %s40, 1
      %p231 = scmp.ne.s32.totalorder %s226, %s228
      %p232 = scmp.eq.s32.totalorder %s40, 0
      %p233 = por %p231, %p232
      %p234 = scmp.ne.s32.totalorder %s226, %s228
      %p235 = scmp.eq.s32.totalorder %s45, 1
      %p236 = por %p234, %p235
      %p237 = scmp.ne.s32.totalorder %s228, %s229
      %p238 = scmp.eq.s32.totalorder %s45, 0
      %p239 = por %p237, %p238
      %p240 = scmp.ne.s32.totalorder %s228, %s229
      %p241 = scmp.eq.s32.totalorder %s46, 1
      %p242 = por %p240, %p241
      %p244 = scmp.ne.s32.totalorder %s229, %s243
      %p245 = scmp.eq.s32.totalorder %s46, 0
      %p246 = por %p244, %p245
      %s248 = sadd.s32 %s247, 1
      %p251 = scmp.eq.s32.totalorder %s40, 1
      %p252 = scmp.ne.s32.totalorder %s247, %s249
      %p253 = scmp.eq.s32.totalorder %s40, 0
      %p254 = por %p252, %p253
      %p255 = scmp.ne.s32.totalorder %s247, %s249
      %p256 = scmp.eq.s32.totalorder %s45, 1
      %p257 = por %p255, %p256
      %p258 = scmp.ne.s32.totalorder %s249, %s250
      %p259 = scmp.eq.s32.totalorder %s45, 0
      %p260 = por %p258, %p259
      %p261 = scmp.ne.s32.totalorder %s249, %s250
      %p262 = scmp.eq.s32.totalorder %s46, 1
      %p263 = por %p261, %p262
      %p265 = scmp.ne.s32.totalorder %s250, %s264
      %p266 = scmp.eq.s32.totalorder %s46, 0
      %p267 = por %p265, %p266
      %s269 = sadd.s32 %s268, 1
      %p272 = scmp.eq.s32.totalorder %s40, 1
      %p273 = scmp.ne.s32.totalorder %s268, %s270
      %p274 = scmp.eq.s32.totalorder %s40, 0
      %p275 = por %p273, %p274
      %p276 = scmp.ne.s32.totalorder %s268, %s270
      %p277 = scmp.eq.s32.totalorder %s45, 1
      %p278 = por %p276, %p277
      %p279 = scmp.ne.s32.totalorder %s270, %s271
      %p280 = scmp.eq.s32.totalorder %s45, 0
      %p281 = por %p279, %p280
      %p282 = scmp.ne.s32.totalorder %s270, %s271
      %p283 = scmp.eq.s32.totalorder %s46, 1
      %p284 = por %p282, %p283
      %p286 = scmp.ne.s32.totalorder %s271, %s285
      %p287 = scmp.eq.s32.totalorder %s46, 0
      %p288 = por %p286, %p287
      %s290 = sadd.s32 %s289, 1
      %p293 = scmp.eq.s32.totalorder %s40, 1
      %p294 = scmp.ne.s32.totalorder %s289, %s291
      %p295 = scmp.eq.s32.totalorder %s40, 0
      %p296 = por %p294, %p295
      %p297 = scmp.ne.s32.totalorder %s289, %s291
      %p298 = scmp.eq.s32.totalorder %s45, 1
      %p299 = por %p297, %p298
      %p300 = scmp.ne.s32.totalorder %s291, %s292
      %p301 = scmp.eq.s32.totalorder %s45, 0
      %p302 = por %p300, %p301
      %p303 = scmp.ne.s32.totalorder %s291, %s292
      %p304 = scmp.eq.s32.totalorder %s46, 1
      %p305 = por %p303, %p304
      %p307 = scmp.ne.s32.totalorder %s292, %s306
      %p308 = scmp.eq.s32.totalorder %s46, 0
      %p309 = por %p307, %p308
      %s311 = sadd.s32 %s310, 1
      %p314 = scmp.eq.s32.totalorder %s40, 1
      %p315 = scmp.ne.s32.totalorder %s310, %s312
      %p316 = scmp.eq.s32.totalorder %s40, 0
      %p317 = por %p315, %p316
      %p318 = scmp.ne.s32.totalorder %s310, %s312
      %p319 = scmp.eq.s32.totalorder %s45, 1
      %p320 = por %p318, %p319
      %p321 = scmp.ne.s32.totalorder %s312, %s313
      %p322 = scmp.eq.s32.totalorder %s45, 0
      %p323 = por %p321, %p322
      %p324 = scmp.ne.s32.totalorder %s312, %s313
      %p325 = scmp.eq.s32.totalorder %s46, 1
      %p326 = por %p324, %p325
      %p328 = scmp.ne.s32.totalorder %s313, %s327
      %p329 = scmp.eq.s32.totalorder %s46, 0
      %p330 = por %p328, %p329
      %s332 = sadd.s32 %s331, 1
      %p335 = scmp.eq.s32.totalorder %s40, 1
      %p336 = scmp.ne.s32.totalorder %s331, %s333
      %p337 = scmp.eq.s32.totalorder %s40, 0
      %p338 = por %p336, %p337
      %p339 = scmp.ne.s32.totalorder %s331, %s333
      %p340 = scmp.eq.s32.totalorder %s45, 1
      %p341 = por %p339, %p340
      %p342 = scmp.ne.s32.totalorder %s333, %s334
      %p343 = scmp.eq.s32.totalorder %s45, 0
      %p344 = por %p342, %p343
      %p345 = scmp.ne.s32.totalorder %s333, %s334
      %p346 = scmp.eq.s32.totalorder %s46, 1
      %p347 = por %p345, %p346
      %p349 = scmp.ne.s32.totalorder %s334, %s348
      %p350 = scmp.eq.s32.totalorder %s46, 0
      %p351 = por %p349, %p350
      %s352 = ssub.s32 %s40, %s47
      %p353 = scmp.eq.s32.totalorder %s352, 0
      %s355 = sadd.s32 %s354, 1
      %s356 = scalar_select %p353, %s354, %s355
      %p359 = pneg %p353
      %p360 = scmp.eq.s32.totalorder %s40, 1
      %p361 = por %p359, %p360
      %p362 = scmp.ne.s32.totalorder %s354, %s357
      %p363 = scmp.eq.s32.totalorder %s40, 0
      %p364 = por %p362, %p363
      %p365 = scmp.ne.s32.totalorder %s354, %s357
      %p366 = scmp.eq.s32.totalorder %s45, 1
      %p367 = por %p365, %p366
      %p368 = scmp.ne.s32.totalorder %s357, %s358
      %p369 = scmp.eq.s32.totalorder %s45, 0
      %p370 = por %p368, %p369
      %p371 = scmp.ne.s32.totalorder %s357, %s358
      %p372 = scmp.eq.s32.totalorder %s46, 1
      %p373 = por %p371, %p372
      %p375 = scmp.ne.s32.totalorder %s358, %s374
      %p376 = scmp.eq.s32.totalorder %s46, 0
      %p377 = por %p375, %p376
      %s378 = ssub.s32 %s40, %s47
      %p379 = scmp.eq.s32.totalorder %s378, 0
      %s381 = sadd.s32 %s380, 1
      %s382 = scalar_select %p379, %s380, %s381
      %p385 = pneg %p379
      %p386 = scmp.eq.s32.totalorder %s40, 1
      %p387 = por %p385, %p386
      %p388 = scmp.ne.s32.totalorder %s380, %s383
      %p389 = scmp.eq.s32.totalorder %s40, 0
      %p390 = por %p388, %p389
      %p391 = scmp.ne.s32.totalorder %s380, %s383
      %p392 = scmp.eq.s32.totalorder %s45, 1
      %p393 = por %p391, %p392
      %p394 = scmp.ne.s32.totalorder %s383, %s384
      %p395 = scmp.eq.s32.totalorder %s45, 0
      %p396 = por %p394, %p395
      %p397 = scmp.ne.s32.totalorder %s383, %s384
      %p398 = scmp.eq.s32.totalorder %s46, 1
      %p399 = por %p397, %p398
      %p401 = scmp.ne.s32.totalorder %s384, %s400
      %p402 = scmp.eq.s32.totalorder %s46, 0
      %p403 = por %p401, %p402
      %p404 = scmp.le.s32.totalorder 1, %s40
      %p405 = scmp.lt.s32.totalorder %s40, 3
      %p406 = pnand %p404, %p405
      %p407 = pneg %p406
      // Predicated region
      $region9: #{mbt_forward.5} parent=5 // pred_check
        _
      $region10: #{mbt_forward.5} parent=5 // pred_check_branch
        %409 = sbr.rel (%p406) target = $region12
      $region11: #{mbt_forward.5} parent=5 // pred_region
        %s410 = ssub.s32 %s40, 1
        // Predicated region
        $region13: #{mbt_forward.5} parent=11 // pred_check
          %p411 = pneg %p113
        $region14: #{mbt_forward.5} parent=11 // pred_check_branch
          %413 = sbr.rel (%p411) target = $region16
        $region15: #{mbt_forward.5} parent=11 // pred_region
          %s415 = ssub.s32 16, 16
          %416 = vsyncadd [#allocation8], %s415
          %s418 = sshll.u32 [#allocation9], 4
          %s419 = int_to_ptr.vmem [resolvable:$true] %s418
          %421 = dma.hbm_to_vmem [thread:$0]  %s2, 16, %s419, [#allocation8]
        $region16: #{mbt_forward.5} parent=11 // pred_fallthru
          _
        // Predicated region
        $region17: #{mbt_forward.5} parent=11 // pred_check
          %p422 = pneg %p134
        $region18: #{mbt_forward.5} parent=11 // pred_check_branch
          %424 = sbr.rel (%p422) target = $region20
        $region19: #{mbt_forward.5} parent=11 // pred_region
          %s426 = ssub.s32 16, 16
          %427 = vsyncadd [#allocation11], %s426
          %s429 = sshll.u32 [#allocation10], 4
          %s430 = int_to_ptr.vmem [resolvable:$true] %s429
          %432 = dma.hbm_to_vmem [thread:$0]  %s3, 16, %s430, [#allocation11]
        $region20: #{mbt_forward.5} parent=11 // pred_fallthru
          _
        // Predicated region
        $region21: #{mbt_forward.5} parent=11 // pred_check
          %p433 = pneg %p155
        $region22: #{mbt_forward.5} parent=11 // pred_check_branch
          %435 = sbr.rel (%p433) target = $region24
        $region23: #{mbt_forward.5} parent=11 // pred_region
          %s437 = ssub.s32 16, 16
          %438 = vsyncadd [#allocation11], %s437
          %s440 = sshll.u32 [#allocation12], 4
          %s441 = int_to_ptr.vmem [resolvable:$true] %s440
          %443 = dma.hbm_to_vmem [thread:$0]  %s4, 16, %s441, [#allocation11]
        $region24: #{mbt_forward.5} parent=11 // pred_fallthru
          _
        // Predicated region
        $region25: #{mbt_forward.5} parent=11 // pred_check
          %p444 = pneg %p176
        $region26: #{mbt_forward.5} parent=11 // pred_check_branch
          %446 = sbr.rel (%p444) target = $region28
        $region27: #{mbt_forward.5} parent=11 // pred_region
          %s448 = ssub.s32 256, 256
          %449 = vsyncadd [#allocation14], %s448
          %s450 = sshll.u32 [#allocation13], 4
          %s451 = int_to_ptr.vmem [resolvable:$true] %s450
          %456 = dma.hbm_to_vmem [thread:$0]  %s5, 256, %s451, [#allocation14], 64, 64, 4
        $region28: #{mbt_forward.5} parent=11 // pred_fallthru
          _
        // Predicated region
        $region29: #{mbt_forward.5} parent=11 // pred_check
          %p457 = pneg %p197
        $region30: #{mbt_forward.5} parent=11 // pred_check_branch
          %459 = sbr.rel (%p457) target = $region32
        $region31: #{mbt_forward.5} parent=11 // pred_region
          %s461 = ssub.s32 256, 256
          %462 = vsyncadd [#allocation14], %s461
          %s463 = sshll.u32 [#allocation15], 4
          %s464 = int_to_ptr.vmem [resolvable:$true] %s463
          %469 = dma.hbm_to_vmem [thread:$0]  %s6, 256, %s464, [#allocation14], 64, 64, 4
        $region32: #{mbt_forward.5} parent=11 // pred_fallthru
          _
        // Predicated region
        $region33: #{mbt_forward.5} parent=11 // pred_check
          %p470 = pneg %p218
        $region34: #{mbt_forward.5} parent=11 // pred_check_branch
          %472 = sbr.rel (%p470) target = $region36
        $region35: #{mbt_forward.5} parent=11 // pred_region
          %s474 = ssub.s32 16, 16
          %475 = vsyncadd [#allocation17], %s474
          %s477 = sshll.u32 [#allocation16], 4
          %s478 = int_to_ptr.vmem [resolvable:$true] %s477
          %480 = dma.hbm_to_vmem [thread:$0]  %s7, 16, %s478, [#allocation17]
        $region36: #{mbt_forward.5} parent=11 // pred_fallthru
          _
        // Predicated region
        $region37: #{mbt_forward.5} parent=11 // pred_check
          %p481 = pneg %p239
        $region38: #{mbt_forward.5} parent=11 // pred_check_branch
          %483 = sbr.rel (%p481) target = $region40
        $region39: #{mbt_forward.5} parent=11 // pred_region
          %s485 = ssub.s32 16, 16
          %486 = vsyncadd [#allocation17], %s485
          %s488 = sshll.u32 [#allocation18], 4
          %s489 = int_to_ptr.vmem [resolvable:$true] %s488
          %491 = dma.hbm_to_vmem [thread:$0]  %s8, 16, %s489, [#allocation17]
        $region40: #{mbt_forward.5} parent=11 // pred_fallthru
          _
        // Predicated region
        $region41: #{mbt_forward.5} parent=11 // pred_check
          %p492 = pneg %p260
        $region42: #{mbt_forward.5} parent=11 // pred_check_branch
          %494 = sbr.rel (%p492) target = $region44
        $region43: #{mbt_forward.5} parent=11 // pred_region
          %s496 = ssub.s32 16, 16
          %497 = vsyncadd [#allocation20], %s496
          %s499 = sshll.u32 [#allocation19], 4
          %s500 = int_to_ptr.vmem [resolvable:$true] %s499
          %502 = dma.hbm_to_vmem [thread:$0]  %s9, 16, %s500, [#allocation20]
        $region44: #{mbt_forward.5} parent=11 // pred_fallthru
          _
        // Predicated region
        $region45: #{mbt_forward.5} parent=11 // pred_check
          %p503 = pneg %p281
        $region46: #{mbt_forward.5} parent=11 // pred_check_branch
          %505 = sbr.rel (%p503) target = $region48
        $region47: #{mbt_forward.5} parent=11 // pred_region
          %s507 = ssub.s32 256, 256
          %508 = vsyncadd [#allocation20], %s507
          %s509 = sshll.u32 [#allocation21], 4
          %s510 = int_to_ptr.vmem [resolvable:$true] %s509
          %515 = dma.hbm_to_vmem [thread:$0]  %s10, 256, %s510, [#allocation20], 64, 64, 4
        $region48: #{mbt_forward.5} parent=11 // pred_fallthru
          _
        // Predicated region
        $region49: #{mbt_forward.5} parent=11 // pred_check
          %p516 = pneg %p302
        $region50: #{mbt_forward.5} parent=11 // pred_check_branch
          %518 = sbr.rel (%p516) target = $region52
        $region51: #{mbt_forward.5} parent=11 // pred_region
          %s520 = ssub.s32 16, 16
          %521 = vsyncadd [#allocation23], %s520
          %s523 = sshll.u32 [#allocation22], 4
          %s524 = int_to_ptr.vmem [resolvable:$true] %s523
          %526 = dma.hbm_to_vmem [thread:$0]  %s11, 16, %s524, [#allocation23]
        $region52: #{mbt_forward.5} parent=11 // pred_fallthru
          _
        // Predicated region
        $region53: #{mbt_forward.5} parent=11 // pred_check
          %p527 = pneg %p323
        $region54: #{mbt_forward.5} parent=11 // pred_check_branch
          %529 = sbr.rel (%p527) target = $region56
        $region55: #{mbt_forward.5} parent=11 // pred_region
          %s531 = ssub.s32 1024, 1024
          %532 = vsyncadd [#allocation23], %s531
          %s533 = sshll.u32 [#allocation24], 4
          %s534 = int_to_ptr.vmem [resolvable:$true] %s533
          %539 = dma.hbm_to_vmem [thread:$0]  %s12, 1024, %s534, [#allocation23], 64, 64, 4
        $region56: #{mbt_forward.5} parent=11 // pred_fallthru
          _
        // Predicated region
        $region57: #{mbt_forward.5} parent=11 // pred_check
          %p540 = pneg %p344
        $region58: #{mbt_forward.5} parent=11 // pred_check_branch
          %542 = sbr.rel (%p540) target = $region60
        $region59: #{mbt_forward.5} parent=11 // pred_region
          %s544 = ssub.s32 16, 16
          %545 = vsyncadd [#allocation26], %s544
          %s547 = sshll.u32 [#allocation25], 4
          %s548 = int_to_ptr.vmem [resolvable:$true] %s547
          %550 = dma.hbm_to_vmem [thread:$0]  %s13, 16, %s548, [#allocation26]
        $region60: #{mbt_forward.5} parent=11 // pred_fallthru
          _
      $region12: #{mbt_forward.5} parent=5 // pred_fallthru
        _
      %p551 = scmp.lt.s32.totalorder %s40, 2
      // Predicated region
      $region61: #{mbt_forward.5} parent=5 // pred_check
        %p552 = pneg %p551
      $region62: #{mbt_forward.5} parent=5 // pred_check_branch
        %554 = sbr.rel (%p552) target = $region64
      $region63: #{mbt_forward.5} parent=5 // pred_region
        // Predicated region
        $region65: #{mbt_forward.5} parent=63 // pred_check
          %p555 = pneg %p60
        $region66: #{mbt_forward.5} parent=63 // pred_check_branch
          %557 = sbr.rel (%p555) target = $region68
        $region67: #{mbt_forward.5} parent=63 // pred_region
          %s558 = sand.u32 %s50, 1
          %s559 = scalar_lea.sflag [#allocation5], %s558
          %s560 = sand.u32 %s50, 1
          %s561 = smul.addr %s560, 32
          %s562 = scalar_lea.vmem [#allocation4], %s561
          %s563 = smul.u32 2, %s40
          %s565 = ssub.s32 512, 512
          %566 = vsyncadd %s559, %s565
          %s567 = smul.addr %s563, 2
          %s568 = smul.addr %s567, 128
          %s569 = scalar_lea.hbm %s0, %s568
          %s570 = sshll.u32 %s562, 4
          %s571 = int_to_ptr.vmem [resolvable:$true] %s570
          %576 = dma.hbm_to_vmem [thread:$0]  %s569, 512, %s571, %s559, 128, 128, 8
        $region68: #{mbt_forward.5} parent=63 // pred_fallthru
          _
        // Predicated region
        $region69: #{mbt_forward.5} parent=63 // pred_check
          %p577 = pneg %p86
        $region70: #{mbt_forward.5} parent=63 // pred_check_branch
          %579 = sbr.rel (%p577) target = $region72
        $region71: #{mbt_forward.5} parent=63 // pred_region
          %s580 = sand.u32 %s40, 1
          %s581 = scalar_lea.sflag [#allocation8], %s580
          %s582 = sand.u32 %s76, 1
          %s583 = smul.addr %s582, 16
          %s584 = scalar_lea.vmem [#allocation7], %s583
          %s585 = smul.u32 2, %s40
          %s587 = ssub.s32 256, 256
          %588 = vsyncadd %s581, %s587
          %s589 = smul.addr %s585, 128
          %s590 = scalar_lea.hbm %s1, %s589
          %s591 = sshll.u32 %s584, 4
          %s592 = int_to_ptr.vmem [resolvable:$true] %s591
          %597 = dma.hbm_to_vmem [thread:$0]  %s590, 256, %s592, %s581, 128, 128, 8
        $region72: #{mbt_forward.5} parent=63 // pred_fallthru
          _
      $region64: #{mbt_forward.5} parent=5 // pred_fallthru
        _
      %p598 = scmp.le.s32.totalorder 1, %s40
      %p599 = scmp.lt.s32.totalorder %s40, 3
      %p600 = pnand %p598, %p599
      %p601 = pneg %p600
      // Predicated region
      $region73: #{mbt_forward.5} parent=5 // pred_check
        _
      $region74: #{mbt_forward.5} parent=5 // pred_check_branch
        %603 = sbr.rel (%p600) target = $region76
      $region75: #{mbt_forward.5} parent=5 // pred_region
        %s604 = ssub.s32 %s40, 1
        %s605 = sand.u32 %s53, 1
        %s606 = scalar_lea.sflag [#allocation5], %s605
        %s607 = sand.u32 %s53, 1
        %s608 = smul.addr %s607, 32
        %s609 = scalar_lea.vmem [#allocation4], %s608
        // Predicated region
        $region77: #{mbt_forward.5} parent=75 // pred_check
          %p610 = pneg %p66
        $region78: #{mbt_forward.5} parent=75 // pred_check_branch
          %612 = sbr.rel (%p610) target = $region80
        $region79: #{mbt_forward.5} parent=75 // pred_region
          %613 = dma.done %s606, 512
        $region80: #{mbt_forward.5} parent=75 // pred_fallthru
          _
        %s614 = sand.u32 %s45, 1
        %s615 = scalar_lea.sflag [#allocation8], %s614
        %s616 = sand.u32 %s79, 1
        %s617 = smul.addr %s616, 16
        %s618 = scalar_lea.vmem [#allocation7], %s617
        // Predicated region
        $region81: #{mbt_forward.5} parent=75 // pred_check
          %p619 = pneg %p92
        $region82: #{mbt_forward.5} parent=75 // pred_check_branch
          %621 = sbr.rel (%p619) target = $region84
        $region83: #{mbt_forward.5} parent=75 // pred_region
          %622 = dma.done %s615, 256
        $region84: #{mbt_forward.5} parent=75 // pred_fallthru
          _
        // Predicated region
        $region85: #{mbt_forward.5} parent=75 // pred_check
          %p623 = pneg %p113
        $region86: #{mbt_forward.5} parent=75 // pred_check_branch
          %625 = sbr.rel (%p623) target = $region88
        $region87: #{mbt_forward.5} parent=75 // pred_region
          %626 = dma.done [#allocation8], 16
        $region88: #{mbt_forward.5} parent=75 // pred_fallthru
          _
        // Predicated region
        $region89: #{mbt_forward.5} parent=75 // pred_check
          %p627 = pneg %p134
        $region90: #{mbt_forward.5} parent=75 // pred_check_branch
          %629 = sbr.rel (%p627) target = $region92
        $region91: #{mbt_forward.5} parent=75 // pred_region
          %630 = dma.done [#allocation11], 16
        $region92: #{mbt_forward.5} parent=75 // pred_fallthru
          _
        // Predicated region
        $region93: #{mbt_forward.5} parent=75 // pred_check
          %p631 = pneg %p155
        $region94: #{mbt_forward.5} parent=75 // pred_check_branch
          %633 = sbr.rel (%p631) target = $region96
        $region95: #{mbt_forward.5} parent=75 // pred_region
          %634 = dma.done [#allocation11], 16
        $region96: #{mbt_forward.5} parent=75 // pred_fallthru
          _
        // Predicated region
        $region97: #{mbt_forward.5} parent=75 // pred_check
          %p635 = pneg %p176
        $region98: #{mbt_forward.5} parent=75 // pred_check_branch
          %637 = sbr.rel (%p635) target = $region100
        $region99: #{mbt_forward.5} parent=75 // pred_region
          %638 = dma.done [#allocation14], 256
        $region100: #{mbt_forward.5} parent=75 // pred_fallthru
          _
        // Predicated region
        $region101: #{mbt_forward.5} parent=75 // pred_check
          %p639 = pneg %p197
        $region102: #{mbt_forward.5} parent=75 // pred_check_branch
          %641 = sbr.rel (%p639) target = $region104
        $region103: #{mbt_forward.5} parent=75 // pred_region
          %642 = dma.done [#allocation14], 256
        $region104: #{mbt_forward.5} parent=75 // pred_fallthru
          _
        // Predicated region
        $region105: #{mbt_forward.5} parent=75 // pred_check
          %p643 = pneg %p218
        $region106: #{mbt_forward.5} parent=75 // pred_check_branch
          %645 = sbr.rel (%p643) target = $region108
        $region107: #{mbt_forward.5} parent=75 // pred_region
          %646 = dma.done [#allocation17], 16
        $region108: #{mbt_forward.5} parent=75 // pred_fallthru
          _
        // Predicated region
        $region109: #{mbt_forward.5} parent=75 // pred_check
          %p647 = pneg %p239
        $region110: #{mbt_forward.5} parent=75 // pred_check_branch
          %649 = sbr.rel (%p647) target = $region112
        $region111: #{mbt_forward.5} parent=75 // pred_region
          %650 = dma.done [#allocation17], 16
        $region112: #{mbt_forward.5} parent=75 // pred_fallthru
          _
        // Predicated region
        $region113: #{mbt_forward.5} parent=75 // pred_check
          %p651 = pneg %p260
        $region114: #{mbt_forward.5} parent=75 // pred_check_branch
          %653 = sbr.rel (%p651) target = $region116
        $region115: #{mbt_forward.5} parent=75 // pred_region
          %654 = dma.done [#allocation20], 16
        $region116: #{mbt_forward.5} parent=75 // pred_fallthru
          _
        // Predicated region
        $region117: #{mbt_forward.5} parent=75 // pred_check
          %p655 = pneg %p281
        $region118: #{mbt_forward.5} parent=75 // pred_check_branch
          %657 = sbr.rel (%p655) target = $region120
        $region119: #{mbt_forward.5} parent=75 // pred_region
          %658 = dma.done [#allocation20], 256
        $region120: #{mbt_forward.5} parent=75 // pred_fallthru
          _
        // Predicated region
        $region121: #{mbt_forward.5} parent=75 // pred_check
          %p659 = pneg %p302
        $region122: #{mbt_forward.5} parent=75 // pred_check_branch
          %661 = sbr.rel (%p659) target = $region124
        $region123: #{mbt_forward.5} parent=75 // pred_region
          %662 = dma.done [#allocation23], 16
        $region124: #{mbt_forward.5} parent=75 // pred_fallthru
          _
        // Predicated region
        $region125: #{mbt_forward.5} parent=75 // pred_check
          %p663 = pneg %p323
        $region126: #{mbt_forward.5} parent=75 // pred_check_branch
          %665 = sbr.rel (%p663) target = $region128
        $region127: #{mbt_forward.5} parent=75 // pred_region
          %666 = dma.done [#allocation23], 1024
        $region128: #{mbt_forward.5} parent=75 // pred_fallthru
          _
        // Predicated region
        $region129: #{mbt_forward.5} parent=75 // pred_check
          %p667 = pneg %p344
        $region130: #{mbt_forward.5} parent=75 // pred_check_branch
          %669 = sbr.rel (%p667) target = $region132
        $region131: #{mbt_forward.5} parent=75 // pred_region
          %670 = dma.done [#allocation26], 16
        $region132: #{mbt_forward.5} parent=75 // pred_fallthru
          _
        %s671 = sand.u32 %s53, 1
        %s672 = scalar_lea.sflag [#allocation5], %s671
        %s673 = sand.u32 %s53, 1
        %s674 = smul.addr %s673, 32
        %s675 = scalar_lea.vmem [#allocation4], %s674
        %p676 = pneg %p66
        %p677 = pneg %p63
        %s678 = sand.u32 %s45, 1
        %s679 = scalar_lea.sflag [#allocation8], %s678
        %s680 = sand.u32 %s79, 1
        %s681 = smul.addr %s680, 16
        %s682 = scalar_lea.vmem [#allocation7], %s681
        %p683 = pneg %p92
        %p684 = pneg %p89
        %p685 = pneg %p113
        %p686 = pneg %p110
        %p687 = pneg %p134
        %p688 = pneg %p131
        %p689 = pneg %p155
        %p690 = pneg %p152
        %p691 = pneg %p176
        %p692 = pneg %p173
        %p693 = pneg %p197
        %p694 = pneg %p194
        %p695 = pneg %p218
        %p696 = pneg %p215
        %p697 = pneg %p239
        %p698 = pneg %p236
        %p699 = pneg %p260
        %p700 = pneg %p257
        %p701 = pneg %p281
        %p702 = pneg %p278
        %p703 = pneg %p302
        %p704 = pneg %p299
        %p705 = pneg %p323
        %p706 = pneg %p320
        %p707 = pneg %p344
        %p708 = pneg %p341
        %p709 = pneg %p370
        %p710 = pneg %p367
        %s711 = sand.u32 %s357, 1
        %s712 = scalar_lea.sflag [#allocation6], %s711
        %s713 = sand.u32 %s357, 1
        %s714 = smul.addr %s713, 32
        %s715 = scalar_lea.vmem [#allocation27], %s714
        %p716 = pneg %p396
        %p717 = pneg %p393
        %s718 = sand.u32 %s383, 1
        %s719 = scalar_lea.sflag [#allocation29], %s718
        %s720 = sand.u32 %s383, 1
        %s721 = smul.addr %s720, 16
        %s722 = scalar_lea.vmem [#allocation28], %s721
        %s723 = smul.u32 2, %s45
        %s724 = smul.u32 2, %s45
        %s725 = smul.u32 2, %s45
        %s726 = smul.u32 2, %s45
        %v728 = vld [vmem:[%s609] sm:$0xff]
        %v729 = vld [vmem:[%s609 + $0x8] sm:$0xff]
        %vm730 = vcmask 261120
        %731 = vst.msk [vmem:[#allocation2] sm:$0xff] %vm730, %v728
        %732 = vst.msk [vmem:[#allocation2 + $0x8] sm:$0xff] %vm730, %v729
        %v733 = vld [vmem:[%s618] sm:$0xff]
        %734 = vst.msk [vmem:[#allocation2 + $0x10] sm:$0xff] %vm730, %v733
        %s735 = scalar_lea.vmem %s609, 16 [#allocation4]
        %v736 = vld [vmem:[%s735] sm:$0xff]
        %v737 = vld [vmem:[%s735 + $0x8] sm:$0xff]
        %738 = vst.msk [vmem:[#allocation2 + $0x18] sm:$0xff] %vm730, %v736
        %739 = vst.msk [vmem:[#allocation2 + $0x20] sm:$0xff] %vm730, %v737
        %s740 = scalar_lea.vmem %s618, 8 [#allocation7]
        %v741 = vld [vmem:[%s740] sm:$0xff]
        %742 = vst.msk [vmem:[#allocation2 + $0x28] sm:$0xff] %vm730, %v741
        %v743 = vld [vmem:[#allocation2] sm:$0xff]
        %v744 = vld [vmem:[#allocation2 + $0x8] sm:$0xff]
        %v745 = vld [vmem:[#allocation2 + $0x10] sm:$0xff]
        %v746 = vld [vmem:[#allocation2 + $0x18] sm:$0xff]
        %v747 = vld [vmem:[#allocation2 + $0x20] sm:$0xff]
        %v748 = vld [vmem:[#allocation2 + $0x28] sm:$0xff]
        %v749 = vld [vmem:[#allocation10] sm:$0x1]
        %v750 = vld [vmem:[#allocation12] sm:$0x1]
        %v751 = vsel %vm730, %v743, 0.0
        %752 = vadd.xlane.f32.xlu0 %v751
        %v753 = vpop.xlane.xlu0 %752
        %v754 = vsel %vm730, %v744, 0.0
        %755 = vadd.xlane.f32.xlu0 %v754
        %v756 = vpop.xlane.xlu0 %755
        %v757 = vsel %vm730, %v745, 0.0
        %758 = vadd.xlane.f32.xlu0 %v757
        %v759 = vpop.xlane.xlu0 %758
        %v760 = vsel %vm730, %v746, 0.0
        %761 = vadd.xlane.f32.xlu0 %v760
        %v762 = vpop.xlane.xlu0 %761
        %v763 = vsel %vm730, %v747, 0.0
        %764 = vadd.xlane.f32.xlu0 %v763
        %v765 = vpop.xlane.xlu0 %764
        %v766 = vsel %vm730, %v748, 0.0
        %767 = vadd.xlane.f32.xlu0 %v766
        %v768 = vpop.xlane.xlu0 %767
        %v769 = vrcp.pop 32.0
        %v770 = vmul.f32 %v753, %v769
        %v771 = vmul.f32 %v756, %v769
        %v772 = vmul.f32 %v759, %v769
        %v773 = vmul.f32 %v762, %v769
        %v774 = vmul.f32 %v765, %v769
        %v775 = vmul.f32 %v768, %v769
        %v776 = vsub.f32 %v743, %v770
        %v777 = vsub.f32 %v744, %v771
        %v778 = vsub.f32 %v745, %v772
        %v779 = vsub.f32 %v746, %v773
        %v780 = vsub.f32 %v747, %v774
        %v781 = vsub.f32 %v748, %v775
        %v782 = vmul.f32 %v776, %v776
        %v783 = vmul.f32 %v777, %v777
        %v784 = vmul.f32 %v778, %v778
        %v785 = vmul.f32 %v779, %v779
        %v786 = vmul.f32 %v780, %v780
        %v787 = vmul.f32 %v781, %v781
        %v788 = vsel %vm730, %v782, 0.0
        %789 = vadd.xlane.f32.xlu0 %v788
        %v790 = vpop.xlane.xlu0 %789
        %v791 = vsel %vm730, %v783, 0.0
        %792 = vadd.xlane.f32.xlu0 %v791
        %v793 = vpop.xlane.xlu0 %792
        %v794 = vsel %vm730, %v784, 0.0
        %795 = vadd.xlane.f32.xlu0 %v794
        %v796 = vpop.xlane.xlu0 %795
        %v797 = vsel %vm730, %v785, 0.0
        %798 = vadd.xlane.f32.xlu0 %v797
        %v799 = vpop.xlane.xlu0 %798
        %v800 = vsel %vm730, %v786, 0.0
        %801 = vadd.xlane.f32.xlu0 %v800
        %v802 = vpop.xlane.xlu0 %801
        %v803 = vsel %vm730, %v787, 0.0
        %804 = vadd.xlane.f32.xlu0 %v803
        %v805 = vpop.xlane.xlu0 %804
        %v806 = vmul.f32 %v790, %v769
        %v807 = vmul.f32 %v793, %v769
        %v808 = vmul.f32 %v796, %v769
        %v809 = vmul.f32 %v799, %v769
        %v810 = vmul.f32 %v802, %v769
        %v811 = vmul.f32 %v805, %v769
        %v812 = vadd.f32 %v806, 1e-05
        %v813 = vadd.f32 %v807, 1e-05
        %v814 = vadd.f32 %v808, 1e-05
        %v815 = vadd.f32 %v809, 1e-05
        %v816 = vadd.f32 %v810, 1e-05
        %v817 = vadd.f32 %v811, 1e-05
        %v818 = vrsqrt.pop %v812
        %v819 = vrsqrt.pop %v813
        %v820 = vrsqrt.pop %v814
        %v821 = vrsqrt.pop %v815
        %v822 = vrsqrt.pop %v816
        %v823 = vrsqrt.pop %v817
        %v824 = vmul.f32 %v776, %v818
        %v825 = vmul.f32 %v777, %v819
        %v826 = vmul.f32 %v778, %v820
        %v827 = vmul.f32 %v779, %v821
        %v828 = vmul.f32 %v780, %v822
        %v829 = vmul.f32 %v781, %v823
        %v831 = vlaneseq
        %v832 = vshrl.u32 %v831, 7
        %v833 = vsub.s32 0, %v832
        %v834 = vrot.slane %v749, %v833
        %v836 = vmul.f32 %v824, %v834
        %v837 = vmul.f32 %v825, %v834
        %v838 = vmul.f32 %v826, %v834
        %v839 = vmul.f32 %v827, %v834
        %v840 = vmul.f32 %v828, %v834
        %v841 = vmul.f32 %v829, %v834
        %v843 = vlaneseq
        %v844 = vshrl.u32 %v843, 7
        %v845 = vsub.s32 0, %v844
        %v846 = vrot.slane %v750, %v845
        %v848 = vadd.f32 %v836, %v846
        %v849 = vadd.f32 %v837, %v846
        %v850 = vadd.f32 %v838, %v846
        %v851 = vadd.f32 %v839, %v846
        %v852 = vadd.f32 %v840, %v846
        %v853 = vadd.f32 %v841, %v846
        %v854 = vpack.c.bf16 %v849, %v848
        %v855 = vpack.c.bf16 %v851, %v850
        %v856 = vpack.c.bf16 %v853, %v852
        %v857 = vld [vmem:[#allocation13] sm:$0xf]
        %v858 = vld [vmem:[#allocation13 + $0x4] sm:$0xf]
        %v859 = vld [vmem:[#allocation13 + $0x8] sm:$0xf]
        %v860 = vld [vmem:[#allocation13 + $0xc] sm:$0xf]
        %v865 = vunpack.c.l.b16 %v857
        %v866 = vunpack.c.l.b16 %v858
        %v867 = vunpack.c.l.b16 %v859
        %v868 = vunpack.c.l.b16 %v860
        %v869 = vpack.c.b16 %v866, %v865
        %v870 = vpack.c.b16 %v868, %v867
        %v874 = vsel %vm730, %v854, 0
        %v877 = vsel %vm730, %v855, 0
        %v880 = vsel %vm730, %v856, 0
        %882 = vmatprep.subr.bf16.mxu0 0
        %883 = vmatpush1.bf16.msra.mxu0 %v869
        %884 = vmatprep.subr.bf16.mxu0 0
        %885 = vmatpush1.bf16.msra.mxu0 %v870
        %886 = vmatprep.subr.bf16.mxu0 0
        %887 = vmatpush1.bf16.msra.mxu0 0
        %888 = vmatprep.subr.bf16.mxu0 0
        %889 = vmatpush1.bf16.msra.mxu0 0
        %890 = vmatprep.subr.bf16.mxu0 0
        %891 = vmatpush1.bf16.msra.mxu0 0
        %892 = vmatprep.subr.bf16.mxu0 0
        %893 = vmatpush1.bf16.msra.mxu0 0
        %894 = vmatprep.subr.bf16.mxu0 0
        %895 = vmatpush1.bf16.msra.mxu0 0
        %896 = vmatprep.subr.bf16.mxu0 0
        %897 = vmatpush1.bf16.msra.mxu0 0
        %898 = vmatprep.subr.bf16.mxu0 0
        %899 = vmatpush1.bf16.msra.mxu0 0
        %900 = vmatprep.subr.bf16.mxu0 0
        %901 = vmatpush1.bf16.msra.mxu0 0
        %902 = vmatprep.subr.bf16.mxu0 0
        %903 = vmatpush1.bf16.msra.mxu0 0
        %904 = vmatprep.subr.bf16.mxu0 0
        %905 = vmatpush1.bf16.msra.mxu0 0
        %906 = vmatprep.subr.bf16.mxu0 0
        %907 = vmatpush1.bf16.msra.mxu0 0
        %908 = vmatprep.subr.bf16.mxu0 0
        %909 = vmatpush1.bf16.msra.mxu0 0
        %910 = vmatprep.subr.bf16.mxu0 0
        %911 = vmatpush1.bf16.msra.mxu0 0
        %912 = vmatprep.subr.bf16.mxu0 0
        %913 = vmatpush1.bf16.msra.mxu0 0
        %914 = vmatprep.mubr.bf16.mxu0 0
        %915 = vmatmul.mubr.bf16.gmra.mrb[0].mxu0 %v874
        %v916 = vpop.f32.mrb[0].mxu0
        %v917 = vadd.f32 0.0, %v916
        %v918 = vpop.f32.mrb[0].mxu0
        %v919 = vpop.f32.mrb[0].mxu0
        %v920 = vadd.f32 0.0, %v919
        %v921 = vpop.f32.mrb[0].mxu0
        %922 = vmatprep.mubr.bf16.mxu0 0
        %923 = vmatmul.mubr.bf16.gmra.mrb[0].mxu0 %v877
        %v924 = vpop.f32.mrb[0].mxu0
        %v925 = vadd.f32 0.0, %v924
        %v926 = vpop.f32.mrb[0].mxu0
        %v927 = vpop.f32.mrb[0].mxu0
        %v928 = vadd.f32 0.0, %v927
        %v929 = vpop.f32.mrb[0].mxu0
        %930 = vmatprep.mubr.bf16.mxu0 0
        %931 = vmatmul.mubr.bf16.gmra.mrb[0].mxu0 %v880
        %v932 = vpop.f32.mrb[0].mxu0
        %v933 = vadd.f32 0.0, %v932
        %v934 = vpop.f32.mrb[0].mxu0
        %v935 = vpop.f32.mrb[0].mxu0
        %v936 = vadd.f32 0.0, %v935
        %v937 = vpop.f32.mrb[0].mxu0
        %938 = vdwg.mxu0
        %v939 = vld [vmem:[#allocation9] sm:$0x1]
        %v940 = vpack.c.bf16 %v920, %v917
        %v941 = vpack.c.bf16 %v925, %v925
        %v943 = vlaneseq
        %v944 = vshrl.u32 %v943, 7
        %v945 = vsub.s32 0, %v944
        %v946 = vrot.slane %v939, %v945
        %950 = vrot.lane.b32.xlu0 %v940, 96
        %v951 = vpop.permute.xlu0 %950
        %952 = vrot.lane.b32.xlu0 %v941, 96
        %v953 = vpop.permute.xlu0 %952
        %vm954 = vcmask 64512
        %v956 = vsel %vm954, %v940, 0
        %v959 = vsel %vm954, %v941, 0
        %v962 = vsel %vm954, %v951, 0
        %v965 = vsel %vm954, %v953, 0
        %967 = vmatprep.subr.bf16.mxu0 0
        %968 = vmatpush1.bf16.xpose.msra.mxu0 %v962
        %969 = vmatprep.subr.bf16.mxu0 0
        %970 = vmatpush1.bf16.xpose.msra.mxu0 %v965
        %971 = vmatprep.subr.bf16.mxu0 0
        %972 = vmatpush1.bf16.xpose.msra.mxu0 0
        %973 = vmatprep.subr.bf16.mxu0 0
        %974 = vmatpush1.bf16.xpose.msra.mxu0 0
        %975 = vmatprep.subr.bf16.mxu0 0
        %976 = vmatpush1.bf16.xpose.msra.mxu0 0
        %977 = vmatprep.subr.bf16.mxu0 0
        %978 = vmatpush1.bf16.xpose.msra.mxu0 0
        %979 = vmatprep.subr.bf16.mxu0 0
        %980 = vmatpush1.bf16.xpose.msra.mxu0 0
        %981 = vmatprep.subr.bf16.mxu0 0
        %982 = vmatpush1.bf16.xpose.msra.mxu0 0
        %983 = vmatprep.subr.bf16.mxu0 0
        %984 = vmatpush1.bf16.xpose.msra.mxu0 0
        %985 = vmatprep.subr.bf16.mxu0 0
        %986 = vmatpush1.bf16.xpose.msra.mxu0 0
        %987 = vmatprep.subr.bf16.mxu0 0
        %988 = vmatpush1.bf16.xpose.msra.mxu0 0
        %989 = vmatprep.subr.bf16.mxu0 0
        %990 = vmatpush1.bf16.xpose.msra.mxu0 0
        %991 = vmatprep.subr.bf16.mxu0 0
        %992 = vmatpush1.bf16.xpose.msra.mxu0 0
        %993 = vmatprep.subr.bf16.mxu0 0
        %994 = vmatpush1.bf16.xpose.msra.mxu0 0
        %995 = vmatprep.subr.bf16.mxu0 0
        %996 = vmatpush1.bf16.xpose.msra.mxu0 0
        %997 = vmatprep.subr.bf16.mxu0 0
        %998 = vmatpush1.bf16.xpose.msra.mxu0 0
        %999 = vmatprep.mubr.bf16.mxu0 0
        %1000 = vmatmul.mubr.bf16.gmra.mrb[0].mxu0 %v956
        %v1001 = vpop.f32.mrb[0].mxu0
        %v1002 = vadd.f32 %v946, %v1001
        %v1003 = vpop.f32.mrb[0].mxu0
        %v1004 = vpop.f32.mrb[0].mxu0
        %v1005 = vadd.f32 %v946, %v1004
        %v1006 = vpop.f32.mrb[0].mxu0
        %1007 = vmatprep.mubr.bf16.mxu0 0
        %1008 = vmatmul.mubr.bf16.gmra.mrb[0].mxu0 %v959
        %v1009 = vpop.f32.mrb[0].mxu0
        %v1010 = vadd.f32 %v946, %v1009
        %v1011 = vpop.f32.mrb[0].mxu0
        %v1012 = vpop.f32.mrb[0].mxu0
        %v1013 = vpop.f32.mrb[0].mxu0
        %1014 = vdwg.mxu0
        %vm1015 = vcmask 195584
        %v1016 = vsel %vm1015, %v1002, -inf
        %1017 = vmax.xlane.f32.xlu0 %v1016
        %v1018 = vpop.xlane.xlu0 %1017
        %v1019 = vsel %vm1015, %v1005, -inf
        %1020 = vmax.xlane.f32.xlu0 %v1019
        %v1021 = vpop.xlane.xlu0 %1020
        %v1022 = vsel %vm1015, %v1010, -inf
        %1023 = vmax.xlane.f32.xlu0 %v1022
        %v1024 = vpop.xlane.xlu0 %1023
        %v1025 = vsub.f32 %v1002, %v1018
        %v1026 = vsub.f32 %v1005, %v1021
        %v1027 = vsub.f32 %v1010, %v1024
        %v1028 = vmul.f32 %v1025, 1.442695
        %v1029 = vpow.pop %v1028
        %v1030 = vmul.f32 %v1026, 1.442695
        %v1031 = vpow.pop %v1030
        %v1032 = vmul.f32 %v1027, 1.442695
        %v1033 = vpow.pop %v1032
        %v1034 = vsel %vm1015, %v1029, 0.0
        %1035 = vadd.xlane.f32.xlu0 %v1034
        %v1036 = vpop.xlane.xlu0 %1035
        %v1037 = vsel %vm1015, %v1031, 0.0
        %1038 = vadd.xlane.f32.xlu0 %v1037
        %v1039 = vpop.xlane.xlu0 %1038
        %v1040 = vsel %vm1015, %v1033, 0.0
        %1041 = vadd.xlane.f32.xlu0 %v1040
        %v1042 = vpop.xlane.xlu0 %1041
        %v1043 = vrcp.pop %v1036
        %v1044 = vrcp.pop %v1039
        %v1045 = vrcp.pop %v1042
        %v1046 = vmul.f32 %v1029, %v1043
        %v1047 = vmul.f32 %v1031, %v1044
        %v1048 = vmul.f32 %v1033, %v1045
        %v1049 = vpack.c.bf16 %v1047, %v1046
        %v1050 = vpack.c.bf16 %v1048, %v1048
        %1051 = vrot.lane.b32.xlu0 %v940, 64
        %v1052 = vpop.permute.xlu0 %1051
        %1053 = vrot.lane.b32.xlu0 %v941, 64
        %v1054 = vpop.permute.xlu0 %1053
        %v1057 = vsel %vm1015, %v1049, 0
        %v1060 = vsel %vm1015, %v1050, 0
        %vm1062 = vcmask 1043456
        %v1064 = vsel %vm1062, %v1054, 0
        %1066 = vmatprep.subr.bf16.mxu0 0
        %1067 = vmatpush1.bf16.msra.mxu0 %v1052
        %1068 = vmatprep.subr.bf16.mxu0 0
        %1069 = vmatpush1.bf16.msra.mxu0 %v1064
        %1070 = vmatprep.subr.bf16.mxu0 0
        %1071 = vmatpush1.bf16.msra.mxu0 0
        %1072 = vmatprep.subr.bf16.mxu0 0
        %1073 = vmatpush1.bf16.msra.mxu0 0
        %1074 = vmatprep.subr.bf16.mxu0 0
        %1075 = vmatpush1.bf16.msra.mxu0 0
        %1076 = vmatprep.subr.bf16.mxu0 0
        %1077 = vmatpush1.bf16.msra.mxu0 0
        %1078 = vmatprep.subr.bf16.mxu0 0
        %1079 = vmatpush1.bf16.msra.mxu0 0
        %1080 = vmatprep.subr.bf16.mxu0 0
        %1081 = vmatpush1.bf16.msra.mxu0 0
        %1082 = vmatprep.subr.bf16.mxu0 0
        %1083 = vmatpush1.bf16.msra.mxu0 0
        %1084 = vmatprep.subr.bf16.mxu0 0
        %1085 = vmatpush1.bf16.msra.mxu0 0
        %1086 = vmatprep.subr.bf16.mxu0 0
        %1087 = vmatpush1.bf16.msra.mxu0 0
        %1088 = vmatprep.subr.bf16.mxu0 0
        %1089 = vmatpush1.bf16.msra.mxu0 0
        %1090 = vmatprep.subr.bf16.mxu0 0
        %1091 = vmatpush1.bf16.msra.mxu0 0
        %1092 = vmatprep.subr.bf16.mxu0 0
        %1093 = vmatpush1.bf16.msra.mxu0 0
        %1094 = vmatprep.subr.bf16.mxu0 0
        %1095 = vmatpush1.bf16.msra.mxu0 0
        %1096 = vmatprep.subr.bf16.mxu0 0
        %1097 = vmatpush1.bf16.msra.mxu0 0
        %1098 = vmatprep.mubr.bf16.mxu0 0
        %1099 = vmatmul.mubr.bf16.gmra.mrb[0].mxu0 %v1057
        %v1100 = vpop.f32.mrb[0].mxu0
        %v1101 = vadd.f32 0.0, %v1100
        %v1102 = vpop.f32.mrb[0].mxu0
        %v1103 = vpop.f32.mrb[0].mxu0
        %v1104 = vadd.f32 0.0, %v1103
        %v1105 = vpop.f32.mrb[0].mxu0
        %1106 = vmatprep.mubr.bf16.mxu0 0
        %1107 = vmatmul.mubr.bf16.gmra.mrb[0].mxu0 %v1060
        %v1108 = vpop.f32.mrb[0].mxu0
        %v1109 = vadd.f32 0.0, %v1108
        %v1110 = vpop.f32.mrb[0].mxu0
        %v1111 = vpop.f32.mrb[0].mxu0
        %v1112 = vpop.f32.mrb[0].mxu0
        %1113 = vdwg.mxu0
        %v1114 = vpack.c.bf16 %v1104, %v1101
        %v1115 = vpack.c.bf16 %v1109, %v1109
        %v1116 = vld [vmem:[#allocation15] sm:$0xf]
        %1117 = vrot.lane.b32.xlu0 %v940, 120
        %v1118 = vpop.permute.xlu0 %1117
        %1119 = vrot.lane.b32.xlu0 %v941, 120
        %v1120 = vpop.permute.xlu0 %1119
        %1121 = vrot.lane.b32.xlu0 %v940, 88
        %v1122 = vpop.permute.xlu0 %1121
        %1123 = vrot.lane.b32.xlu0 %v941, 88
        %v1124 = vpop.permute.xlu0 %1123
        %v1126 = vsel %vm954, %v1118, 0
        %v1129 = vsel %vm954, %v1120, 0
        %v1132 = vsel %vm954, %v1122, 0
        %v1135 = vsel %vm954, %v1124, 0
        %1137 = vmatprep.subr.bf16.mxu0 0
        %1138 = vmatpush1.bf16.xpose.msra.mxu0 %v1132
        %1139 = vmatprep.subr.bf16.mxu0 0
        %1140 = vmatpush1.bf16.xpose.msra.mxu0 %v1135
        %1141 = vmatprep.subr.bf16.mxu0 0
        %1142 = vmatpush1.bf16.xpose.msra.mxu0 0
        %1143 = vmatprep.subr.bf16.mxu0 0
        %1144 = vmatpush1.bf16.xpose.msra.mxu0 0
        %1145 = vmatprep.subr.bf16.mxu0 0
        %1146 = vmatpush1.bf16.xpose.msra.mxu0 0
        %1147 = vmatprep.subr.bf16.mxu0 0
        %1148 = vmatpush1.bf16.xpose.msra.mxu0 0
        %1149 = vmatprep.subr.bf16.mxu0 0
        %1150 = vmatpush1.bf16.xpose.msra.mxu0 0
        %1151 = vmatprep.subr.bf16.mxu0 0
        %1152 = vmatpush1.bf16.xpose.msra.mxu0 0
        %1153 = vmatprep.subr.bf16.mxu0 0
        %1154 = vmatpush1.bf16.xpose.msra.mxu0 0
        %1155 = vmatprep.subr.bf16.mxu0 0
        %1156 = vmatpush1.bf16.xpose.msra.mxu0 0
        %1157 = vmatprep.subr.bf16.mxu0 0
        %1158 = vmatpush1.bf16.xpose.msra.mxu0 0
        %1159 = vmatprep.subr.bf16.mxu0 0
        %1160 = vmatpush1.bf16.xpose.msra.mxu0 0
        %1161 = vmatprep.subr.bf16.mxu0 0
        %1162 = vmatpush1.bf16.xpose.msra.mxu0 0
        %1163 = vmatprep.subr.bf16.mxu0 0
        %1164 = vmatpush1.bf16.xpose.msra.mxu0 0
        %1165 = vmatprep.subr.bf16.mxu0 0
        %1166 = vmatpush1.bf16.xpose.msra.mxu0 0
        %1167 = vmatprep.subr.bf16.mxu0 0
        %1168 = vmatpush1.bf16.xpose.msra.mxu0 0
        %1169 = vmatprep.mubr.bf16.mxu0 0
        %1170 = vmatmul.mubr.bf16.gmra.mrb[0].mxu0 %v1126
        %v1171 = vpop.f32.mrb[0].mxu0
        %v1172 = vadd.f32 %v946, %v1171
        %v1173 = vpop.f32.mrb[0].mxu0
        %v1174 = vpop.f32.mrb[0].mxu0
        %v1175 = vadd.f32 %v946, %v1174
        %v1176 = vpop.f32.mrb[0].mxu0
        %1177 = vmatprep.mubr.bf16.mxu0 0
        %1178 = vmatmul.mubr.bf16.gmra.mrb[0].mxu0 %v1129
        %v1179 = vpop.f32.mrb[0].mxu0
        %v1180 = vadd.f32 %v946, %v1179
        %v1181 = vpop.f32.mrb[0].mxu0
        %v1182 = vpop.f32.mrb[0].mxu0
        %v1183 = vpop.f32.mrb[0].mxu0
        %1184 = vdwg.mxu0
        %v1185 = vsel %vm1015, %v1172, -inf
        %1186 = vmax.xlane.f32.xlu0 %v1185
        %v1187 = vpop.xlane.xlu0 %1186
        %v1188 = vsel %vm1015, %v1175, -inf
        %1189 = vmax.xlane.f32.xlu0 %v1188
        %v1190 = vpop.xlane.xlu0 %1189
        %v1191 = vsel %vm1015, %v1180, -inf
        %1192 = vmax.xlane.f32.xlu0 %v1191
        %v1193 = vpop.xlane.xlu0 %1192
        %v1194 = vsub.f32 %v1172, %v1187
        %v1195 = vsub.f32 %v1175, %v1190
        %v1196 = vsub.f32 %v1180, %v1193
        %v1197 = vmul.f32 %v1194, 1.442695
        %v1198 = vpow.pop %v1197
        %v1199 = vmul.f32 %v1195, 1.442695
        %v1200 = vpow.pop %v1199
        %v1201 = vmul.f32 %v1196, 1.442695
        %v1202 = vpow.pop %v1201
        %v1203 = vsel %vm1015, %v1198, 0.0
        %1204 = vadd.xlane.f32.xlu0 %v1203
        %v1205 = vpop.xlane.xlu0 %1204
        %v1206 = vsel %vm1015, %v1200, 0.0
        %1207 = vadd.xlane.f32.xlu0 %v1206
        %v1208 = vpop.xlane.xlu0 %1207
        %v1209 = vsel %vm1015, %v1202, 0.0
        %1210 = vadd.xlane.f32.xlu0 %v1209
        %v1211 = vpop.xlane.xlu0 %1210
        %v1212 = vrcp.pop %v1205
        %v1213 = vrcp.pop %v1208
        %v1214 = vrcp.pop %v1211
        %v1215 = vmul.f32 %v1198, %v1212
        %v1216 = vmul.f32 %v1200, %v1213
        %v1217 = vmul.f32 %v1202, %v1214
        %v1218 = vpack.c.bf16 %v1216, %v1215
        %v1219 = vpack.c.bf16 %v1217, %v1217
        %1220 = vrot.lane.b32.xlu0 %v940, 56
        %v1221 = vpop.permute.xlu0 %1220
        %1222 = vrot.lane.b32.xlu0 %v941, 56
        %v1223 = vpop.permute.xlu0 %1222
        %v1226 = vsel %vm1015, %v1218, 0
        %v1229 = vsel %vm1015, %v1219, 0
        %v1232 = vsel %vm1062, %v1223, 0
        %1234 = vmatprep.subr.bf16.mxu0 0
        %1235 = vmatpush1.bf16.msra.mxu0 %v1221
        %1236 = vmatprep.subr.bf16.mxu0 0
        %1237 = vmatpush1.bf16.msra.mxu0 %v1232
        %1238 = vmatprep.subr.bf16.mxu0 0
        %1239 = vmatpush1.bf16.msra.mxu0 0
        %1240 = vmatprep.subr.bf16.mxu0 0
        %1241 = vmatpush1.bf16.msra.mxu0 0
        %1242 = vmatprep.subr.bf16.mxu0 0
        %1243 = vmatpush1.bf16.msra.mxu0 0
        %1244 = vmatprep.subr.bf16.mxu0 0
        %1245 = vmatpush1.bf16.msra.mxu0 0
        %1246 = vmatprep.subr.bf16.mxu0 0
        %1247 = vmatpush1.bf16.msra.mxu0 0
        %1248 = vmatprep.subr.bf16.mxu0 0
        %1249 = vmatpush1.bf16.msra.mxu0 0
        %1250 = vmatprep.subr.bf16.mxu0 0
        %1251 = vmatpush1.bf16.msra.mxu0 0
        %1252 = vmatprep.subr.bf16.mxu0 0
        %1253 = vmatpush1.bf16.msra.mxu0 0
        %1254 = vmatprep.subr.bf16.mxu0 0
        %1255 = vmatpush1.bf16.msra.mxu0 0
        %1256 = vmatprep.subr.bf16.mxu0 0
        %1257 = vmatpush1.bf16.msra.mxu0 0
        %1258 = vmatprep.subr.bf16.mxu0 0
        %1259 = vmatpush1.bf16.msra.mxu0 0
        %1260 = vmatprep.subr.bf16.mxu0 0
        %1261 = vmatpush1.bf16.msra.mxu0 0
        %1262 = vmatprep.subr.bf16.mxu0 0
        %1263 = vmatpush1.bf16.msra.mxu0 0
        %1264 = vmatprep.subr.bf16.mxu0 0
        %1265 = vmatpush1.bf16.msra.mxu0 0
        %1266 = vmatprep.mubr.bf16.mxu0 0
        %1267 = vmatmul.mubr.bf16.gmra.mrb[0].mxu0 %v1226
        %v1268 = vpop.f32.mrb[0].mxu0
        %v1269 = vadd.f32 0.0, %v1268
        %v1270 = vpop.f32.mrb[0].mxu0
        %v1271 = vpop.f32.mrb[0].mxu0
        %v1272 = vadd.f32 0.0, %v1271
        %v1273 = vpop.f32.mrb[0].mxu0
        %1274 = vmatprep.mubr.bf16.mxu0 0
        %1275 = vmatmul.mubr.bf16.gmra.mrb[0].mxu0 %v1229
        %v1276 = vpop.f32.mrb[0].mxu0
        %v1277 = vadd.f32 0.0, %v1276
        %v1278 = vpop.f32.mrb[0].mxu0
        %v1279 = vpop.f32.mrb[0].mxu0
        %v1280 = vpop.f32.mrb[0].mxu0
        %1281 = vdwg.mxu0
        %v1282 = vpack.c.bf16 %v1272, %v1269
        %v1283 = vpack.c.bf16 %v1277, %v1277
        %v1284 = vld [vmem:[#allocation15 + $0x4] sm:$0xf]
        %v1286 = vsel %vm954, %v1282, 0
        %v1289 = vsel %vm954, %v1283, 0
        %v1292 = vsel %vm1062, %v1284, 0
        %1294 = vmatprep.subr.bf16.mxu0 0
        %1295 = vmatpush1.bf16.msra.mxu0 %v1292
        %1296 = vmatprep.subr.bf16.mxu0 0
        %1297 = vmatpush1.bf16.msra.mxu0 0
        %1298 = vmatprep.subr.bf16.mxu0 0
        %1299 = vmatpush1.bf16.msra.mxu0 0
        %1300 = vmatprep.subr.bf16.mxu0 0
        %1301 = vmatpush1.bf16.msra.mxu0 0
        %1302 = vmatprep.subr.bf16.mxu0 0
        %1303 = vmatpush1.bf16.msra.mxu0 0
        %1304 = vmatprep.subr.bf16.mxu0 0
        %1305 = vmatpush1.bf16.msra.mxu0 0
        %1306 = vmatprep.subr.bf16.mxu0 0
        %1307 = vmatpush1.bf16.msra.mxu0 0
        %1308 = vmatprep.subr.bf16.mxu0 0
        %1309 = vmatpush1.bf16.msra.mxu0 0
        %1310 = vmatprep.subr.bf16.mxu0 0
        %1311 = vmatpush1.bf16.msra.mxu0 0
        %1312 = vmatprep.subr.bf16.mxu0 0
        %1313 = vmatpush1.bf16.msra.mxu0 0
        %1314 = vmatprep.subr.bf16.mxu0 0
        %1315 = vmatpush1.bf16.msra.mxu0 0
        %1316 = vmatprep.subr.bf16.mxu0 0
        %1317 = vmatpush1.bf16.msra.mxu0 0
        %1318 = vmatprep.subr.bf16.mxu0 0
        %1319 = vmatpush1.bf16.msra.mxu0 0
        %1320 = vmatprep.subr.bf16.mxu0 0
        %1321 = vmatpush1.bf16.msra.mxu0 0
        %1322 = vmatprep.subr.bf16.mxu0 0
        %1323 = vmatpush1.bf16.msra.mxu0 0
        %1324 = vmatprep.subr.bf16.mxu0 0
        %1325 = vmatpush1.bf16.msra.mxu0 0
        %1326 = vmatprep.mubr.bf16.mxu0 0
        %1327 = vmatmul.mubr.bf16.gmra.mrb[0].mxu0 %v1286
        %v1328 = vpop.f32.mrb[0].mxu0
        %v1329 = vadd.f32 0.0, %v1328
        %v1330 = vpop.f32.mrb[0].mxu0
        %v1331 = vpop.f32.mrb[0].mxu0
        %v1332 = vadd.f32 0.0, %v1331
        %v1333 = vpop.f32.mrb[0].mxu0
        %1334 = vmatprep.mubr.bf16.mxu0 0
        %1335 = vmatmul.mubr.bf16.gmra.mrb[0].mxu0 %v1289
        %v1336 = vpop.f32.mrb[0].mxu0
        %v1337 = vadd.f32 0.0, %v1336
        %v1338 = vpop.f32.mrb[0].mxu0
        %v1339 = vpop.f32.mrb[0].mxu0
        %v1340 = vpop.f32.mrb[0].mxu0
        %1341 = vdwg.mxu0
        %v1343 = vsel %vm954, %v1114, 0
        %v1346 = vsel %vm954, %v1115, 0
        %v1349 = vsel %vm1062, %v1116, 0
        %1351 = vmatprep.subr.bf16.mxu0 0
        %1352 = vmatpush1.bf16.msra.mxu0 %v1349
        %1353 = vmatprep.subr.bf16.mxu0 0
        %1354 = vmatpush1.bf16.msra.mxu0 0
        %1355 = vmatprep.subr.bf16.mxu0 0
        %1356 = vmatpush1.bf16.msra.mxu0 0
        %1357 = vmatprep.subr.bf16.mxu0 0
        %1358 = vmatpush1.bf16.msra.mxu0 0
        %1359 = vmatprep.subr.bf16.mxu0 0
        %1360 = vmatpush1.bf16.msra.mxu0 0
        %1361 = vmatprep.subr.bf16.mxu0 0
        %1362 = vmatpush1.bf16.msra.mxu0 0
        %1363 = vmatprep.subr.bf16.mxu0 0
        %1364 = vmatpush1.bf16.msra.mxu0 0
        %1365 = vmatprep.subr.bf16.mxu0 0
        %1366 = vmatpush1.bf16.msra.mxu0 0
        %1367 = vmatprep.subr.bf16.mxu0 0
        %1368 = vmatpush1.bf16.msra.mxu0 0
        %1369 = vmatprep.subr.bf16.mxu0 0
        %1370 = vmatpush1.bf16.msra.mxu0 0
        %1371 = vmatprep.subr.bf16.mxu0 0
        %1372 = vmatpush1.bf16.msra.mxu0 0
        %1373 = vmatprep.subr.bf16.mxu0 0
        %1374 = vmatpush1.bf16.msra.mxu0 0
        %1375 = vmatprep.subr.bf16.mxu0 0
        %1376 = vmatpush1.bf16.msra.mxu0 0
        %1377 = vmatprep.subr.bf16.mxu0 0
        %1378 = vmatpush1.bf16.msra.mxu0 0
        %1379 = vmatprep.subr.bf16.mxu0 0
        %1380 = vmatpush1.bf16.msra.mxu0 0
        %1381 = vmatprep.subr.bf16.mxu0 0
        %1382 = vmatpush1.bf16.msra.mxu0 0
        %1383 = vmatprep.mubr.bf16.mxu0 0
        %1384 = vmatmul.mubr.bf16.gmra.mrb[0].mxu0 %v1343
        %v1385 = vpop.f32.mrb[0].mxu0
        %v1386 = vadd.f32 %v1329, %v1385
        %v1387 = vpop.f32.mrb[0].mxu0
        %v1388 = vpop.f32.mrb[0].mxu0
        %v1389 = vadd.f32 %v1332, %v1388
        %v1390 = vpop.f32.mrb[0].mxu0
        %1391 = vmatprep.mubr.bf16.mxu0 0
        %1392 = vmatmul.mubr.bf16.gmra.mrb[0].mxu0 %v1346
        %v1393 = vpop.f32.mrb[0].mxu0
        %v1394 = vadd.f32 %v1337, %v1393
        %v1395 = vpop.f32.mrb[0].mxu0
        %v1396 = vpop.f32.mrb[0].mxu0
        %v1397 = vpop.f32.mrb[0].mxu0
        %1398 = vdwg.mxu0
        %1399 = vrot.lane.b32.xlu0 %v940, 112
        %v1400 = vpop.permute.xlu0 %1399
        %1401 = vrot.lane.b32.xlu0 %v941, 112
        %v1402 = vpop.permute.xlu0 %1401
        %1403 = vrot.lane.b32.xlu0 %v940, 80
        %v1404 = vpop.permute.xlu0 %1403
        %1405 = vrot.lane.b32.xlu0 %v941, 80
        %v1406 = vpop.permute.xlu0 %1405
        %v1408 = vsel %vm954, %v1400, 0
        %v1411 = vsel %vm954, %v1402, 0
        %v1414 = vsel %vm954, %v1404, 0
        %v1417 = vsel %vm954, %v1406, 0
        %1419 = vmatprep.subr.bf16.mxu0 0
        %1420 = vmatpush1.bf16.xpose.msra.mxu0 %v1414
        %1421 = vmatprep.subr.bf16.mxu0 0
        %1422 = vmatpush1.bf16.xpose.msra.mxu0 %v1417
        %1423 = vmatprep.subr.bf16.mxu0 0
        %1424 = vmatpush1.bf16.xpose.msra.mxu0 0
        %1425 = vmatprep.subr.bf16.mxu0 0
        %1426 = vmatpush1.bf16.xpose.msra.mxu0 0
        %1427 = vmatprep.subr.bf16.mxu0 0
        %1428 = vmatpush1.bf16.xpose.msra.mxu0 0
        %1429 = vmatprep.subr.bf16.mxu0 0
        %1430 = vmatpush1.bf16.xpose.msra.mxu0 0
        %1431 = vmatprep.subr.bf16.mxu0 0
        %1432 = vmatpush1.bf16.xpose.msra.mxu0 0
        %1433 = vmatprep.subr.bf16.mxu0 0
        %1434 = vmatpush1.bf16.xpose.msra.mxu0 0
        %1435 = vmatprep.subr.bf16.mxu0 0
        %1436 = vmatpush1.bf16.xpose.msra.mxu0 0
        %1437 = vmatprep.subr.bf16.mxu0 0
        %1438 = vmatpush1.bf16.xpose.msra.mxu0 0
        %1439 = vmatprep.subr.bf16.mxu0 0
        %1440 = vmatpush1.bf16.xpose.msra.mxu0 0
        %1441 = vmatprep.subr.bf16.mxu0 0
        %1442 = vmatpush1.bf16.xpose.msra.mxu0 0
        %1443 = vmatprep.subr.bf16.mxu0 0
        %1444 = vmatpush1.bf16.xpose.msra.mxu0 0
        %1445 = vmatprep.subr.bf16.mxu0 0
        %1446 = vmatpush1.bf16.xpose.msra.mxu0 0
        %1447 = vmatprep.subr.bf16.mxu0 0
        %1448 = vmatpush1.bf16.xpose.msra.mxu0 0
        %1449 = vmatprep.subr.bf16.mxu0 0
        %1450 = vmatpush1.bf16.xpose.msra.mxu0 0
        %1451 = vmatprep.mubr.bf16.mxu0 0
        %1452 = vmatmul.mubr.bf16.gmra.mrb[0].mxu0 %v1408
        %v1453 = vpop.f32.mrb[0].mxu0
        %v1454 = vadd.f32 %v946, %v1453
        %v1455 = vpop.f32.mrb[0].mxu0
        %v1456 = vpop.f32.mrb[0].mxu0
        %v1457 = vadd.f32 %v946, %v1456
        %v1458 = vpop.f32.mrb[0].mxu0
        %1459 = vmatprep.mubr.bf16.mxu0 0
        %1460 = vmatmul.mubr.bf16.gmra.mrb[0].mxu0 %v1411
        %v1461 = vpop.f32.mrb[0].mxu0
        %v1462 = vadd.f32 %v946, %v1461
        %v1463 = vpop.f32.mrb[0].mxu0
        %v1464 = vpop.f32.mrb[0].mxu0
        %v1465 = vpop.f32.mrb[0].mxu0
        %1466 = vdwg.mxu0
        %v1467 = vsel %vm1015, %v1454, -inf
        %1468 = vmax.xlane.f32.xlu0 %v1467
        %v1469 = vpop.xlane.xlu0 %1468
        %v1470 = vsel %vm1015, %v1457, -inf
        %1471 = vmax.xlane.f32.xlu0 %v1470
        %v1472 = vpop.xlane.xlu0 %1471
        %v1473 = vsel %vm1015, %v1462, -inf
        %1474 = vmax.xlane.f32.xlu0 %v1473
        %v1475 = vpop.xlane.xlu0 %1474
        %v1476 = vsub.f32 %v1454, %v1469
        %v1477 = vsub.f32 %v1457, %v1472
        %v1478 = vsub.f32 %v1462, %v1475
        %v1479 = vmul.f32 %v1476, 1.442695
        %v1480 = vpow.pop %v1479
        %v1481 = vmul.f32 %v1477, 1.442695
        %v1482 = vpow.pop %v1481
        %v1483 = vmul.f32 %v1478, 1.442695
        %v1484 = vpow.pop %v1483
        %v1485 = vsel %vm1015, %v1480, 0.0
        %1486 = vadd.xlane.f32.xlu0 %v1485
        %v1487 = vpop.xlane.xlu0 %1486
        %v1488 = vsel %vm1015, %v1482, 0.0
        %1489 = vadd.xlane.f32.xlu0 %v1488
        %v1490 = vpop.xlane.xlu0 %1489
        %v1491 = vsel %vm1015, %v1484, 0.0
        %1492 = vadd.xlane.f32.xlu0 %v1491
        %v1493 = vpop.xlane.xlu0 %1492
        %v1494 = vrcp.pop %v1487
        %v1495 = vrcp.pop %v1490
        %v1496 = vrcp.pop %v1493
        %v1497 = vmul.f32 %v1480, %v1494
        %v1498 = vmul.f32 %v1482, %v1495
        %v1499 = vmul.f32 %v1484, %v1496
        %v1500 = vpack.c.bf16 %v1498, %v1497
        %v1501 = vpack.c.bf16 %v1499, %v1499
        %1502 = vrot.lane.b32.xlu0 %v940, 48
        %v1503 = vpop.permute.xlu0 %1502
        %1504 = vrot.lane.b32.xlu0 %v941, 48
        %v1505 = vpop.permute.xlu0 %1504
        %v1508 = vsel %vm1015, %v1500, 0
        %v1511 = vsel %vm1015, %v1501, 0
        %v1514 = vsel %vm1062, %v1505, 0
        %1516 = vmatprep.subr.bf16.mxu0 0
        %1517 = vmatpush1.bf16.msra.mxu0 %v1503
        %1518 = vmatprep.subr.bf16.mxu0 0
        %1519 = vmatpush1.bf16.msra.mxu0 %v1514
        %1520 = vmatprep.subr.bf16.mxu0 0
        %1521 = vmatpush1.bf16.msra.mxu0 0
        %1522 = vmatprep.subr.bf16.mxu0 0
        %1523 = vmatpush1.bf16.msra.mxu0 0
        %1524 = vmatprep.subr.bf16.mxu0 0
        %1525 = vmatpush1.bf16.msra.mxu0 0
        %1526 = vmatprep.subr.bf16.mxu0 0
        %1527 = vmatpush1.bf16.msra.mxu0 0
        %1528 = vmatprep.subr.bf16.mxu0 0
        %1529 = vmatpush1.bf16.msra.mxu0 0
        %1530 = vmatprep.subr.bf16.mxu0 0
        %1531 = vmatpush1.bf16.msra.mxu0 0
        %1532 = vmatprep.subr.bf16.mxu0 0
        %1533 = vmatpush1.bf16.msra.mxu0 0
        %1534 = vmatprep.subr.bf16.mxu0 0
        %1535 = vmatpush1.bf16.msra.mxu0 0
        %1536 = vmatprep.subr.bf16.mxu0 0
        %1537 = vmatpush1.bf16.msra.mxu0 0
        %1538 = vmatprep.subr.bf16.mxu0 0
        %1539 = vmatpush1.bf16.msra.mxu0 0
        %1540 = vmatprep.subr.bf16.mxu0 0
        %1541 = vmatpush1.bf16.msra.mxu0 0
        %1542 = vmatprep.subr.bf16.mxu0 0
        %1543 = vmatpush1.bf16.msra.mxu0 0
        %1544 = vmatprep.subr.bf16.mxu0 0
        %1545 = vmatpush1.bf16.msra.mxu0 0
        %1546 = vmatprep.subr.bf16.mxu0 0
        %1547 = vmatpush1.bf16.msra.mxu0 0
        %1548 = vmatprep.mubr.bf16.mxu0 0
        %1549 = vmatmul.mubr.bf16.gmra.mrb[0].mxu0 %v1508
        %v1550 = vpop.f32.mrb[0].mxu0
        %v1551 = vadd.f32 0.0, %v1550
        %v1552 = vpop.f32.mrb[0].mxu0
        %v1553 = vpop.f32.mrb[0].mxu0
        %v1554 = vadd.f32 0.0, %v1553
        %v1555 = vpop.f32.mrb[0].mxu0
        %1556 = vmatprep.mubr.bf16.mxu0 0
        %1557 = vmatmul.mubr.bf16.gmra.mrb[0].mxu0 %v1511
        %v1558 = vpop.f32.mrb[0].mxu0
        %v1559 = vadd.f32 0.0, %v1558
        %v1560 = vpop.f32.mrb[0].mxu0
        %v1561 = vpop.f32.mrb[0].mxu0
        %v1562 = vpop.f32.mrb[0].mxu0
        %1563 = vdwg.mxu0
        %v1564 = vpack.c.bf16 %v1554, %v1551
        %v1565 = vpack.c.bf16 %v1559, %v1559
        %v1566 = vld [vmem:[#allocation15 + $0x8] sm:$0xf]
        %v1568 = vsel %vm954, %v1564, 0
        %v1571 = vsel %vm954, %v1565, 0
        %v1574 = vsel %vm1062, %v1566, 0
        %1576 = vmatprep.subr.bf16.mxu0 0
        %1577 = vmatpush1.bf16.msra.mxu0 %v1574
        %1578 = vmatprep.subr.bf16.mxu0 0
        %1579 = vmatpush1.bf16.msra.mxu0 0
        %1580 = vmatprep.subr.bf16.mxu0 0
        %1581 = vmatpush1.bf16.msra.mxu0 0
        %1582 = vmatprep.subr.bf16.mxu0 0
        %1583 = vmatpush1.bf16.msra.mxu0 0
        %1584 = vmatprep.subr.bf16.mxu0 0
        %1585 = vmatpush1.bf16.msra.mxu0 0
        %1586 = vmatprep.subr.bf16.mxu0 0
        %1587 = vmatpush1.bf16.msra.mxu0 0
        %1588 = vmatprep.subr.bf16.mxu0 0
        %1589 = vmatpush1.bf16.msra.mxu0 0
        %1590 = vmatprep.subr.bf16.mxu0 0
        %1591 = vmatpush1.bf16.msra.mxu0 0
        %1592 = vmatprep.subr.bf16.mxu0 0
        %1593 = vmatpush1.bf16.msra.mxu0 0
        %1594 = vmatprep.subr.bf16.mxu0 0
        %1595 = vmatpush1.bf16.msra.mxu0 0
        %1596 = vmatprep.subr.bf16.mxu0 0
        %1597 = vmatpush1.bf16.msra.mxu0 0
        %1598 = vmatprep.subr.bf16.mxu0 0
        %1599 = vmatpush1.bf16.msra.mxu0 0
        %1600 = vmatprep.subr.bf16.mxu0 0
        %1601 = vmatpush1.bf16.msra.mxu0 0
        %1602 = vmatprep.subr.bf16.mxu0 0
        %1603 = vmatpush1.bf16.msra.mxu0 0
        %1604 = vmatprep.subr.bf16.mxu0 0
        %1605 = vmatpush1.bf16.msra.mxu0 0
        %1606 = vmatprep.subr.bf16.mxu0 0
        %1607 = vmatpush1.bf16.msra.mxu0 0
        %1608 = vmatprep.mubr.bf16.mxu0 0
        %1609 = vmatmul.mubr.bf16.gmra.mrb[0].mxu0 %v1568
        %v1610 = vpop.f32.mrb[0].mxu0
        %v1611 = vadd.f32 0.0, %v1610
        %v1612 = vpop.f32.mrb[0].mxu0
        %v1613 = vpop.f32.mrb[0].mxu0
        %v1614 = vadd.f32 0.0, %v1613
        %v1615 = vpop.f32.mrb[0].mxu0
        %1616 = vmatprep.mubr.bf16.mxu0 0
        %1617 = vmatmul.mubr.bf16.gmra.mrb[0].mxu0 %v1571
        %v1618 = vpop.f32.mrb[0].mxu0
        %v1619 = vadd.f32 0.0, %v1618
        %v1620 = vpop.f32.mrb[0].mxu0
        %v1621 = vpop.f32.mrb[0].mxu0
        %v1622 = vpop.f32.mrb[0].mxu0
        %1623 = vdwg.mxu0
        %v1624 = vadd.f32 %v1386, %v1611
        %v1625 = vadd.f32 %v1389, %v1614
        %v1626 = vadd.f32 %v1394, %v1619
        %1627 = vrot.lane.b32.xlu0 %v940, 104
        %v1628 = vpop.permute.xlu0 %1627
        %1629 = vrot.lane.b32.xlu0 %v941, 104
        %v1630 = vpop.permute.xlu0 %1629
        %1631 = vrot.lane.b32.xlu0 %v940, 72
        %v1632 = vpop.permute.xlu0 %1631
        %1633 = vrot.lane.b32.xlu0 %v941, 72
        %v1634 = vpop.permute.xlu0 %1633
        %v1636 = vsel %vm954, %v1628, 0
        %v1639 = vsel %vm954, %v1630, 0
        %v1642 = vsel %vm954, %v1632, 0
        %v1645 = vsel %vm954, %v1634, 0
        %1647 = vmatprep.subr.bf16.mxu0 0
        %1648 = vmatpush1.bf16.xpose.msra.mxu0 %v1642
        %1649 = vmatprep.subr.bf16.mxu0 0
        %1650 = vmatpush1.bf16.xpose.msra.mxu0 %v1645
        %1651 = vmatprep.subr.bf16.mxu0 0
        %1652 = vmatpush1.bf16.xpose.msra.mxu0 0
        %1653 = vmatprep.subr.bf16.mxu0 0
        %1654 = vmatpush1.bf16.xpose.msra.mxu0 0
        %1655 = vmatprep.subr.bf16.mxu0 0
        %1656 = vmatpush1.bf16.xpose.msra.mxu0 0
        %1657 = vmatprep.subr.bf16.mxu0 0
        %1658 = vmatpush1.bf16.xpose.msra.mxu0 0
        %1659 = vmatprep.subr.bf16.mxu0 0
        %1660 = vmatpush1.bf16.xpose.msra.mxu0 0
        %1661 = vmatprep.subr.bf16.mxu0 0
        %1662 = vmatpush1.bf16.xpose.msra.mxu0 0
        %1663 = vmatprep.subr.bf16.mxu0 0
        %1664 = vmatpush1.bf16.xpose.msra.mxu0 0
        %1665 = vmatprep.subr.bf16.mxu0 0
        %1666 = vmatpush1.bf16.xpose.msra.mxu0 0
        %1667 = vmatprep.subr.bf16.mxu0 0
        %1668 = vmatpush1.bf16.xpose.msra.mxu0 0
        %1669 = vmatprep.subr.bf16.mxu0 0
        %1670 = vmatpush1.bf16.xpose.msra.mxu0 0
        %1671 = vmatprep.subr.bf16.mxu0 0
        %1672 = vmatpush1.bf16.xpose.msra.mxu0 0
        %1673 = vmatprep.subr.bf16.mxu0 0
        %1674 = vmatpush1.bf16.xpose.msra.mxu0 0
        %1675 = vmatprep.subr.bf16.mxu0 0
        %1676 = vmatpush1.bf16.xpose.msra.mxu0 0
        %1677 = vmatprep.subr.bf16.mxu0 0
        %1678 = vmatpush1.bf16.xpose.msra.mxu0 0
        %1679 = vmatprep.mubr.bf16.mxu0 0
        %1680 = vmatmul.mubr.bf16.gmra.mrb[0].mxu0 %v1636
        %v1681 = vpop.f32.mrb[0].mxu0
        %v1682 = vadd.f32 %v946, %v1681
        %v1683 = vpop.f32.mrb[0].mxu0
        %v1684 = vpop.f32.mrb[0].mxu0
        %v1685 = vadd.f32 %v946, %v1684
        %v1686 = vpop.f32.mrb[0].mxu0
        %1687 = vmatprep.mubr.bf16.mxu0 0
        %1688 = vmatmul.mubr.bf16.gmra.mrb[0].mxu0 %v1639
        %v1689 = vpop.f32.mrb[0].mxu0
        %v1690 = vadd.f32 %v946, %v1689
        %v1691 = vpop.f32.mrb[0].mxu0
        %v1692 = vpop.f32.mrb[0].mxu0
        %v1693 = vpop.f32.mrb[0].mxu0
        %1694 = vdwg.mxu0
        %v1695 = vsel %vm1015, %v1682, -inf
        %1696 = vmax.xlane.f32.xlu0 %v1695
        %v1697 = vpop.xlane.xlu0 %1696
        %v1698 = vsel %vm1015, %v1685, -inf
        %1699 = vmax.xlane.f32.xlu0 %v1698
        %v1700 = vpop.xlane.xlu0 %1699
        %v1701 = vsel %vm1015, %v1690, -inf
        %1702 = vmax.xlane.f32.xlu0 %v1701
        %v1703 = vpop.xlane.xlu0 %1702
        %v1704 = vsub.f32 %v1682, %v1697
        %v1705 = vsub.f32 %v1685, %v1700
        %v1706 = vsub.f32 %v1690, %v1703
        %v1707 = vmul.f32 %v1704, 1.442695
        %v1708 = vpow.pop %v1707
        %v1709 = vmul.f32 %v1705, 1.442695
        %v1710 = vpow.pop %v1709
        %v1711 = vmul.f32 %v1706, 1.442695
        %v1712 = vpow.pop %v1711
        %v1713 = vsel %vm1015, %v1708, 0.0
        %1714 = vadd.xlane.f32.xlu0 %v1713
        %v1715 = vpop.xlane.xlu0 %1714
        %v1716 = vsel %vm1015, %v1710, 0.0
        %1717 = vadd.xlane.f32.xlu0 %v1716
        %v1718 = vpop.xlane.xlu0 %1717
        %v1719 = vsel %vm1015, %v1712, 0.0
        %1720 = vadd.xlane.f32.xlu0 %v1719
        %v1721 = vpop.xlane.xlu0 %1720
        %v1722 = vrcp.pop %v1715
        %v1723 = vrcp.pop %v1718
        %v1724 = vrcp.pop %v1721
        %v1725 = vmul.f32 %v1708, %v1722
        %v1726 = vmul.f32 %v1710, %v1723
        %v1727 = vmul.f32 %v1712, %v1724
        %v1728 = vpack.c.bf16 %v1726, %v1725
        %v1729 = vpack.c.bf16 %v1727, %v1727
        %1730 = vrot.lane.b32.xlu0 %v940, 40
        %v1731 = vpop.permute.xlu0 %1730
        %1732 = vrot.lane.b32.xlu0 %v941, 40
        %v1733 = vpop.permute.xlu0 %1732
        %v1736 = vsel %vm1015, %v1728, 0
        %v1739 = vsel %vm1015, %v1729, 0
        %v1742 = vsel %vm1062, %v1733, 0
        %1744 = vmatprep.subr.bf16.mxu0 0
        %1745 = vmatpush1.bf16.msra.mxu0 %v1731
        %1746 = vmatprep.subr.bf16.mxu0 0
        %1747 = vmatpush1.bf16.msra.mxu0 %v1742
        %1748 = vmatprep.subr.bf16.mxu0 0
        %1749 = vmatpush1.bf16.msra.mxu0 0
        %1750 = vmatprep.subr.bf16.mxu0 0
        %1751 = vmatpush1.bf16.msra.mxu0 0
        %1752 = vmatprep.subr.bf16.mxu0 0
        %1753 = vmatpush1.bf16.msra.mxu0 0
        %1754 = vmatprep.subr.bf16.mxu0 0
        %1755 = vmatpush1.bf16.msra.mxu0 0
        %1756 = vmatprep.subr.bf16.mxu0 0
        %1757 = vmatpush1.bf16.msra.mxu0 0
        %1758 = vmatprep.subr.bf16.mxu0 0
        %1759 = vmatpush1.bf16.msra.mxu0 0
        %1760 = vmatprep.subr.bf16.mxu0 0
        %1761 = vmatpush1.bf16.msra.mxu0 0
        %1762 = vmatprep.subr.bf16.mxu0 0
        %1763 = vmatpush1.bf16.msra.mxu0 0
        %1764 = vmatprep.subr.bf16.mxu0 0
        %1765 = vmatpush1.bf16.msra.mxu0 0
        %1766 = vmatprep.subr.bf16.mxu0 0
        %1767 = vmatpush1.bf16.msra.mxu0 0
        %1768 = vmatprep.subr.bf16.mxu0 0
        %1769 = vmatpush1.bf16.msra.mxu0 0
        %1770 = vmatprep.subr.bf16.mxu0 0
        %1771 = vmatpush1.bf16.msra.mxu0 0
        %1772 = vmatprep.subr.bf16.mxu0 0
        %1773 = vmatpush1.bf16.msra.mxu0 0
        %1774 = vmatprep.subr.bf16.mxu0 0
        %1775 = vmatpush1.bf16.msra.mxu0 0
        %1776 = vmatprep.mubr.bf16.mxu0 0
        %1777 = vmatmul.mubr.bf16.gmra.mrb[0].mxu0 %v1736
        %v1778 = vpop.f32.mrb[0].mxu0
        %v1779 = vadd.f32 0.0, %v1778
        %v1780 = vpop.f32.mrb[0].mxu0
        %v1781 = vpop.f32.mrb[0].mxu0
        %v1782 = vadd.f32 0.0, %v1781
        %v1783 = vpop.f32.mrb[0].mxu0
        %1784 = vmatprep.mubr.bf16.mxu0 0
        %1785 = vmatmul.mubr.bf16.gmra.mrb[0].mxu0 %v1739
        %v1786 = vpop.f32.mrb[0].mxu0
        %v1787 = vadd.f32 0.0, %v1786
        %v1788 = vpop.f32.mrb[0].mxu0
        %v1789 = vpop.f32.mrb[0].mxu0
        %v1790 = vpop.f32.mrb[0].mxu0
        %1791 = vdwg.mxu0
        %v1792 = vpack.c.bf16 %v1782, %v1779
        %v1793 = vpack.c.bf16 %v1787, %v1787
        %v1794 = vld [vmem:[#allocation15 + $0xc] sm:$0xf]
        %v1796 = vsel %vm954, %v1792, 0
        %v1799 = vsel %vm954, %v1793, 0
        %v1802 = vsel %vm1062, %v1794, 0
        %1804 = vmatprep.subr.bf16.mxu0 0
        %1805 = vmatpush1.bf16.msra.mxu0 %v1802
        %1806 = vmatprep.subr.bf16.mxu0 0
        %1807 = vmatpush1.bf16.msra.mxu0 0
        %1808 = vmatprep.subr.bf16.mxu0 0
        %1809 = vmatpush1.bf16.msra.mxu0 0
        %1810 = vmatprep.subr.bf16.mxu0 0
        %1811 = vmatpush1.bf16.msra.mxu0 0
        %1812 = vmatprep.subr.bf16.mxu0 0
        %1813 = vmatpush1.bf16.msra.mxu0 0
        %1814 = vmatprep.subr.bf16.mxu0 0
        %1815 = vmatpush1.bf16.msra.mxu0 0
        %1816 = vmatprep.subr.bf16.mxu0 0
        %1817 = vmatpush1.bf16.msra.mxu0 0
        %1818 = vmatprep.subr.bf16.mxu0 0
        %1819 = vmatpush1.bf16.msra.mxu0 0
        %1820 = vmatprep.subr.bf16.mxu0 0
        %1821 = vmatpush1.bf16.msra.mxu0 0
        %1822 = vmatprep.subr.bf16.mxu0 0
        %1823 = vmatpush1.bf16.msra.mxu0 0
        %1824 = vmatprep.subr.bf16.mxu0 0
        %1825 = vmatpush1.bf16.msra.mxu0 0
        %1826 = vmatprep.subr.bf16.mxu0 0
        %1827 = vmatpush1.bf16.msra.mxu0 0
        %1828 = vmatprep.subr.bf16.mxu0 0
        %1829 = vmatpush1.bf16.msra.mxu0 0
        %1830 = vmatprep.subr.bf16.mxu0 0
        %1831 = vmatpush1.bf16.msra.mxu0 0
        %1832 = vmatprep.subr.bf16.mxu0 0
        %1833 = vmatpush1.bf16.msra.mxu0 0
        %1834 = vmatprep.subr.bf16.mxu0 0
        %1835 = vmatpush1.bf16.msra.mxu0 0
        %1836 = vmatprep.mubr.bf16.mxu0 0
        %1837 = vmatmul.mubr.bf16.gmra.mrb[0].mxu0 %v1796
        %v1838 = vpop.f32.mrb[0].mxu0
        %v1839 = vadd.f32 0.0, %v1838
        %v1840 = vpop.f32.mrb[0].mxu0
        %v1841 = vpop.f32.mrb[0].mxu0
        %v1842 = vadd.f32 0.0, %v1841
        %v1843 = vpop.f32.mrb[0].mxu0
        %1844 = vmatprep.mubr.bf16.mxu0 0
        %1845 = vmatmul.mubr.bf16.gmra.mrb[0].mxu0 %v1799
        %v1846 = vpop.f32.mrb[0].mxu0
        %v1847 = vadd.f32 0.0, %v1846
        %v1848 = vpop.f32.mrb[0].mxu0
        %v1849 = vpop.f32.mrb[0].mxu0
        %v1850 = vpop.f32.mrb[0].mxu0
        %1851 = vdwg.mxu0
        %v1852 = vadd.f32 %v1624, %v1839
        %v1853 = vadd.f32 %v1625, %v1842
        %v1854 = vadd.f32 %v1626, %v1847
        %1855 = vst.msk [vmem:[#allocation3] sm:$0xff] %vm730, %v1852
        %1856 = vst.msk [vmem:[#allocation3 + $0x8] sm:$0xff] %vm730, %v1853
        %1857 = vst.msk [vmem:[#allocation3 + $0x10] sm:$0xff] %vm730, %v1854
        %v1858 = vpack.c.bf16 %v933, %v928
        %v1859 = vpack.c.bf16 %v936, %v936
        %1862 = vrot.lane.b32.xlu0 %v1858, 96
        %v1863 = vpop.permute.xlu0 %1862
        %1864 = vrot.lane.b32.xlu0 %v1859, 96
        %v1865 = vpop.permute.xlu0 %1864
        %v1867 = vsel %vm954, %v1858, 0
        %v1870 = vsel %vm954, %v1859, 0
        %v1873 = vsel %vm954, %v1863, 0
        %v1876 = vsel %vm954, %v1865, 0
        %1878 = vmatprep.subr.bf16.mxu0 0
        %1879 = vmatpush1.bf16.xpose.msra.mxu0 %v1873
        %1880 = vmatprep.subr.bf16.mxu0 0
        %1881 = vmatpush1.bf16.xpose.msra.mxu0 %v1876
        %1882 = vmatprep.subr.bf16.mxu0 0
        %1883 = vmatpush1.bf16.xpose.msra.mxu0 0
        %1884 = vmatprep.subr.bf16.mxu0 0
        %1885 = vmatpush1.bf16.xpose.msra.mxu0 0
        %1886 = vmatprep.subr.bf16.mxu0 0
        %1887 = vmatpush1.bf16.xpose.msra.mxu0 0
        %1888 = vmatprep.subr.bf16.mxu0 0
        %1889 = vmatpush1.bf16.xpose.msra.mxu0 0
        %1890 = vmatprep.subr.bf16.mxu0 0
        %1891 = vmatpush1.bf16.xpose.msra.mxu0 0
        %1892 = vmatprep.subr.bf16.mxu0 0
        %1893 = vmatpush1.bf16.xpose.msra.mxu0 0
        %1894 = vmatprep.subr.bf16.mxu0 0
        %1895 = vmatpush1.bf16.xpose.msra.mxu0 0
        %1896 = vmatprep.subr.bf16.mxu0 0
        %1897 = vmatpush1.bf16.xpose.msra.mxu0 0
        %1898 = vmatprep.subr.bf16.mxu0 0
        %1899 = vmatpush1.bf16.xpose.msra.mxu0 0
        %1900 = vmatprep.subr.bf16.mxu0 0
        %1901 = vmatpush1.bf16.xpose.msra.mxu0 0
        %1902 = vmatprep.subr.bf16.mxu0 0
        %1903 = vmatpush1.bf16.xpose.msra.mxu0 0
        %1904 = vmatprep.subr.bf16.mxu0 0
        %1905 = vmatpush1.bf16.xpose.msra.mxu0 0
        %1906 = vmatprep.subr.bf16.mxu0 0
        %1907 = vmatpush1.bf16.xpose.msra.mxu0 0
        %1908 = vmatprep.subr.bf16.mxu0 0
        %1909 = vmatpush1.bf16.xpose.msra.mxu0 0
        %1910 = vmatprep.mubr.bf16.mxu0 0
        %1911 = vmatmul.mubr.bf16.gmra.mrb[0].mxu0 %v1867
        %v1912 = vpop.f32.mrb[0].mxu0
        %v1913 = vadd.f32 %v946, %v1912
        %v1914 = vpop.f32.mrb[0].mxu0
        %v1915 = vpop.f32.mrb[0].mxu0
        %v1916 = vadd.f32 %v946, %v1915
        %v1917 = vpop.f32.mrb[0].mxu0
        %1918 = vmatprep.mubr.bf16.mxu0 0
        %1919 = vmatmul.mubr.bf16.gmra.mrb[0].mxu0 %v1870
        %v1920 = vpop.f32.mrb[0].mxu0
        %v1921 = vadd.f32 %v946, %v1920
        %v1922 = vpop.f32.mrb[0].mxu0
        %v1923 = vpop.f32.mrb[0].mxu0
        %v1924 = vpop.f32.mrb[0].mxu0
        %1925 = vdwg.mxu0
        %v1926 = vsel %vm1015, %v1913, -inf
        %1927 = vmax.xlane.f32.xlu0 %v1926
        %v1928 = vpop.xlane.xlu0 %1927
        %v1929 = vsel %vm1015, %v1916, -inf
        %1930 = vmax.xlane.f32.xlu0 %v1929
        %v1931 = vpop.xlane.xlu0 %1930
        %v1932 = vsel %vm1015, %v1921, -inf
        %1933 = vmax.xlane.f32.xlu0 %v1932
        %v1934 = vpop.xlane.xlu0 %1933
        %v1935 = vsub.f32 %v1913, %v1928
        %v1936 = vsub.f32 %v1916, %v1931
        %v1937 = vsub.f32 %v1921, %v1934
        %v1938 = vmul.f32 %v1935, 1.442695
        %v1939 = vpow.pop %v1938
        %v1940 = vmul.f32 %v1936, 1.442695
        %v1941 = vpow.pop %v1940
        %v1942 = vmul.f32 %v1937, 1.442695
        %v1943 = vpow.pop %v1942
        %v1944 = vsel %vm1015, %v1939, 0.0
        %1945 = vadd.xlane.f32.xlu0 %v1944
        %v1946 = vpop.xlane.xlu0 %1945
        %v1947 = vsel %vm1015, %v1941, 0.0
        %1948 = vadd.xlane.f32.xlu0 %v1947
        %v1949 = vpop.xlane.xlu0 %1948
        %v1950 = vsel %vm1015, %v1943, 0.0
        %1951 = vadd.xlane.f32.xlu0 %v1950
        %v1952 = vpop.xlane.xlu0 %1951
        %v1953 = vrcp.pop %v1946
        %v1954 = vrcp.pop %v1949
        %v1955 = vrcp.pop %v1952
        %v1956 = vmul.f32 %v1939, %v1953
        %v1957 = vmul.f32 %v1941, %v1954
        %v1958 = vmul.f32 %v1943, %v1955
        %v1959 = vpack.c.bf16 %v1957, %v1956
        %v1960 = vpack.c.bf16 %v1958, %v1958
        %1961 = vrot.lane.b32.xlu0 %v1858, 64
        %v1962 = vpop.permute.xlu0 %1961
        %1963 = vrot.lane.b32.xlu0 %v1859, 64
        %v1964 = vpop.permute.xlu0 %1963
        %v1967 = vsel %vm1015, %v1959, 0
        %v1970 = vsel %vm1015, %v1960, 0
        %v1973 = vsel %vm1062, %v1964, 0
        %1975 = vmatprep.subr.bf16.mxu0 0
        %1976 = vmatpush1.bf16.msra.mxu0 %v1962
        %1977 = vmatprep.subr.bf16.mxu0 0
        %1978 = vmatpush1.bf16.msra.mxu0 %v1973
        %1979 = vmatprep.subr.bf16.mxu0 0
        %1980 = vmatpush1.bf16.msra.mxu0 0
        %1981 = vmatprep.subr.bf16.mxu0 0
        %1982 = vmatpush1.bf16.msra.mxu0 0
        %1983 = vmatprep.subr.bf16.mxu0 0
        %1984 = vmatpush1.bf16.msra.mxu0 0
        %1985 = vmatprep.subr.bf16.mxu0 0
        %1986 = vmatpush1.bf16.msra.mxu0 0
        %1987 = vmatprep.subr.bf16.mxu0 0
        %1988 = vmatpush1.bf16.msra.mxu0 0
        %1989 = vmatprep.subr.bf16.mxu0 0
        %1990 = vmatpush1.bf16.msra.mxu0 0
        %1991 = vmatprep.subr.bf16.mxu0 0
        %1992 = vmatpush1.bf16.msra.mxu0 0
        %1993 = vmatprep.subr.bf16.mxu0 0
        %1994 = vmatpush1.bf16.msra.mxu0 0
        %1995 = vmatprep.subr.bf16.mxu0 0
        %1996 = vmatpush1.bf16.msra.mxu0 0
        %1997 = vmatprep.subr.bf16.mxu0 0
        %1998 = vmatpush1.bf16.msra.mxu0 0
        %1999 = vmatprep.subr.bf16.mxu0 0
        %2000 = vmatpush1.bf16.msra.mxu0 0
        %2001 = vmatprep.subr.bf16.mxu0 0
        %2002 = vmatpush1.bf16.msra.mxu0 0
        %2003 = vmatprep.subr.bf16.mxu0 0
        %2004 = vmatpush1.bf16.msra.mxu0 0
        %2005 = vmatprep.subr.bf16.mxu0 0
        %2006 = vmatpush1.bf16.msra.mxu0 0
        %2007 = vmatprep.mubr.bf16.mxu0 0
        %2008 = vmatmul.mubr.bf16.gmra.mrb[0].mxu0 %v1967
        %v2009 = vpop.f32.mrb[0].mxu0
        %v2010 = vadd.f32 0.0, %v2009
        %v2011 = vpop.f32.mrb[0].mxu0
        %v2012 = vpop.f32.mrb[0].mxu0
        %v2013 = vadd.f32 0.0, %v2012
        %v2014 = vpop.f32.mrb[0].mxu0
        %2015 = vmatprep.mubr.bf16.mxu0 0
        %2016 = vmatmul.mubr.bf16.gmra.mrb[0].mxu0 %v1970
        %v2017 = vpop.f32.mrb[0].mxu0
        %v2018 = vadd.f32 0.0, %v2017
        %v2019 = vpop.f32.mrb[0].mxu0
        %v2020 = vpop.f32.mrb[0].mxu0
        %v2021 = vpop.f32.mrb[0].mxu0
        %2022 = vdwg.mxu0
        %v2023 = vpack.c.bf16 %v2013, %v2010
        %v2024 = vpack.c.bf16 %v2018, %v2018
        %v2025 = vld [vmem:[#allocation15] sm:$0xf]
        %2026 = vrot.lane.b32.xlu0 %v1858, 120
        %v2027 = vpop.permute.xlu0 %2026
        %2028 = vrot.lane.b32.xlu0 %v1859, 120
        %v2029 = vpop.permute.xlu0 %2028
        %2030 = vrot.lane.b32.xlu0 %v1858, 88
        %v2031 = vpop.permute.xlu0 %2030
        %2032 = vrot.lane.b32.xlu0 %v1859, 88
        %v2033 = vpop.permute.xlu0 %2032
        %v2035 = vsel %vm954, %v2027, 0
        %v2038 = vsel %vm954, %v2029, 0
        %v2041 = vsel %vm954, %v2031, 0
        %v2044 = vsel %vm954, %v2033, 0
        %2046 = vmatprep.subr.bf16.mxu0 0
        %2047 = vmatpush1.bf16.xpose.msra.mxu0 %v2041
        %2048 = vmatprep.subr.bf16.mxu0 0
        %2049 = vmatpush1.bf16.xpose.msra.mxu0 %v2044
        %2050 = vmatprep.subr.bf16.mxu0 0
        %2051 = vmatpush1.bf16.xpose.msra.mxu0 0
        %2052 = vmatprep.subr.bf16.mxu0 0
        %2053 = vmatpush1.bf16.xpose.msra.mxu0 0
        %2054 = vmatprep.subr.bf16.mxu0 0
        %2055 = vmatpush1.bf16.xpose.msra.mxu0 0
        %2056 = vmatprep.subr.bf16.mxu0 0
        %2057 = vmatpush1.bf16.xpose.msra.mxu0 0
        %2058 = vmatprep.subr.bf16.mxu0 0
        %2059 = vmatpush1.bf16.xpose.msra.mxu0 0
        %2060 = vmatprep.subr.bf16.mxu0 0
        %2061 = vmatpush1.bf16.xpose.msra.mxu0 0
        %2062 = vmatprep.subr.bf16.mxu0 0
        %2063 = vmatpush1.bf16.xpose.msra.mxu0 0
        %2064 = vmatprep.subr.bf16.mxu0 0
        %2065 = vmatpush1.bf16.xpose.msra.mxu0 0
        %2066 = vmatprep.subr.bf16.mxu0 0
        %2067 = vmatpush1.bf16.xpose.msra.mxu0 0
        %2068 = vmatprep.subr.bf16.mxu0 0
        %2069 = vmatpush1.bf16.xpose.msra.mxu0 0
        %2070 = vmatprep.subr.bf16.mxu0 0
        %2071 = vmatpush1.bf16.xpose.msra.mxu0 0
        %2072 = vmatprep.subr.bf16.mxu0 0
        %2073 = vmatpush1.bf16.xpose.msra.mxu0 0
        %2074 = vmatprep.subr.bf16.mxu0 0
        %2075 = vmatpush1.bf16.xpose.msra.mxu0 0
        %2076 = vmatprep.subr.bf16.mxu0 0
        %2077 = vmatpush1.bf16.xpose.msra.mxu0 0
        %2078 = vmatprep.mubr.bf16.mxu0 0
        %2079 = vmatmul.mubr.bf16.gmra.mrb[0].mxu0 %v2035
        %v2080 = vpop.f32.mrb[0].mxu0
        %v2081 = vadd.f32 %v946, %v2080
        %v2082 = vpop.f32.mrb[0].mxu0
        %v2083 = vpop.f32.mrb[0].mxu0
        %v2084 = vadd.f32 %v946, %v2083
        %v2085 = vpop.f32.mrb[0].mxu0
        %2086 = vmatprep.mubr.bf16.mxu0 0
        %2087 = vmatmul.mubr.bf16.gmra.mrb[0].mxu0 %v2038
        %v2088 = vpop.f32.mrb[0].mxu0
        %v2089 = vadd.f32 %v946, %v2088
        %v2090 = vpop.f32.mrb[0].mxu0
        %v2091 = vpop.f32.mrb[0].mxu0
        %v2092 = vpop.f32.mrb[0].mxu0
        %2093 = vdwg.mxu0
        %v2094 = vsel %vm1015, %v2081, -inf
        %2095 = vmax.xlane.f32.xlu0 %v2094
        %v2096 = vpop.xlane.xlu0 %2095
        %v2097 = vsel %vm1015, %v2084, -inf
        %2098 = vmax.xlane.f32.xlu0 %v2097
        %v2099 = vpop.xlane.xlu0 %2098
        %v2100 = vsel %vm1015, %v2089, -inf
        %2101 = vmax.xlane.f32.xlu0 %v2100
        %v2102 = vpop.xlane.xlu0 %2101
        %v2103 = vsub.f32 %v2081, %v2096
        %v2104 = vsub.f32 %v2084, %v2099
        %v2105 = vsub.f32 %v2089, %v2102
        %v2106 = vmul.f32 %v2103, 1.442695
        %v2107 = vpow.pop %v2106
        %v2108 = vmul.f32 %v2104, 1.442695
        %v2109 = vpow.pop %v2108
        %v2110 = vmul.f32 %v2105, 1.442695
        %v2111 = vpow.pop %v2110
        %v2112 = vsel %vm1015, %v2107, 0.0
        %2113 = vadd.xlane.f32.xlu0 %v2112
        %v2114 = vpop.xlane.xlu0 %2113
        %v2115 = vsel %vm1015, %v2109, 0.0
        %2116 = vadd.xlane.f32.xlu0 %v2115
        %v2117 = vpop.xlane.xlu0 %2116
        %v2118 = vsel %vm1015, %v2111, 0.0
        %2119 = vadd.xlane.f32.xlu0 %v2118
        %v2120 = vpop.xlane.xlu0 %2119
        %v2121 = vrcp.pop %v2114
        %v2122 = vrcp.pop %v2117
        %v2123 = vrcp.pop %v2120
        %v2124 = vmul.f32 %v2107, %v2121
        %v2125 = vmul.f32 %v2109, %v2122
        %v2126 = vmul.f32 %v2111, %v2123
        %v2127 = vpack.c.bf16 %v2125, %v2124
        %v2128 = vpack.c.bf16 %v2126, %v2126
        %2129 = vrot.lane.b32.xlu0 %v1858, 56
        %v2130 = vpop.permute.xlu0 %2129
        %2131 = vrot.lane.b32.xlu0 %v1859, 56
        %v2132 = vpop.permute.xlu0 %2131
        %v2135 = vsel %vm1015, %v2127, 0
        %v2138 = vsel %vm1015, %v2128, 0
        %v2141 = vsel %vm1062, %v2132, 0
        %2143 = vmatprep.subr.bf16.mxu0 0
        %2144 = vmatpush1.bf16.msra.mxu0 %v2130
        %2145 = vmatprep.subr.bf16.mxu0 0
        %2146 = vmatpush1.bf16.msra.mxu0 %v2141
        %2147 = vmatprep.subr.bf16.mxu0 0
        %2148 = vmatpush1.bf16.msra.mxu0 0
        %2149 = vmatprep.subr.bf16.mxu0 0
        %2150 = vmatpush1.bf16.msra.mxu0 0
        %2151 = vmatprep.subr.bf16.mxu0 0
        %2152 = vmatpush1.bf16.msra.mxu0 0
        %2153 = vmatprep.subr.bf16.mxu0 0
        %2154 = vmatpush1.bf16.msra.mxu0 0
        %2155 = vmatprep.subr.bf16.mxu0 0
        %2156 = vmatpush1.bf16.msra.mxu0 0
        %2157 = vmatprep.subr.bf16.mxu0 0
        %2158 = vmatpush1.bf16.msra.mxu0 0
        %2159 = vmatprep.subr.bf16.mxu0 0
        %2160 = vmatpush1.bf16.msra.mxu0 0
        %2161 = vmatprep.subr.bf16.mxu0 0
        %2162 = vmatpush1.bf16.msra.mxu0 0
        %2163 = vmatprep.subr.bf16.mxu0 0
        %2164 = vmatpush1.bf16.msra.mxu0 0
        %2165 = vmatprep.subr.bf16.mxu0 0
        %2166 = vmatpush1.bf16.msra.mxu0 0
        %2167 = vmatprep.subr.bf16.mxu0 0
        %2168 = vmatpush1.bf16.msra.mxu0 0
        %2169 = vmatprep.subr.bf16.mxu0 0
        %2170 = vmatpush1.bf16.msra.mxu0 0
        %2171 = vmatprep.subr.bf16.mxu0 0
        %2172 = vmatpush1.bf16.msra.mxu0 0
        %2173 = vmatprep.subr.bf16.mxu0 0
        %2174 = vmatpush1.bf16.msra.mxu0 0
        %2175 = vmatprep.mubr.bf16.mxu0 0
        %2176 = vmatmul.mubr.bf16.gmra.mrb[0].mxu0 %v2135
        %v2177 = vpop.f32.mrb[0].mxu0
        %v2178 = vadd.f32 0.0, %v2177
        %v2179 = vpop.f32.mrb[0].mxu0
        %v2180 = vpop.f32.mrb[0].mxu0
        %v2181 = vadd.f32 0.0, %v2180
        %v2182 = vpop.f32.mrb[0].mxu0
        %2183 = vmatprep.mubr.bf16.mxu0 0
        %2184 = vmatmul.mubr.bf16.gmra.mrb[0].mxu0 %v2138
        %v2185 = vpop.f32.mrb[0].mxu0
        %v2186 = vadd.f32 0.0, %v2185
        %v2187 = vpop.f32.mrb[0].mxu0
        %v2188 = vpop.f32.mrb[0].mxu0
        %v2189 = vpop.f32.mrb[0].mxu0
        %2190 = vdwg.mxu0
        %v2191 = vpack.c.bf16 %v2181, %v2178
        %v2192 = vpack.c.bf16 %v2186, %v2186
        %v2193 = vld [vmem:[#allocation15 + $0x4] sm:$0xf]
        %v2195 = vsel %vm954, %v2191, 0
        %v2198 = vsel %vm954, %v2192, 0
        %v2201 = vsel %vm1062, %v2193, 0
        %2203 = vmatprep.subr.bf16.mxu0 0
        %2204 = vmatpush1.bf16.msra.mxu0 %v2201
        %2205 = vmatprep.subr.bf16.mxu0 0
        %2206 = vmatpush1.bf16.msra.mxu0 0
        %2207 = vmatprep.subr.bf16.mxu0 0
        %2208 = vmatpush1.bf16.msra.mxu0 0
        %2209 = vmatprep.subr.bf16.mxu0 0
        %2210 = vmatpush1.bf16.msra.mxu0 0
        %2211 = vmatprep.subr.bf16.mxu0 0
        %2212 = vmatpush1.bf16.msra.mxu0 0
        %2213 = vmatprep.subr.bf16.mxu0 0
        %2214 = vmatpush1.bf16.msra.mxu0 0
        %2215 = vmatprep.subr.bf16.mxu0 0
        %2216 = vmatpush1.bf16.msra.mxu0 0
        %2217 = vmatprep.subr.bf16.mxu0 0
        %2218 = vmatpush1.bf16.msra.mxu0 0
        %2219 = vmatprep.subr.bf16.mxu0 0
        %2220 = vmatpush1.bf16.msra.mxu0 0
        %2221 = vmatprep.subr.bf16.mxu0 0
        %2222 = vmatpush1.bf16.msra.mxu0 0
        %2223 = vmatprep.subr.bf16.mxu0 0
        %2224 = vmatpush1.bf16.msra.mxu0 0
        %2225 = vmatprep.subr.bf16.mxu0 0
        %2226 = vmatpush1.bf16.msra.mxu0 0
        %2227 = vmatprep.subr.bf16.mxu0 0
        %2228 = vmatpush1.bf16.msra.mxu0 0
        %2229 = vmatprep.subr.bf16.mxu0 0
        %2230 = vmatpush1.bf16.msra.mxu0 0
        %2231 = vmatprep.subr.bf16.mxu0 0
        %2232 = vmatpush1.bf16.msra.mxu0 0
        %2233 = vmatprep.subr.bf16.mxu0 0
        %2234 = vmatpush1.bf16.msra.mxu0 0
        %2235 = vmatprep.mubr.bf16.mxu0 0
        %2236 = vmatmul.mubr.bf16.gmra.mrb[0].mxu0 %v2195
        %v2237 = vpop.f32.mrb[0].mxu0
        %v2238 = vadd.f32 0.0, %v2237
        %v2239 = vpop.f32.mrb[0].mxu0
        %v2240 = vpop.f32.mrb[0].mxu0
        %v2241 = vadd.f32 0.0, %v2240
        %v2242 = vpop.f32.mrb[0].mxu0
        %2243 = vmatprep.mubr.bf16.mxu0 0
        %2244 = vmatmul.mubr.bf16.gmra.mrb[0].mxu0 %v2198
        %v2245 = vpop.f32.mrb[0].mxu0
        %v2246 = vadd.f32 0.0, %v2245
        %v2247 = vpop.f32.mrb[0].mxu0
        %v2248 = vpop.f32.mrb[0].mxu0
        %v2249 = vpop.f32.mrb[0].mxu0
        %2250 = vdwg.mxu0
        %v2252 = vsel %vm954, %v2023, 0
        %v2255 = vsel %vm954, %v2024, 0
        %v2258 = vsel %vm1062, %v2025, 0
        %2260 = vmatprep.subr.bf16.mxu0 0
        %2261 = vmatpush1.bf16.msra.mxu0 %v2258
        %2262 = vmatprep.subr.bf16.mxu0 0
        %2263 = vmatpush1.bf16.msra.mxu0 0
        %2264 = vmatprep.subr.bf16.mxu0 0
        %2265 = vmatpush1.bf16.msra.mxu0 0
        %2266 = vmatprep.subr.bf16.mxu0 0
        %2267 = vmatpush1.bf16.msra.mxu0 0
        %2268 = vmatprep.subr.bf16.mxu0 0
        %2269 = vmatpush1.bf16.msra.mxu0 0
        %2270 = vmatprep.subr.bf16.mxu0 0
        %2271 = vmatpush1.bf16.msra.mxu0 0
        %2272 = vmatprep.subr.bf16.mxu0 0
        %2273 = vmatpush1.bf16.msra.mxu0 0
        %2274 = vmatprep.subr.bf16.mxu0 0
        %2275 = vmatpush1.bf16.msra.mxu0 0
        %2276 = vmatprep.subr.bf16.mxu0 0
        %2277 = vmatpush1.bf16.msra.mxu0 0
        %2278 = vmatprep.subr.bf16.mxu0 0
        %2279 = vmatpush1.bf16.msra.mxu0 0
        %2280 = vmatprep.subr.bf16.mxu0 0
        %2281 = vmatpush1.bf16.msra.mxu0 0
        %2282 = vmatprep.subr.bf16.mxu0 0
        %2283 = vmatpush1.bf16.msra.mxu0 0
        %2284 = vmatprep.subr.bf16.mxu0 0
        %2285 = vmatpush1.bf16.msra.mxu0 0
        %2286 = vmatprep.subr.bf16.mxu0 0
        %2287 = vmatpush1.bf16.msra.mxu0 0
        %2288 = vmatprep.subr.bf16.mxu0 0
        %2289 = vmatpush1.bf16.msra.mxu0 0
        %2290 = vmatprep.subr.bf16.mxu0 0
        %2291 = vmatpush1.bf16.msra.mxu0 0
        %2292 = vmatprep.mubr.bf16.mxu0 0
        %2293 = vmatmul.mubr.bf16.gmra.mrb[0].mxu0 %v2252
        %v2294 = vpop.f32.mrb[0].mxu0
        %v2295 = vadd.f32 %v2238, %v2294
        %v2296 = vpop.f32.mrb[0].mxu0
        %v2297 = vpop.f32.mrb[0].mxu0
        %v2298 = vadd.f32 %v2241, %v2297
        %v2299 = vpop.f32.mrb[0].mxu0
        %2300 = vmatprep.mubr.bf16.mxu0 0
        %2301 = vmatmul.mubr.bf16.gmra.mrb[0].mxu0 %v2255
        %v2302 = vpop.f32.mrb[0].mxu0
        %v2303 = vadd.f32 %v2246, %v2302
        %v2304 = vpop.f32.mrb[0].mxu0
        %v2305 = vpop.f32.mrb[0].mxu0
        %v2306 = vpop.f32.mrb[0].mxu0
        %2307 = vdwg.mxu0
        %2308 = vrot.lane.b32.xlu0 %v1858, 112
        %v2309 = vpop.permute.xlu0 %2308
        %2310 = vrot.lane.b32.xlu0 %v1859, 112
        %v2311 = vpop.permute.xlu0 %2310
        %2312 = vrot.lane.b32.xlu0 %v1858, 80
        %v2313 = vpop.permute.xlu0 %2312
        %2314 = vrot.lane.b32.xlu0 %v1859, 80
        %v2315 = vpop.permute.xlu0 %2314
        %v2317 = vsel %vm954, %v2309, 0
        %v2320 = vsel %vm954, %v2311, 0
        %v2323 = vsel %vm954, %v2313, 0
        %v2326 = vsel %vm954, %v2315, 0
        %2328 = vmatprep.subr.bf16.mxu0 0
        %2329 = vmatpush1.bf16.xpose.msra.mxu0 %v2323
        %2330 = vmatprep.subr.bf16.mxu0 0
        %2331 = vmatpush1.bf16.xpose.msra.mxu0 %v2326
        %2332 = vmatprep.subr.bf16.mxu0 0
        %2333 = vmatpush1.bf16.xpose.msra.mxu0 0
        %2334 = vmatprep.subr.bf16.mxu0 0
        %2335 = vmatpush1.bf16.xpose.msra.mxu0 0
        %2336 = vmatprep.subr.bf16.mxu0 0
        %2337 = vmatpush1.bf16.xpose.msra.mxu0 0
        %2338 = vmatprep.subr.bf16.mxu0 0
        %2339 = vmatpush1.bf16.xpose.msra.mxu0 0
        %2340 = vmatprep.subr.bf16.mxu0 0
        %2341 = vmatpush1.bf16.xpose.msra.mxu0 0
        %2342 = vmatprep.subr.bf16.mxu0 0
        %2343 = vmatpush1.bf16.xpose.msra.mxu0 0
        %2344 = vmatprep.subr.bf16.mxu0 0
        %2345 = vmatpush1.bf16.xpose.msra.mxu0 0
        %2346 = vmatprep.subr.bf16.mxu0 0
        %2347 = vmatpush1.bf16.xpose.msra.mxu0 0
        %2348 = vmatprep.subr.bf16.mxu0 0
        %2349 = vmatpush1.bf16.xpose.msra.mxu0 0
        %2350 = vmatprep.subr.bf16.mxu0 0
        %2351 = vmatpush1.bf16.xpose.msra.mxu0 0
        %2352 = vmatprep.subr.bf16.mxu0 0
        %2353 = vmatpush1.bf16.xpose.msra.mxu0 0
        %2354 = vmatprep.subr.bf16.mxu0 0
        %2355 = vmatpush1.bf16.xpose.msra.mxu0 0
        %2356 = vmatprep.subr.bf16.mxu0 0
        %2357 = vmatpush1.bf16.xpose.msra.mxu0 0
        %2358 = vmatprep.subr.bf16.mxu0 0
        %2359 = vmatpush1.bf16.xpose.msra.mxu0 0
        %2360 = vmatprep.mubr.bf16.mxu0 0
        %2361 = vmatmul.mubr.bf16.gmra.mrb[0].mxu0 %v2317
        %v2362 = vpop.f32.mrb[0].mxu0
        %v2363 = vadd.f32 %v946, %v2362
        %v2364 = vpop.f32.mrb[0].mxu0
        %v2365 = vpop.f32.mrb[0].mxu0
        %v2366 = vadd.f32 %v946, %v2365
        %v2367 = vpop.f32.mrb[0].mxu0
        %2368 = vmatprep.mubr.bf16.mxu0 0
        %2369 = vmatmul.mubr.bf16.gmra.mrb[0].mxu0 %v2320
        %v2370 = vpop.f32.mrb[0].mxu0
        %v2371 = vadd.f32 %v946, %v2370
        %v2372 = vpop.f32.mrb[0].mxu0
        %v2373 = vpop.f32.mrb[0].mxu0
        %v2374 = vpop.f32.mrb[0].mxu0
        %2375 = vdwg.mxu0
        %v2376 = vsel %vm1015, %v2363, -inf
        %2377 = vmax.xlane.f32.xlu0 %v2376
        %v2378 = vpop.xlane.xlu0 %2377
        %v2379 = vsel %vm1015, %v2366, -inf
        %2380 = vmax.xlane.f32.xlu0 %v2379
        %v2381 = vpop.xlane.xlu0 %2380
        %v2382 = vsel %vm1015, %v2371, -inf
        %2383 = vmax.xlane.f32.xlu0 %v2382
        %v2384 = vpop.xlane.xlu0 %2383
        %v2385 = vsub.f32 %v2363, %v2378
        %v2386 = vsub.f32 %v2366, %v2381
        %v2387 = vsub.f32 %v2371, %v2384
        %v2388 = vmul.f32 %v2385, 1.442695
        %v2389 = vpow.pop %v2388
        %v2390 = vmul.f32 %v2386, 1.442695
        %v2391 = vpow.pop %v2390
        %v2392 = vmul.f32 %v2387, 1.442695
        %v2393 = vpow.pop %v2392
        %v2394 = vsel %vm1015, %v2389, 0.0
        %2395 = vadd.xlane.f32.xlu0 %v2394
        %v2396 = vpop.xlane.xlu0 %2395
        %v2397 = vsel %vm1015, %v2391, 0.0
        %2398 = vadd.xlane.f32.xlu0 %v2397
        %v2399 = vpop.xlane.xlu0 %2398
        %v2400 = vsel %vm1015, %v2393, 0.0
        %2401 = vadd.xlane.f32.xlu0 %v2400
        %v2402 = vpop.xlane.xlu0 %2401
        %v2403 = vrcp.pop %v2396
        %v2404 = vrcp.pop %v2399
        %v2405 = vrcp.pop %v2402
        %v2406 = vmul.f32 %v2389, %v2403
        %v2407 = vmul.f32 %v2391, %v2404
        %v2408 = vmul.f32 %v2393, %v2405
        %v2409 = vpack.c.bf16 %v2407, %v2406
        %v2410 = vpack.c.bf16 %v2408, %v2408
        %2411 = vrot.lane.b32.xlu0 %v1858, 48
        %v2412 = vpop.permute.xlu0 %2411
        %2413 = vrot.lane.b32.xlu0 %v1859, 48
        %v2414 = vpop.permute.xlu0 %2413
        %v2417 = vsel %vm1015, %v2409, 0
        %v2420 = vsel %vm1015, %v2410, 0
        %v2423 = vsel %vm1062, %v2414, 0
        %2425 = vmatprep.subr.bf16.mxu0 0
        %2426 = vmatpush1.bf16.msra.mxu0 %v2412
        %2427 = vmatprep.subr.bf16.mxu0 0
        %2428 = vmatpush1.bf16.msra.mxu0 %v2423
        %2429 = vmatprep.subr.bf16.mxu0 0
        %2430 = vmatpush1.bf16.msra.mxu0 0
        %2431 = vmatprep.subr.bf16.mxu0 0
        %2432 = vmatpush1.bf16.msra.mxu0 0
        %2433 = vmatprep.subr.bf16.mxu0 0
        %2434 = vmatpush1.bf16.msra.mxu0 0
        %2435 = vmatprep.subr.bf16.mxu0 0
        %2436 = vmatpush1.bf16.msra.mxu0 0
        %2437 = vmatprep.subr.bf16.mxu0 0
        %2438 = vmatpush1.bf16.msra.mxu0 0
        %2439 = vmatprep.subr.bf16.mxu0 0
        %2440 = vmatpush1.bf16.msra.mxu0 0
        %2441 = vmatprep.subr.bf16.mxu0 0
        %2442 = vmatpush1.bf16.msra.mxu0 0
        %2443 = vmatprep.subr.bf16.mxu0 0
        %2444 = vmatpush1.bf16.msra.mxu0 0
        %2445 = vmatprep.subr.bf16.mxu0 0
        %2446 = vmatpush1.bf16.msra.mxu0 0
        %2447 = vmatprep.subr.bf16.mxu0 0
        %2448 = vmatpush1.bf16.msra.mxu0 0
        %2449 = vmatprep.subr.bf16.mxu0 0
        %2450 = vmatpush1.bf16.msra.mxu0 0
        %2451 = vmatprep.subr.bf16.mxu0 0
        %2452 = vmatpush1.bf16.msra.mxu0 0
        %2453 = vmatprep.subr.bf16.mxu0 0
        %2454 = vmatpush1.bf16.msra.mxu0 0
        %2455 = vmatprep.subr.bf16.mxu0 0
        %2456 = vmatpush1.bf16.msra.mxu0 0
        %2457 = vmatprep.mubr.bf16.mxu0 0
        %2458 = vmatmul.mubr.bf16.gmra.mrb[0].mxu0 %v2417
        %v2459 = vpop.f32.mrb[0].mxu0
        %v2460 = vadd.f32 0.0, %v2459
        %v2461 = vpop.f32.mrb[0].mxu0
        %v2462 = vpop.f32.mrb[0].mxu0
        %v2463 = vadd.f32 0.0, %v2462
        %v2464 = vpop.f32.mrb[0].mxu0
        %2465 = vmatprep.mubr.bf16.mxu0 0
        %2466 = vmatmul.mubr.bf16.gmra.mrb[0].mxu0 %v2420
        %v2467 = vpop.f32.mrb[0].mxu0
        %v2468 = vadd.f32 0.0, %v2467
        %v2469 = vpop.f32.mrb[0].mxu0
        %v2470 = vpop.f32.mrb[0].mxu0
        %v2471 = vpop.f32.mrb[0].mxu0
        %2472 = vdwg.mxu0
        %v2473 = vpack.c.bf16 %v2463, %v2460
        %v2474 = vpack.c.bf16 %v2468, %v2468
        %v2475 = vld [vmem:[#allocation15 + $0x8] sm:$0xf]
        %v2477 = vsel %vm954, %v2473, 0
        %v2480 = vsel %vm954, %v2474, 0
        %v2483 = vsel %vm1062, %v2475, 0
        %2485 = vmatprep.subr.bf16.mxu0 0
        %2486 = vmatpush1.bf16.msra.mxu0 %v2483
        %2487 = vmatprep.subr.bf16.mxu0 0
        %2488 = vmatpush1.bf16.msra.mxu0 0
        %2489 = vmatprep.subr.bf16.mxu0 0
        %2490 = vmatpush1.bf16.msra.mxu0 0
        %2491 = vmatprep.subr.bf16.mxu0 0
        %2492 = vmatpush1.bf16.msra.mxu0 0
        %2493 = vmatprep.subr.bf16.mxu0 0
        %2494 = vmatpush1.bf16.msra.mxu0 0
        %2495 = vmatprep.subr.bf16.mxu0 0
        %2496 = vmatpush1.bf16.msra.mxu0 0
        %2497 = vmatprep.subr.bf16.mxu0 0
        %2498 = vmatpush1.bf16.msra.mxu0 0
        %2499 = vmatprep.subr.bf16.mxu0 0
        %2500 = vmatpush1.bf16.msra.mxu0 0
        %2501 = vmatprep.subr.bf16.mxu0 0
        %2502 = vmatpush1.bf16.msra.mxu0 0
        %2503 = vmatprep.subr.bf16.mxu0 0
        %2504 = vmatpush1.bf16.msra.mxu0 0
        %2505 = vmatprep.subr.bf16.mxu0 0
        %2506 = vmatpush1.bf16.msra.mxu0 0
        %2507 = vmatprep.subr.bf16.mxu0 0
        %2508 = vmatpush1.bf16.msra.mxu0 0
        %2509 = vmatprep.subr.bf16.mxu0 0
        %2510 = vmatpush1.bf16.msra.mxu0 0
        %2511 = vmatprep.subr.bf16.mxu0 0
        %2512 = vmatpush1.bf16.msra.mxu0 0
        %2513 = vmatprep.subr.bf16.mxu0 0
        %2514 = vmatpush1.bf16.msra.mxu0 0
        %2515 = vmatprep.subr.bf16.mxu0 0
        %2516 = vmatpush1.bf16.msra.mxu0 0
        %2517 = vmatprep.mubr.bf16.mxu0 0
        %2518 = vmatmul.mubr.bf16.gmra.mrb[0].mxu0 %v2477
        %v2519 = vpop.f32.mrb[0].mxu0
        %v2520 = vadd.f32 0.0, %v2519
        %v2521 = vpop.f32.mrb[0].mxu0
        %v2522 = vpop.f32.mrb[0].mxu0
        %v2523 = vadd.f32 0.0, %v2522
        %v2524 = vpop.f32.mrb[0].mxu0
        %2525 = vmatprep.mubr.bf16.mxu0 0
        %2526 = vmatmul.mubr.bf16.gmra.mrb[0].mxu0 %v2480
        %v2527 = vpop.f32.mrb[0].mxu0
        %v2528 = vadd.f32 0.0, %v2527
        %v2529 = vpop.f32.mrb[0].mxu0
        %v2530 = vpop.f32.mrb[0].mxu0
        %v2531 = vpop.f32.mrb[0].mxu0
        %2532 = vdwg.mxu0
        %v2533 = vadd.f32 %v2295, %v2520
        %v2534 = vadd.f32 %v2298, %v2523
        %v2535 = vadd.f32 %v2303, %v2528
        %2536 = vrot.lane.b32.xlu0 %v1858, 104
        %v2537 = vpop.permute.xlu0 %2536
        %2538 = vrot.lane.b32.xlu0 %v1859, 104
        %v2539 = vpop.permute.xlu0 %2538
        %2540 = vrot.lane.b32.xlu0 %v1858, 72
        %v2541 = vpop.permute.xlu0 %2540
        %2542 = vrot.lane.b32.xlu0 %v1859, 72
        %v2543 = vpop.permute.xlu0 %2542
        %v2545 = vsel %vm954, %v2537, 0
        %v2548 = vsel %vm954, %v2539, 0
        %v2551 = vsel %vm954, %v2541, 0
        %v2554 = vsel %vm954, %v2543, 0
        %2556 = vmatprep.subr.bf16.mxu0 0
        %2557 = vmatpush1.bf16.xpose.msra.mxu0 %v2551
        %2558 = vmatprep.subr.bf16.mxu0 0
        %2559 = vmatpush1.bf16.xpose.msra.mxu0 %v2554
        %2560 = vmatprep.subr.bf16.mxu0 0
        %2561 = vmatpush1.bf16.xpose.msra.mxu0 0
        %2562 = vmatprep.subr.bf16.mxu0 0
        %2563 = vmatpush1.bf16.xpose.msra.mxu0 0
        %2564 = vmatprep.subr.bf16.mxu0 0
        %2565 = vmatpush1.bf16.xpose.msra.mxu0 0
        %2566 = vmatprep.subr.bf16.mxu0 0
        %2567 = vmatpush1.bf16.xpose.msra.mxu0 0
        %2568 = vmatprep.subr.bf16.mxu0 0
        %2569 = vmatpush1.bf16.xpose.msra.mxu0 0
        %2570 = vmatprep.subr.bf16.mxu0 0
        %2571 = vmatpush1.bf16.xpose.msra.mxu0 0
        %2572 = vmatprep.subr.bf16.mxu0 0
        %2573 = vmatpush1.bf16.xpose.msra.mxu0 0
        %2574 = vmatprep.subr.bf16.mxu0 0
        %2575 = vmatpush1.bf16.xpose.msra.mxu0 0
        %2576 = vmatprep.subr.bf16.mxu0 0
        %2577 = vmatpush1.bf16.xpose.msra.mxu0 0
        %2578 = vmatprep.subr.bf16.mxu0 0
        %2579 = vmatpush1.bf16.xpose.msra.mxu0 0
        %2580 = vmatprep.subr.bf16.mxu0 0
        %2581 = vmatpush1.bf16.xpose.msra.mxu0 0
        %2582 = vmatprep.subr.bf16.mxu0 0
        %2583 = vmatpush1.bf16.xpose.msra.mxu0 0
        %2584 = vmatprep.subr.bf16.mxu0 0
        %2585 = vmatpush1.bf16.xpose.msra.mxu0 0
        %2586 = vmatprep.subr.bf16.mxu0 0
        %2587 = vmatpush1.bf16.xpose.msra.mxu0 0
        %2588 = vmatprep.mubr.bf16.mxu0 0
        %2589 = vmatmul.mubr.bf16.gmra.mrb[0].mxu0 %v2545
        %v2590 = vpop.f32.mrb[0].mxu0
        %v2591 = vadd.f32 %v946, %v2590
        %v2592 = vpop.f32.mrb[0].mxu0
        %v2593 = vpop.f32.mrb[0].mxu0
        %v2594 = vadd.f32 %v946, %v2593
        %v2595 = vpop.f32.mrb[0].mxu0
        %2596 = vmatprep.mubr.bf16.mxu0 0
        %2597 = vmatmul.mubr.bf16.gmra.mrb[0].mxu0 %v2548
        %v2598 = vpop.f32.mrb[0].mxu0
        %v2599 = vadd.f32 %v946, %v2598
        %v2600 = vpop.f32.mrb[0].mxu0
        %v2601 = vpop.f32.mrb[0].mxu0
        %v2602 = vpop.f32.mrb[0].mxu0
        %2603 = vdwg.mxu0
        %v2604 = vsel %vm1015, %v2591, -inf
        %2605 = vmax.xlane.f32.xlu0 %v2604
        %v2606 = vpop.xlane.xlu0 %2605
        %v2607 = vsel %vm1015, %v2594, -inf
        %2608 = vmax.xlane.f32.xlu0 %v2607
        %v2609 = vpop.xlane.xlu0 %2608
        %v2610 = vsel %vm1015, %v2599, -inf
        %2611 = vmax.xlane.f32.xlu0 %v2610
        %v2612 = vpop.xlane.xlu0 %2611
        %v2613 = vsub.f32 %v2591, %v2606
        %v2614 = vsub.f32 %v2594, %v2609
        %v2615 = vsub.f32 %v2599, %v2612
        %v2616 = vmul.f32 %v2613, 1.442695
        %v2617 = vpow.pop %v2616
        %v2618 = vmul.f32 %v2614, 1.442695
        %v2619 = vpow.pop %v2618
        %v2620 = vmul.f32 %v2615, 1.442695
        %v2621 = vpow.pop %v2620
        %v2622 = vsel %vm1015, %v2617, 0.0
        %2623 = vadd.xlane.f32.xlu0 %v2622
        %v2624 = vpop.xlane.xlu0 %2623
        %v2625 = vsel %vm1015, %v2619, 0.0
        %2626 = vadd.xlane.f32.xlu0 %v2625
        %v2627 = vpop.xlane.xlu0 %2626
        %v2628 = vsel %vm1015, %v2621, 0.0
        %2629 = vadd.xlane.f32.xlu0 %v2628
        %v2630 = vpop.xlane.xlu0 %2629
        %v2631 = vrcp.pop %v2624
        %v2632 = vrcp.pop %v2627
        %v2633 = vrcp.pop %v2630
        %v2634 = vmul.f32 %v2617, %v2631
        %v2635 = vmul.f32 %v2619, %v2632
        %v2636 = vmul.f32 %v2621, %v2633
        %v2637 = vpack.c.bf16 %v2635, %v2634
        %v2638 = vpack.c.bf16 %v2636, %v2636
        %2639 = vrot.lane.b32.xlu0 %v1858, 40
        %v2640 = vpop.permute.xlu0 %2639
        %2641 = vrot.lane.b32.xlu0 %v1859, 40
        %v2642 = vpop.permute.xlu0 %2641
        %v2645 = vsel %vm1015, %v2637, 0
        %v2648 = vsel %vm1015, %v2638, 0
        %v2651 = vsel %vm1062, %v2642, 0
        %2653 = vmatprep.subr.bf16.mxu0 0
        %2654 = vmatpush1.bf16.msra.mxu0 %v2640
        %2655 = vmatprep.subr.bf16.mxu0 0
        %2656 = vmatpush1.bf16.msra.mxu0 %v2651
        %2657 = vmatprep.subr.bf16.mxu0 0
        %2658 = vmatpush1.bf16.msra.mxu0 0
        %2659 = vmatprep.subr.bf16.mxu0 0
        %2660 = vmatpush1.bf16.msra.mxu0 0
        %2661 = vmatprep.subr.bf16.mxu0 0
        %2662 = vmatpush1.bf16.msra.mxu0 0
        %2663 = vmatprep.subr.bf16.mxu0 0
        %2664 = vmatpush1.bf16.msra.mxu0 0
        %2665 = vmatprep.subr.bf16.mxu0 0
        %2666 = vmatpush1.bf16.msra.mxu0 0
        %2667 = vmatprep.subr.bf16.mxu0 0
        %2668 = vmatpush1.bf16.msra.mxu0 0
        %2669 = vmatprep.subr.bf16.mxu0 0
        %2670 = vmatpush1.bf16.msra.mxu0 0
        %2671 = vmatprep.subr.bf16.mxu0 0
        %2672 = vmatpush1.bf16.msra.mxu0 0
        %2673 = vmatprep.subr.bf16.mxu0 0
        %2674 = vmatpush1.bf16.msra.mxu0 0
        %2675 = vmatprep.subr.bf16.mxu0 0
        %2676 = vmatpush1.bf16.msra.mxu0 0
        %2677 = vmatprep.subr.bf16.mxu0 0
        %2678 = vmatpush1.bf16.msra.mxu0 0
        %2679 = vmatprep.subr.bf16.mxu0 0
        %2680 = vmatpush1.bf16.msra.mxu0 0
        %2681 = vmatprep.subr.bf16.mxu0 0
        %2682 = vmatpush1.bf16.msra.mxu0 0
        %2683 = vmatprep.subr.bf16.mxu0 0
        %2684 = vmatpush1.bf16.msra.mxu0 0
        %2685 = vmatprep.mubr.bf16.mxu0 0
        %2686 = vmatmul.mubr.bf16.gmra.mrb[0].mxu0 %v2645
        %v2687 = vpop.f32.mrb[0].mxu0
        %v2688 = vadd.f32 0.0, %v2687
        %v2689 = vpop.f32.mrb[0].mxu0
        %v2690 = vpop.f32.mrb[0].mxu0
        %v2691 = vadd.f32 0.0, %v2690
        %v2692 = vpop.f32.mrb[0].mxu0
        %2693 = vmatprep.mubr.bf16.mxu0 0
        %2694 = vmatmul.mubr.bf16.gmra.mrb[0].mxu0 %v2648
        %v2695 = vpop.f32.mrb[0].mxu0
        %v2696 = vadd.f32 0.0, %v2695
        %v2697 = vpop.f32.mrb[0].mxu0
        %v2698 = vpop.f32.mrb[0].mxu0
        %v2699 = vpop.f32.mrb[0].mxu0
        %2700 = vdwg.mxu0
        %v2701 = vpack.c.bf16 %v2691, %v2688
        %v2702 = vpack.c.bf16 %v2696, %v2696
        %v2703 = vld [vmem:[#allocation15 + $0xc] sm:$0xf]
        %v2705 = vsel %vm954, %v2701, 0
        %v2708 = vsel %vm954, %v2702, 0
        %v2711 = vsel %vm1062, %v2703, 0
        %2713 = vmatprep.subr.bf16.mxu0 0
        %2714 = vmatpush1.bf16.msra.mxu0 %v2711
        %2715 = vmatprep.subr.bf16.mxu0 0
        %2716 = vmatpush1.bf16.msra.mxu0 0
        %2717 = vmatprep.subr.bf16.mxu0 0
        %2718 = vmatpush1.bf16.msra.mxu0 0
        %2719 = vmatprep.subr.bf16.mxu0 0
        %2720 = vmatpush1.bf16.msra.mxu0 0
        %2721 = vmatprep.subr.bf16.mxu0 0
        %2722 = vmatpush1.bf16.msra.mxu0 0
        %2723 = vmatprep.subr.bf16.mxu0 0
        %2724 = vmatpush1.bf16.msra.mxu0 0
        %2725 = vmatprep.subr.bf16.mxu0 0
        %2726 = vmatpush1.bf16.msra.mxu0 0
        %2727 = vmatprep.subr.bf16.mxu0 0
        %2728 = vmatpush1.bf16.msra.mxu0 0
        %2729 = vmatprep.subr.bf16.mxu0 0
        %2730 = vmatpush1.bf16.msra.mxu0 0
        %2731 = vmatprep.subr.bf16.mxu0 0
        %2732 = vmatpush1.bf16.msra.mxu0 0
        %2733 = vmatprep.subr.bf16.mxu0 0
        %2734 = vmatpush1.bf16.msra.mxu0 0
        %2735 = vmatprep.subr.bf16.mxu0 0
        %2736 = vmatpush1.bf16.msra.mxu0 0
        %2737 = vmatprep.subr.bf16.mxu0 0
        %2738 = vmatpush1.bf16.msra.mxu0 0
        %2739 = vmatprep.subr.bf16.mxu0 0
        %2740 = vmatpush1.bf16.msra.mxu0 0
        %2741 = vmatprep.subr.bf16.mxu0 0
        %2742 = vmatpush1.bf16.msra.mxu0 0
        %2743 = vmatprep.subr.bf16.mxu0 0
        %2744 = vmatpush1.bf16.msra.mxu0 0
        %2745 = vmatprep.mubr.bf16.mxu0 0
        %2746 = vmatmul.mubr.bf16.gmra.mrb[0].mxu0 %v2705
        %v2747 = vpop.f32.mrb[0].mxu0
        %v2748 = vadd.f32 0.0, %v2747
        %v2749 = vpop.f32.mrb[0].mxu0
        %v2750 = vpop.f32.mrb[0].mxu0
        %v2751 = vadd.f32 0.0, %v2750
        %v2752 = vpop.f32.mrb[0].mxu0
        %2753 = vmatprep.mubr.bf16.mxu0 0
        %2754 = vmatmul.mubr.bf16.gmra.mrb[0].mxu0 %v2708
        %v2755 = vpop.f32.mrb[0].mxu0
        %v2756 = vadd.f32 0.0, %v2755
        %v2757 = vpop.f32.mrb[0].mxu0
        %v2758 = vpop.f32.mrb[0].mxu0
        %v2759 = vpop.f32.mrb[0].mxu0
        %2760 = vdwg.mxu0
        %v2761 = vadd.f32 %v2533, %v2748
        %v2762 = vadd.f32 %v2534, %v2751
        %v2763 = vadd.f32 %v2535, %v2756
        %2764 = vst.msk [vmem:[#allocation3 + $0x18] sm:$0xff] %vm730, %v2761
        %2765 = vst.msk [vmem:[#allocation3 + $0x20] sm:$0xff] %vm730, %v2762
        %2766 = vst.msk [vmem:[#allocation3 + $0x28] sm:$0xff] %vm730, %v2763
        %v2767 = vld [vmem:[#allocation3] sm:$0xff]
        %v2768 = vld [vmem:[#allocation3 + $0x8] sm:$0xff]
        %v2769 = vld [vmem:[#allocation3 + $0x10] sm:$0xff]
        %v2770 = vld [vmem:[#allocation3 + $0x18] sm:$0xff]
        %v2771 = vld [vmem:[#allocation3 + $0x20] sm:$0xff]
        %v2772 = vld [vmem:[#allocation3 + $0x28] sm:$0xff]
        %v2773 = vadd.f32 %v743, %v2767
        %v2774 = vadd.f32 %v744, %v2768
        %v2775 = vadd.f32 %v745, %v2769
        %v2776 = vadd.f32 %v746, %v2770
        %v2777 = vadd.f32 %v747, %v2771
        %v2778 = vadd.f32 %v748, %v2772
        %v2779 = vld [vmem:[#allocation16] sm:$0x1]
        %v2781 = vlaneseq
        %v2782 = vshrl.u32 %v2781, 7
        %v2783 = vsub.s32 0, %v2782
        %v2784 = vrot.slane %v2779, %v2783
        %v2786 = vadd.f32 %v2773, %v2784
        %v2787 = vadd.f32 %v2774, %v2784
        %v2788 = vadd.f32 %v2775, %v2784
        %v2789 = vadd.f32 %v2776, %v2784
        %v2790 = vadd.f32 %v2777, %v2784
        %v2791 = vadd.f32 %v2778, %v2784
        %v2792 = vld [vmem:[#allocation18] sm:$0x1]
        %v2793 = vld [vmem:[#allocation19] sm:$0x1]
        %v2794 = vsel %vm730, %v2786, 0.0
        %2795 = vadd.xlane.f32.xlu0 %v2794
        %v2796 = vpop.xlane.xlu0 %2795
        %v2797 = vsel %vm730, %v2787, 0.0
        %2798 = vadd.xlane.f32.xlu0 %v2797
        %v2799 = vpop.xlane.xlu0 %2798
        %v2800 = vsel %vm730, %v2788, 0.0
        %2801 = vadd.xlane.f32.xlu0 %v2800
        %v2802 = vpop.xlane.xlu0 %2801
        %v2803 = vsel %vm730, %v2789, 0.0
        %2804 = vadd.xlane.f32.xlu0 %v2803
        %v2805 = vpop.xlane.xlu0 %2804
        %v2806 = vsel %vm730, %v2790, 0.0
        %2807 = vadd.xlane.f32.xlu0 %v2806
        %v2808 = vpop.xlane.xlu0 %2807
        %v2809 = vsel %vm730, %v2791, 0.0
        %2810 = vadd.xlane.f32.xlu0 %v2809
        %v2811 = vpop.xlane.xlu0 %2810
        %v2812 = vmul.f32 %v2796, %v769
        %v2813 = vmul.f32 %v2799, %v769
        %v2814 = vmul.f32 %v2802, %v769
        %v2815 = vmul.f32 %v2805, %v769
        %v2816 = vmul.f32 %v2808, %v769
        %v2817 = vmul.f32 %v2811, %v769
        %v2818 = vsub.f32 %v2786, %v2812
        %v2819 = vsub.f32 %v2787, %v2813
        %v2820 = vsub.f32 %v2788, %v2814
        %v2821 = vsub.f32 %v2789, %v2815
        %v2822 = vsub.f32 %v2790, %v2816
        %v2823 = vsub.f32 %v2791, %v2817
        %v2824 = vmul.f32 %v2818, %v2818
        %v2825 = vmul.f32 %v2819, %v2819
        %v2826 = vmul.f32 %v2820, %v2820
        %v2827 = vmul.f32 %v2821, %v2821
        %v2828 = vmul.f32 %v2822, %v2822
        %v2829 = vmul.f32 %v2823, %v2823
        %v2830 = vsel %vm730, %v2824, 0.0
        %2831 = vadd.xlane.f32.xlu0 %v2830
        %v2832 = vpop.xlane.xlu0 %2831
        %v2833 = vsel %vm730, %v2825, 0.0
        %2834 = vadd.xlane.f32.xlu0 %v2833
        %v2835 = vpop.xlane.xlu0 %2834
        %v2836 = vsel %vm730, %v2826, 0.0
        %2837 = vadd.xlane.f32.xlu0 %v2836
        %v2838 = vpop.xlane.xlu0 %2837
        %v2839 = vsel %vm730, %v2827, 0.0
        %2840 = vadd.xlane.f32.xlu0 %v2839
        %v2841 = vpop.xlane.xlu0 %2840
        %v2842 = vsel %vm730, %v2828, 0.0
        %2843 = vadd.xlane.f32.xlu0 %v2842
        %v2844 = vpop.xlane.xlu0 %2843
        %v2845 = vsel %vm730, %v2829, 0.0
        %2846 = vadd.xlane.f32.xlu0 %v2845
        %v2847 = vpop.xlane.xlu0 %2846
        %v2848 = vmul.f32 %v2832, %v769
        %v2849 = vmul.f32 %v2835, %v769
        %v2850 = vmul.f32 %v2838, %v769
        %v2851 = vmul.f32 %v2841, %v769
        %v2852 = vmul.f32 %v2844, %v769
        %v2853 = vmul.f32 %v2847, %v769
        %v2854 = vadd.f32 %v2848, 1e-05
        %v2855 = vadd.f32 %v2849, 1e-05
        %v2856 = vadd.f32 %v2850, 1e-05
        %v2857 = vadd.f32 %v2851, 1e-05
        %v2858 = vadd.f32 %v2852, 1e-05
        %v2859 = vadd.f32 %v2853, 1e-05
        %v2860 = vrsqrt.pop %v2854
        %v2861 = vrsqrt.pop %v2855
        %v2862 = vrsqrt.pop %v2856
        %v2863 = vrsqrt.pop %v2857
        %v2864 = vrsqrt.pop %v2858
        %v2865 = vrsqrt.pop %v2859
        %v2866 = vmul.f32 %v2818, %v2860
        %v2867 = vmul.f32 %v2819, %v2861
        %v2868 = vmul.f32 %v2820, %v2862
        %v2869 = vmul.f32 %v2821, %v2863
        %v2870 = vmul.f32 %v2822, %v2864
        %v2871 = vmul.f32 %v2823, %v2865
        %v2873 = vlaneseq
        %v2874 = vshrl.u32 %v2873, 7
        %v2875 = vsub.s32 0, %v2874
        %v2876 = vrot.slane %v2792, %v2875
        %v2878 = vmul.f32 %v2866, %v2876
        %v2879 = vmul.f32 %v2867, %v2876
        %v2880 = vmul.f32 %v2868, %v2876
        %v2881 = vmul.f32 %v2869, %v2876
        %v2882 = vmul.f32 %v2870, %v2876
        %v2883 = vmul.f32 %v2871, %v2876
        %v2885 = vlaneseq
        %v2886 = vshrl.u32 %v2885, 7
        %v2887 = vsub.s32 0, %v2886
        %v2888 = vrot.slane %v2793, %v2887
        %v2890 = vadd.f32 %v2878, %v2888
        %v2891 = vadd.f32 %v2879, %v2888
        %v2892 = vadd.f32 %v2880, %v2888
        %v2893 = vadd.f32 %v2881, %v2888
        %v2894 = vadd.f32 %v2882, %v2888
        %v2895 = vadd.f32 %v2883, %v2888
        %v2896 = vpack.c.bf16 %v2891, %v2890
        %v2897 = vpack.c.bf16 %v2893, %v2892
        %v2898 = vpack.c.bf16 %v2895, %v2894
        %v2899 = vld [vmem:[#allocation21] sm:$0xf]
        %v2900 = vld [vmem:[#allocation21 + $0x4] sm:$0xf]
        %v2901 = vld [vmem:[#allocation21 + $0x8] sm:$0xf]
        %v2902 = vld [vmem:[#allocation21 + $0xc] sm:$0xf]
        %v2903 = vld [vmem:[#allocation22] sm:$0x1]
        %v2905 = vlaneseq
        %v2906 = vshrl.u32 %v2905, 7
        %v2907 = vsub.s32 0, %v2906
        %v2908 = vrot.slane %v2903, %v2907
        %v2914 = vunpack.c.l.b16 %v2899
        %v2915 = vunpack.c.l.b16 %v2900
        %v2916 = vunpack.c.l.b16 %v2901
        %v2917 = vunpack.c.l.b16 %v2902
        %v2918 = vpack.c.b16 %v2915, %v2914
        %v2919 = vpack.c.b16 %v2917, %v2916
        %v2923 = vsel %vm730, %v2896, 0
        %v2926 = vsel %vm730, %v2897, 0
        %v2929 = vsel %vm730, %v2898, 0
        %2931 = vmatprep.subr.bf16.mxu0 0
        %2932 = vmatpush1.bf16.msra.mxu0 %v2918
        %2933 = vmatprep.subr.bf16.mxu0 0
        %2934 = vmatpush1.bf16.msra.mxu0 %v2919
        %2935 = vmatprep.subr.bf16.mxu0 0
        %2936 = vmatpush1.bf16.msra.mxu0 0
        %2937 = vmatprep.subr.bf16.mxu0 0
        %2938 = vmatpush1.bf16.msra.mxu0 0
        %2939 = vmatprep.subr.bf16.mxu0 0
        %2940 = vmatpush1.bf16.msra.mxu0 0
        %2941 = vmatprep.subr.bf16.mxu0 0
        %2942 = vmatpush1.bf16.msra.mxu0 0
        %2943 = vmatprep.subr.bf16.mxu0 0
        %2944 = vmatpush1.bf16.msra.mxu0 0
        %2945 = vmatprep.subr.bf16.mxu0 0
        %2946 = vmatpush1.bf16.msra.mxu0 0
        %2947 = vmatprep.subr.bf16.mxu0 0
        %2948 = vmatpush1.bf16.msra.mxu0 0
        %2949 = vmatprep.subr.bf16.mxu0 0
        %2950 = vmatpush1.bf16.msra.mxu0 0
        %2951 = vmatprep.subr.bf16.mxu0 0
        %2952 = vmatpush1.bf16.msra.mxu0 0
        %2953 = vmatprep.subr.bf16.mxu0 0
        %2954 = vmatpush1.bf16.msra.mxu0 0
        %2955 = vmatprep.subr.bf16.mxu0 0
        %2956 = vmatpush1.bf16.msra.mxu0 0
        %2957 = vmatprep.subr.bf16.mxu0 0
        %2958 = vmatpush1.bf16.msra.mxu0 0
        %2959 = vmatprep.subr.bf16.mxu0 0
        %2960 = vmatpush1.bf16.msra.mxu0 0
        %2961 = vmatprep.subr.bf16.mxu0 0
        %2962 = vmatpush1.bf16.msra.mxu0 0
        %2963 = vmatprep.mubr.bf16.mxu0 0
        %2964 = vmatmul.mubr.bf16.gmra.mrb[0].mxu0 %v2923
        %v2965 = vpop.f32.mrb[0].mxu0
        %v2966 = vadd.f32 %v2908, %v2965
        %v2967 = vpop.f32.mrb[0].mxu0
        %v2968 = vpop.f32.mrb[0].mxu0
        %v2969 = vadd.f32 %v2908, %v2968
        %v2970 = vpop.f32.mrb[0].mxu0
        %2971 = vmatprep.mubr.bf16.mxu0 0
        %2972 = vmatmul.mubr.bf16.gmra.mrb[0].mxu0 %v2926
        %v2973 = vpop.f32.mrb[0].mxu0
        %v2974 = vadd.f32 %v2908, %v2973
        %v2975 = vpop.f32.mrb[0].mxu0
        %v2976 = vpop.f32.mrb[0].mxu0
        %v2977 = vadd.f32 %v2908, %v2976
        %v2978 = vpop.f32.mrb[0].mxu0
        %2979 = vmatprep.mubr.bf16.mxu0 0
        %2980 = vmatmul.mubr.bf16.gmra.mrb[0].mxu0 %v2929
        %v2981 = vpop.f32.mrb[0].mxu0
        %v2982 = vadd.f32 %v2908, %v2981
        %v2983 = vpop.f32.mrb[0].mxu0
        %v2984 = vpop.f32.mrb[0].mxu0
        %v2985 = vadd.f32 %v2908, %v2984
        %v2986 = vpop.f32.mrb[0].mxu0
        %2987 = vdwg.mxu0
        %v2988 = vmul.f32 %v2966, 0.5
        %v2989 = vmul.f32 %v2969, 0.5
        %v2990 = vmul.f32 %v2974, 0.5
        %v2991 = vmul.f32 %v2977, 0.5
        %v2992 = vmul.f32 %v2982, 0.5
        %v2993 = vmul.f32 %v2985, 0.5
        %v2994 = vmul.f32 %v2966, 0.044715
        %v2995 = vmul.f32 %v2969, 0.044715
        %v2996 = vmul.f32 %v2974, 0.044715
        %v2997 = vmul.f32 %v2977, 0.044715
        %v2998 = vmul.f32 %v2982, 0.044715
        %v2999 = vmul.f32 %v2985, 0.044715
        %v3000 = vmul.f32 %v2994, %v2966
        %v3001 = vmul.f32 %v2995, %v2969
        %v3002 = vmul.f32 %v2996, %v2974
        %v3003 = vmul.f32 %v2997, %v2977
        %v3004 = vmul.f32 %v2998, %v2982
        %v3005 = vmul.f32 %v2999, %v2985
        %v3006 = vmul.f32 %v3000, %v2966
        %v3007 = vmul.f32 %v3001, %v2969
        %v3008 = vmul.f32 %v3002, %v2974
        %v3009 = vmul.f32 %v3003, %v2977
        %v3010 = vmul.f32 %v3004, %v2982
        %v3011 = vmul.f32 %v3005, %v2985
        %v3012 = vadd.f32 %v2966, %v3006
        %v3013 = vadd.f32 %v2969, %v3007
        %v3014 = vadd.f32 %v2974, %v3008
        %v3015 = vadd.f32 %v2977, %v3009
        %v3016 = vadd.f32 %v2982, %v3010
        %v3017 = vadd.f32 %v2985, %v3011
        %v3018 = vmul.f32 %v3012, 0.7978846
        %v3019 = vmul.f32 %v3013, 0.7978846
        %v3020 = vmul.f32 %v3014, 0.7978846
        %v3021 = vmul.f32 %v3015, 0.7978846
        %v3022 = vmul.f32 %v3016, 0.7978846
        %v3023 = vmul.f32 %v3017, 0.7978846
        %v3024 = vtanh.pop %v3018
        %v3025 = vtanh.pop %v3019
        %v3026 = vtanh.pop %v3020
        %v3027 = vtanh.pop %v3021
        %v3028 = vtanh.pop %v3022
        %v3029 = vtanh.pop %v3023
        %v3030 = vadd.f32 %v3024, 1.0
        %v3031 = vadd.f32 %v3025, 1.0
        %v3032 = vadd.f32 %v3026, 1.0
        %v3033 = vadd.f32 %v3027, 1.0
        %v3034 = vadd.f32 %v3028, 1.0
        %v3035 = vadd.f32 %v3029, 1.0
        %v3036 = vmul.f32 %v2988, %v3030
        %v3037 = vmul.f32 %v2989, %v3031
        %v3038 = vmul.f32 %v2990, %v3032
        %v3039 = vmul.f32 %v2991, %v3033
        %v3040 = vmul.f32 %v2992, %v3034
        %v3041 = vmul.f32 %v2993, %v3035
        %v3042 = vpack.c.bf16 %v3037, %v3036
        %v3043 = vpack.c.bf16 %v3039, %v3038
        %v3044 = vpack.c.bf16 %v3041, %v3040
        %v3045 = vld [vmem:[#allocation24] sm:$0xf]
        %v3046 = vld [vmem:[#allocation24 + $0x4] sm:$0xf]
        %v3047 = vld [vmem:[#allocation24 + $0x8] sm:$0xf]
        %v3048 = vld [vmem:[#allocation24 + $0xc] sm:$0xf]
        %v3049 = vld [vmem:[#allocation24 + $0x10] sm:$0xf]
        %v3050 = vld [vmem:[#allocation24 + $0x14] sm:$0xf]
        %v3051 = vld [vmem:[#allocation24 + $0x18] sm:$0xf]
        %v3052 = vld [vmem:[#allocation24 + $0x1c] sm:$0xf]
        %v3053 = vld [vmem:[#allocation24 + $0x20] sm:$0xf]
        %v3054 = vld [vmem:[#allocation24 + $0x24] sm:$0xf]
        %v3055 = vld [vmem:[#allocation24 + $0x28] sm:$0xf]
        %v3056 = vld [vmem:[#allocation24 + $0x2c] sm:$0xf]
        %v3057 = vld [vmem:[#allocation24 + $0x30] sm:$0xf]
        %v3058 = vld [vmem:[#allocation24 + $0x34] sm:$0xf]
        %v3059 = vld [vmem:[#allocation24 + $0x38] sm:$0xf]
        %v3060 = vld [vmem:[#allocation24 + $0x3c] sm:$0xf]
        %v3061 = vld [vmem:[#allocation25] sm:$0x1]
        %v3063 = vlaneseq
        %v3064 = vshrl.u32 %v3063, 7
        %v3065 = vsub.s32 0, %v3064
        %v3066 = vrot.slane %v3061, %v3065
        %v3084 = vunpack.c.l.b16 %v3045
        %v3085 = vunpack.c.l.b16 %v3046
        %v3086 = vunpack.c.l.b16 %v3047
        %v3087 = vunpack.c.l.b16 %v3048
        %v3088 = vunpack.c.l.b16 %v3049
        %v3089 = vunpack.c.l.b16 %v3050
        %v3090 = vunpack.c.l.b16 %v3051
        %v3091 = vunpack.c.l.b16 %v3052
        %v3092 = vunpack.c.l.b16 %v3053
        %v3093 = vunpack.c.l.b16 %v3054
        %v3094 = vunpack.c.l.b16 %v3055
        %v3095 = vunpack.c.l.b16 %v3056
        %v3096 = vunpack.c.l.b16 %v3057
        %v3097 = vunpack.c.l.b16 %v3058
        %v3098 = vunpack.c.l.b16 %v3059
        %v3099 = vunpack.c.l.b16 %v3060
        %v3100 = vpack.c.b16 %v3085, %v3084
        %v3101 = vpack.c.b16 %v3087, %v3086
        %v3102 = vpack.c.b16 %v3089, %v3088
        %v3103 = vpack.c.b16 %v3091, %v3090
        %v3104 = vpack.c.b16 %v3093, %v3092
        %v3105 = vpack.c.b16 %v3095, %v3094
        %v3106 = vpack.c.b16 %v3097, %v3096
        %v3107 = vpack.c.b16 %v3099, %v3098
        %3116 = vmatprep.subr.bf16.mxu0 0
        %3117 = vmatpush1.bf16.msra.mxu0 %v3100
        %3118 = vmatprep.subr.bf16.mxu0 0
        %3119 = vmatpush1.bf16.msra.mxu0 %v3101
        %3120 = vmatprep.subr.bf16.mxu0 0
        %3121 = vmatpush1.bf16.msra.mxu0 %v3102
        %3122 = vmatprep.subr.bf16.mxu0 0
        %3123 = vmatpush1.bf16.msra.mxu0 %v3103
        %3124 = vmatprep.subr.bf16.mxu0 0
        %3125 = vmatpush1.bf16.msra.mxu0 %v3104
        %3126 = vmatprep.subr.bf16.mxu0 0
        %3127 = vmatpush1.bf16.msra.mxu0 %v3105
        %3128 = vmatprep.subr.bf16.mxu0 0
        %3129 = vmatpush1.bf16.msra.mxu0 %v3106
        %3130 = vmatprep.subr.bf16.mxu0 0
        %3131 = vmatpush1.bf16.msra.mxu0 %v3107
        %3132 = vmatprep.subr.bf16.mxu0 0
        %3133 = vmatpush1.bf16.msra.mxu0 0
        %3134 = vmatprep.subr.bf16.mxu0 0
        %3135 = vmatpush1.bf16.msra.mxu0 0
        %3136 = vmatprep.subr.bf16.mxu0 0
        %3137 = vmatpush1.bf16.msra.mxu0 0
        %3138 = vmatprep.subr.bf16.mxu0 0
        %3139 = vmatpush1.bf16.msra.mxu0 0
        %3140 = vmatprep.subr.bf16.mxu0 0
        %3141 = vmatpush1.bf16.msra.mxu0 0
        %3142 = vmatprep.subr.bf16.mxu0 0
        %3143 = vmatpush1.bf16.msra.mxu0 0
        %3144 = vmatprep.subr.bf16.mxu0 0
        %3145 = vmatpush1.bf16.msra.mxu0 0
        %3146 = vmatprep.subr.bf16.mxu0 0
        %3147 = vmatpush1.bf16.msra.mxu0 0
        %3148 = vmatprep.mubr.bf16.mxu0 0
        %3149 = vmatmul.mubr.bf16.gmra.mrb[0].mxu0 %v3042
        %v3150 = vpop.f32.mrb[0].mxu0
        %v3151 = vadd.f32 %v3066, %v3150
        %v3152 = vpop.f32.mrb[0].mxu0
        %v3153 = vpop.f32.mrb[0].mxu0
        %v3154 = vadd.f32 %v3066, %v3153
        %v3155 = vpop.f32.mrb[0].mxu0
        %3156 = vmatprep.mubr.bf16.mxu0 0
        %3157 = vmatmul.mubr.bf16.gmra.mrb[0].mxu0 %v3043
        %v3158 = vpop.f32.mrb[0].mxu0
        %v3159 = vadd.f32 %v3066, %v3158
        %v3160 = vpop.f32.mrb[0].mxu0
        %v3161 = vpop.f32.mrb[0].mxu0
        %v3162 = vadd.f32 %v3066, %v3161
        %v3163 = vpop.f32.mrb[0].mxu0
        %3164 = vmatprep.mubr.bf16.mxu0 0
        %3165 = vmatmul.mubr.bf16.gmra.mrb[0].mxu0 %v3044
        %v3166 = vpop.f32.mrb[0].mxu0
        %v3167 = vadd.f32 %v3066, %v3166
        %v3168 = vpop.f32.mrb[0].mxu0
        %v3169 = vpop.f32.mrb[0].mxu0
        %v3170 = vadd.f32 %v3066, %v3169
        %v3171 = vpop.f32.mrb[0].mxu0
        %3172 = vdwg.mxu0
        %v3173 = vadd.f32 %v2786, %v3151
        %v3174 = vadd.f32 %v2787, %v3154
        %v3175 = vadd.f32 %v2788, %v3159
        %v3176 = vadd.f32 %v2789, %v3162
        %v3177 = vadd.f32 %v2790, %v3167
        %v3178 = vadd.f32 %v2791, %v3170
        %3179 = vst.msk [vmem:[%s715] sm:$0xff] %vm730, %v3173
        %3180 = vst.msk [vmem:[%s715 + $0x8] sm:$0xff] %vm730, %v3174
        %3181 = vst.msk [vmem:[%s722] sm:$0xff] %vm730, %v3175
        %s3182 = scalar_lea.vmem %s715, 16 [#allocation27]
        %3183 = vst.msk [vmem:[%s3182] sm:$0xff] %vm730, %v3176
        %3184 = vst.msk [vmem:[%s3182 + $0x8] sm:$0xff] %vm730, %v3177
        %s3185 = scalar_lea.vmem %s722, 8 [#allocation28]
        %3186 = vst.msk [vmem:[%s3185] sm:$0xff] %vm730, %v3178
        %s3187 = sand.u32 %s357, 1
        %s3188 = scalar_lea.sflag [#allocation6], %s3187
        %s3189 = sand.u32 %s357, 1
        %s3190 = smul.addr %s3189, 32
        %s3191 = scalar_lea.vmem [#allocation27], %s3190
        %s3192 = sand.u32 %s383, 1
        %s3193 = scalar_lea.sflag [#allocation29], %s3192
        %s3194 = sand.u32 %s383, 1
        %s3195 = smul.addr %s3194, 16
        %s3196 = scalar_lea.vmem [#allocation28], %s3195
        // Predicated region
        $region133: #{mbt_forward.5} parent=75 // pred_check
          %p3197 = pneg %p367
        $region134: #{mbt_forward.5} parent=75 // pred_check_branch
          %3199 = sbr.rel (%p3197) target = $region136
        $region135: #{mbt_forward.5} parent=75 // pred_region
          %s3200 = smul.u32 2, %s45
          %s3202 = ssub.s32 512, 512
          %3203 = vsyncadd %s3188, %s3202
          %s3204 = smul.addr %s3200, 2
          %s3205 = smul.addr %s3204, 128
          %s3206 = scalar_lea.hbm %s14, %s3205
          %s3207 = sshll.u32 %s3191, 4
          %s3208 = int_to_ptr.vmem [resolvable:$true] %s3207
          %3213 = dma.vmem_to_hbm [thread:$0]  %s3208, 512, %s3206, %s3188, 128, 128, 8
        $region136: #{mbt_forward.5} parent=75 // pred_fallthru
          _
        // Predicated region
        $region137: #{mbt_forward.5} parent=75 // pred_check
          %p3214 = pneg %p393
        $region138: #{mbt_forward.5} parent=75 // pred_check_branch
          %3216 = sbr.rel (%p3214) target = $region140
        $region139: #{mbt_forward.5} parent=75 // pred_region
          %s3217 = smul.u32 2, %s45
          %s3219 = ssub.s32 256, 256
          %3220 = vsyncadd %s3193, %s3219
          %s3221 = smul.addr %s3217, 128
          %s3222 = scalar_lea.hbm %s15, %s3221
          %s3223 = sshll.u32 %s3196, 4
          %s3224 = int_to_ptr.vmem [resolvable:$true] %s3223
          %3229 = dma.vmem_to_hbm [thread:$0]  %s3224, 256, %s3222, %s3193, 128, 128, 8
        $region140: #{mbt_forward.5} parent=75 // pred_fallthru
          _
      $region76: #{mbt_forward.5} parent=5 // pred_fallthru
        _
      %p3230 = scmp.le.s32.totalorder 2, %s40
      // Predicated region
      $region141: #{mbt_forward.5} parent=5 // pred_check
        %p3231 = pneg %p3230
      $region142: #{mbt_forward.5} parent=5 // pred_check_branch
        %3233 = sbr.rel (%p3231) target = $region144
      $region143: #{mbt_forward.5} parent=5 // pred_region
        %s3234 = ssub.s32 %s40, 2
        // Predicated region
        $region145: #{mbt_forward.5} parent=143 // pred_check
          %p3235 = pneg %p373
        $region146: #{mbt_forward.5} parent=143 // pred_check_branch
          %3237 = sbr.rel (%p3235) target = $region148
        $region147: #{mbt_forward.5} parent=143 // pred_region
          %s3238 = sand.u32 %s358, 1
          %s3239 = scalar_lea.sflag [#allocation6], %s3238
          %s3240 = sand.u32 %s358, 1
          %s3241 = smul.addr %s3240, 32
          %s3242 = scalar_lea.vmem [#allocation27], %s3241
          %3243 = dma.done %s3239, 512
        $region148: #{mbt_forward.5} parent=143 // pred_fallthru
          _
        // Predicated region
        $region149: #{mbt_forward.5} parent=143 // pred_check
          %p3244 = pneg %p399
        $region150: #{mbt_forward.5} parent=143 // pred_check_branch
          %3246 = sbr.rel (%p3244) target = $region152
        $region151: #{mbt_forward.5} parent=143 // pred_region
          %s3247 = sand.u32 %s384, 1
          %s3248 = scalar_lea.sflag [#allocation29], %s3247
          %s3249 = sand.u32 %s384, 1
          %s3250 = smul.addr %s3249, 16
          %s3251 = scalar_lea.vmem [#allocation28], %s3250
          %3252 = dma.done %s3248, 256
        $region152: #{mbt_forward.5} parent=143 // pred_fallthru
          _
      $region144: #{mbt_forward.5} parent=5 // pred_fallthru
        _
    $region6: #{mbt_forward.5} parent=1 // loop_footer
      %s44 = sadd.s32 1, %s40
    $region7: #{mbt_forward.5} parent=1 // loop_footer_branch
      %39 = sbr.rel target = $region3
    $region8: #{mbt_forward.5} parent=1 // loop_exit
      _
    %3253 = vsyncpa [#allocation5], 1
    %s3254 = scalar_lea.sflag [#allocation5], 1
    %3255 = vsyncpa %s3254, 1
    %3256 = vsyncpa [#allocation8], 1
    %s3257 = scalar_lea.sflag [#allocation8], 1
    %3258 = vsyncpa %s3257, 1
    %3259 = vsyncpa [#allocation11], 1
    %3260 = vsyncpa [#allocation14], 1
    %3261 = vsyncpa [#allocation17], 1
    %3262 = vsyncpa [#allocation20], 1
    %3263 = vsyncpa [#allocation23], 1
    %3264 = vsyncpa [#allocation26], 1
    %3265 = vsyncpa [#allocation6], 1
    %s3266 = scalar_lea.sflag [#allocation6], 1
    %3267 = vsyncpa %s3266, 1
    %3268 = vsyncpa [#allocation29], 1
    %s3269 = scalar_lea.sflag [#allocation29], 1
    %3270 = vsyncpa %s3269, 1

</llo_original>
